<compile_context>
chip_gen: v7x
topology: tpu7x:2x2x1
jax: 0.10.0
libtpu: 0.0.40
codegen_flags: <defaults>
</compile_context>

<pallas_src>
import functools

import jax
import jax.numpy as jnp
from jax.experimental import pallas as pl
from jax.experimental.pallas import tpu as pltpu


# ---------------------------------------------------------------------------
# Helpers / static layouts (shared by pack_params, kernel and wrapper)
# ---------------------------------------------------------------------------
def _round_up(x, m):
    return ((x + m - 1) // m) * m


def _bias_layout(d_in, dim_z, dim_w, K):
    """128-aligned segment offsets inside the single packed bias slab."""
    d_out_pad = _round_up(d_in, 128)
    dzw = dim_z + dim_w
    segs = [
        ("pre", 400),
        ("head", 2 * dzw),
        ("d1", 256),
        ("d2", K),
        ("p1", K * 256),
        ("p2", 2 * K * dim_z),
        ("dec1", 400),
        ("dec2", d_out_pad),
    ]
    off, cur = {}, 0
    for name, width in segs:
        off[name] = (cur, width)
        cur += _round_up(width, 128)          # every segment starts 128-aligned
    return off, cur


def _slab_layout(dim_z, dim_w, K):
    """Column offsets of the packed small-output slab (store order = compute order)."""
    dzw = dim_z + dim_w
    lay = {}
    lay["mu"] = 0                       # [mu_z | mu_w]
    lay["var"] = dzw                    # [var_z | var_w]
    lay["pi"] = 2 * dzw
    lay["mus"] = lay["pi"] + K          # [mus_0 .. mus_{K-1}]
    lay["vars"] = lay["mus"] + K * dim_z
    lay["used"] = lay["vars"] + K * dim_z
    lay["width"] = _round_up(lay["used"], 128)
    return lay


# ---------------------------------------------------------------------------
# Fused GMVAE forward kernel (one batch tile per grid step)
# ---------------------------------------------------------------------------
def _gmvae_fused_kernel(
    dim_z, dim_w, K, d_in,
    # inputs
    x_ref, eps_ref,
    pre_w_ref, head_w_ref, d1_w_ref, d2_w_ref,
    p1_w_ref, p2_w_ref, dec1_w_ref, dec2_w_ref, bias_ref,
    # outputs
    mu_x_ref, slab_ref,
):
    f32 = jnp.float32
    dzw = dim_z + dim_w
    bl, _ = _bias_layout(d_in, dim_z, dim_w, K)
    sl = _slab_layout(dim_z, dim_w, K)

    def bias(name):
        off, width = bl[name]
        return bias_ref[:, off:off + width]          # [1, width], broadcasts over batch

    x = x_ref[...]

    # pre_encoder: relu(x @ W + b)
    h = jnp.maximum(
        jnp.dot(x, pre_w_ref[...], preferred_element_type=f32) + bias("pre"), 0.0)

    # fused z/w heads: theta = [mu_z | mu_w | logvar_z_pre | logvar_w_pre]
    theta = jnp.dot(h, head_w_ref[...], preferred_element_type=f32) + bias("head")
    mu_zw = theta[:, :dzw]
    std_zw = jnp.exp(0.5 * jnp.tanh(theta[:, dzw:]))   # std directly -> no sqrt
    var_zw = std_zw * std_zw

    # reparameterize (eps drawn outside, passed in): zw = [z | w]
    zw = mu_zw + eps_ref[...] * std_zw
    z = zw[:, :dim_z]
    w_lat = zw[:, dim_z:]

    # d_encoder: softmax(tanh(cat(z, w) @ W1 + b1) @ W2 + b2) + 1e-20
    # (cat(z, w) is zw already -> no in-kernel shuffles)
    hd = jnp.tanh(jnp.dot(zw, d1_w_ref[...], preferred_element_type=f32) + bias("d1"))
    logits = jnp.dot(hd, d2_w_ref[...], preferred_element_type=f32) + bias("d2")
    logits = logits - jnp.max(logits, axis=-1, keepdims=True)
    e = jnp.exp(logits)
    pi = e / jnp.sum(e, axis=-1, keepdims=True) + 1e-20   # exact softmax

    # z_prior stage 1: one batched [B, dw] @ [dw, K*256] matmul
    h_all = jnp.maximum(
        jnp.dot(w_lat, p1_w_ref[...], preferred_element_type=f32) + bias("p1"), 0.0)
    # z_prior stage 2: one block-diagonal matmul, columns [mus | vars]
    prior = jnp.dot(h_all, p2_w_ref[...], preferred_element_type=f32) + bias("p2")
    mus = prior[:, :K * dim_z]
    vars_ = jnp.exp(jnp.tanh(prior[:, K * dim_z:]))

    # decoder: sigmoid(relu(z @ W + b) @ W2 + b2)  (sigmoid via stable tanh form)
    dh = jnp.maximum(
        jnp.dot(z, dec1_w_ref[...], preferred_element_type=f32) + bias("dec1"), 0.0)
    y = jnp.dot(dh, dec2_w_ref[...], preferred_element_type=f32) + bias("dec2")
    mu_x_ref[...] = 0.5 * (jnp.tanh(0.5 * y) + 1.0)

    # single lane-dense slab store: [mu_zw | var_zw | pi | mus | vars | 0-pad]
    tb = slab_ref.shape[0]
    pad = sl["width"] - sl["used"]
    pieces = [mu_zw, var_zw, pi, mus, vars_]
    if pad:
        pieces.append(jnp.zeros((tb, pad), f32))
    slab_ref[...] = jnp.concatenate(pieces, axis=1)


# ---------------------------------------------------------------------------
# Deterministic parameter init (PyTorch-Linear-style uniform), raw layout
# ---------------------------------------------------------------------------
def _init_linear(key, din, dout):
    k_w, k_b = jax.random.split(key)
    bound = 1.0 / jnp.sqrt(jnp.asarray(din, jnp.float32))
    w = jax.random.uniform(k_w, (din, dout), jnp.float32, -bound, bound)
    b = jax.random.uniform(k_b, (1, dout), jnp.float32, -bound, bound)
    return w, b


def init_gmvae_params(key, channels, dim_z, dim_w, K):
    keys = jax.random.split(key, 7 + 2 * K)
    params = {}
    din_img = channels * 784
    params["pre_w"], params["pre_b"] = _init_linear(keys[0], din_img, 400)
    params["ze_w"], params["ze_b"] = _init_linear(keys[1], 400, dim_z * 2)
    params["we_w"], params["we_b"] = _init_linear(keys[2], 400, dim_w * 2)
    params["dec1_w"], params["dec1_b"] = _init_linear(keys[3], dim_z, 400)
    params["dec2_w"], params["dec2_b"] = _init_linear(keys[4], 400, din_img)
    params["d1_w"], params["d1_b"] = _init_linear(keys[5], dim_z + dim_w, 256)
    params["d2_w"], params["d2_b"] = _init_linear(keys[6], 256, K)
    p1_w, p1_b, p2_w, p2_b = [], [], [], []
    for k in range(K):
        w1, b1 = _init_linear(keys[7 + 2 * k], dim_w, 256)
        w2, b2 = _init_linear(keys[8 + 2 * k], 256, dim_z * 2)
        p1_w.append(w1); p1_b.append(b1); p2_w.append(w2); p2_b.append(b2)
    params["p1_w"] = jnp.stack(p1_w)            # [K, dim_w, 256]
    params["p1_b"] = jnp.stack(p1_b)            # [K, 1, 256]
    params["p2_w"] = jnp.stack(p2_w)            # [K, 256, 2*dim_z]
    params["p2_b"] = jnp.stack(p2_b)            # [K, 1, 2*dim_z]
    return params


# ---------------------------------------------------------------------------
# One-time weight packing (runs OUTSIDE the jitted forward)
# ---------------------------------------------------------------------------
def pack_gmvae_params(params, channels, dim_z, dim_w, K):
    d_in = channels * 784
    d_out_pad = _round_up(d_in, 128)
    f32 = jnp.float32

    # fused z/w head, columns ordered [mu_z | mu_w | logvar_z | logvar_w]
    head_w = jnp.concatenate(
        [params["ze_w"][:, :dim_z], params["we_w"][:, :dim_w],
         params["ze_w"][:, dim_z:], params["we_w"][:, dim_w:]], axis=1)
    head_b = jnp.concatenate(
        [params["ze_b"][:, :dim_z], params["we_b"][:, :dim_w],
         params["ze_b"][:, dim_z:], params["we_b"][:, dim_w:]], axis=1)

    # z_prior stage 1 flattened into one [dim_w, K*256] matmul
    p1_w = jnp.transpose(params["p1_w"], (1, 0, 2)).reshape(dim_w, K * 256)
    p1_b = params["p1_b"].reshape(1, K * 256)

    # z_prior stage 2 as a block-diagonal [K*256, 2*K*dim_z], columns [mus | vars]
    p2_w = jnp.zeros((K * 256, 2 * K * dim_z), f32)
    for k in range(K):
        p2_w = p2_w.at[k * 256:(k + 1) * 256,
                       k * dim_z:(k + 1) * dim_z].set(params["p2_w"][k][:, :dim_z])
        p2_w = p2_w.at[k * 256:(k + 1) * 256,
                       K * dim_z + k * dim_z:K * dim_z + (k + 1) * dim_z].set(
                           params["p2_w"][k][:, dim_z:])
    p2_b = jnp.concatenate(
        [params["p2_b"][k][:, :dim_z] for k in range(K)]
        + [params["p2_b"][k][:, dim_z:] for k in range(K)], axis=1)

    # decoder output layer padded to a lane-dense width (zeros -> sliced off)
    dec2_w = jnp.pad(params["dec2_w"], ((0, 0), (0, d_out_pad - d_in)))
    dec2_b = jnp.pad(params["dec2_b"], ((0, 0), (0, d_out_pad - d_in)))

    # single 128-aligned bias slab
    bl, total = _bias_layout(d_in, dim_z, dim_w, K)
    bias = jnp.zeros((1, total), f32)
    for name, arr in [("pre", params["pre_b"]), ("head", head_b),
                      ("d1", params["d1_b"]), ("d2", params["d2_b"]),
                      ("p1", p1_b), ("p2", p2_b),
                      ("dec1", params["dec1_b"]), ("dec2", dec2_b)]:
        o, w = bl[name]
        bias = bias.at[:, o:o + w].set(arr)

    packed = {
        "pre_w": params["pre_w"], "head_w": head_w,
        "d1_w": params["d1_w"], "d2_w": params["d2_w"],
        "p1_w": p1_w, "p2_w": p2_w,
        "dec1_w": params["dec1_w"], "dec2_w": dec2_w,
        "bias": bias,
    }
    return jax.tree_util.tree_map(jnp.asarray, packed)


# ---------------------------------------------------------------------------
# GMVAE forward (mirrors GMVAE.forward for arch='k_vae'), one fused pallas_call
# ---------------------------------------------------------------------------
def gmvae_forward(packed, x, noise_key, dim_z, dim_w, K):
    B, C, H, W = x.shape
    d_in = C * H * W                                    # 784 * C
    d_out_pad = _round_up(d_in, 128)
    dzw = dim_z + dim_w
    sl = _slab_layout(dim_z, dim_w, K)

    # batch tiling: TB rows per grid step; weights stay VMEM-resident
    TB = 128 if B >= 128 else max(8, _round_up(B, 8))
    B_pad = _round_up(max(B, TB), TB)
    n_tiles = B_pad // TB

    x_flat = x.reshape(B, d_in)
    x_pad = jnp.pad(x_flat, ((0, B_pad - B), (0, 0)))
    eps = jax.random.normal(noise_key, (B_pad, dzw), jnp.float32)   # [eps_z | eps_w]

    weights = [packed["pre_w"], packed["head_w"], packed["d1_w"], packed["d2_w"],
               packed["p1_w"], packed["p2_w"], packed["dec1_w"], packed["dec2_w"],
               packed["bias"]]

    in_specs = (
        [pl.BlockSpec((TB, d_in), lambda i: (i, 0)),
         pl.BlockSpec((TB, dzw), lambda i: (i, 0))]
        + [pl.BlockSpec(a.shape, lambda i: (0, 0)) for a in weights]  # resident
    )
    out_specs = (pl.BlockSpec((TB, d_out_pad), lambda i: (i, 0)),
                 pl.BlockSpec((TB, sl["width"]), lambda i: (i, 0)))
    out_shape = (jax.ShapeDtypeStruct((B_pad, d_out_pad), jnp.float32),
                 jax.ShapeDtypeStruct((B_pad, sl["width"]), jnp.float32))

    mu_x_pad, slab = pl.pallas_call(
        functools.partial(_gmvae_fused_kernel, dim_z, dim_w, K, d_in),
        grid=(n_tiles,),
        in_specs=in_specs,
        out_specs=out_specs,
        out_shape=out_shape,
        compiler_params=pltpu.CompilerParams(dimension_semantics=("parallel",)),
    )(x_pad, eps, *weights)

    # --- unpack lane-dense slabs back into the PyTorch-shaped outputs --------
    mu_x = mu_x_pad[:B, :d_in].reshape(B, C, H, W)
    mu_z = slab[:B, 0:dim_z]
    mu_w = slab[:B, dim_z:dzw]
    var_z = slab[:B, dzw:dzw + dim_z]
    var_w = slab[:B, dzw + dim_z:2 * dzw]
    pi = slab[:B, sl["pi"]:sl["pi"] + K]
    mus_z = slab[:B, sl["mus"]:sl["mus"] + K * dim_z] \
        .reshape(B, K, dim_z).transpose(1, 0, 2)
    vars_z = slab[:B, sl["vars"]:sl["vars"] + K * dim_z] \
        .reshape(B, K, dim_z).transpose(1, 0, 2)

    return mu_x, mu_z, var_z, mu_w, var_w, pi, mus_z, vars_z


if __name__ == "__main__":
    channels, dim_z, dim_w, K = 1, 8, 4, 3
    batch = 2

    root = jax.random.PRNGKey(0)
    k_params, k_x, k_noise = jax.random.split(root, 3)

    raw_params = init_gmvae_params(k_params, channels, dim_z, dim_w, K)
    packed = pack_gmvae_params(raw_params, channels, dim_z, dim_w, K)   # one-time
    x = jax.random.uniform(k_x, (batch, channels, 28, 28), jnp.float32)  # NCHW

    fwd = jax.jit(gmvae_forward, static_argnames=("dim_z", "dim_w", "K"))
    outs = fwd(packed, x, k_noise, dim_z, dim_w, K)
    outs = jax.block_until_ready(outs)

    mu_x, mu_z, var_z, mu_w, var_w, pi, mus_z, vars_z = outs
    assert mu_x.shape == (batch, channels, 28, 28)
    assert mu_z.shape == (batch, dim_z) and var_z.shape == (batch, dim_z)
    assert mu_w.shape == (batch, dim_w) and var_w.shape == (batch, dim_w)
    assert pi.shape == (batch, K)
    assert mus_z.shape == (K, batch, dim_z) and vars_z.shape == (K, batch, dim_z)
    assert bool(jnp.all(jnp.isfinite(mu_x)))
    assert bool(jnp.all(var_z > 0)) and bool(jnp.all(var_w > 0))
    assert bool(jnp.all(jnp.abs(jnp.sum(pi, axis=-1) - 1.0) < 1e-4))

    print("KERNEL_OK")
</pallas_src>

<mosaic_0001>
module attributes {stable_mosaic.version = 11 : i64} {
  func.func @_gmvae_fused_kernel(%arg0: i32, %arg1: memref<8x784xf32, #tpu.memory_space<vmem>>, %arg2: memref<8x12xf32, #tpu.memory_space<vmem>>, %arg3: memref<784x400xf32, #tpu.memory_space<vmem>>, %arg4: memref<400x24xf32, #tpu.memory_space<vmem>>, %arg5: memref<12x256xf32, #tpu.memory_space<vmem>>, %arg6: memref<256x3xf32, #tpu.memory_space<vmem>>, %arg7: memref<4x768xf32, #tpu.memory_space<vmem>>, %arg8: memref<768x48xf32, #tpu.memory_space<vmem>>, %arg9: memref<8x400xf32, #tpu.memory_space<vmem>>, %arg10: memref<400x896xf32, #tpu.memory_space<vmem>>, %arg11: memref<1x3328xf32, #tpu.memory_space<vmem>>, %arg12: memref<8x896xf32, #tpu.memory_space<vmem>>, %arg13: memref<8x128xf32, #tpu.memory_space<vmem>>) attributes {dimension_semantics = [#tpu.dimension_semantics<parallel>], iteration_bounds = array<i64: 1>, scalar_prefetch = 0 : i64, scratch_operands = 0 : i64, tpu.core_type = #tpu.core_type<tc>, window_params = [{transform_indices = @transform_0, window_bounds = array<i64: 8, 784>}, {transform_indices = @transform_1, window_bounds = array<i64: 8, 12>}, {pipeline_mode = #tpu.pipeline_mode<synchronous>, transform_indices = @transform_2, window_bounds = array<i64: 784, 400>}, {pipeline_mode = #tpu.pipeline_mode<synchronous>, transform_indices = @transform_3, window_bounds = array<i64: 400, 24>}, {pipeline_mode = #tpu.pipeline_mode<synchronous>, transform_indices = @transform_4, window_bounds = array<i64: 12, 256>}, {pipeline_mode = #tpu.pipeline_mode<synchronous>, transform_indices = @transform_5, window_bounds = array<i64: 256, 3>}, {pipeline_mode = #tpu.pipeline_mode<synchronous>, transform_indices = @transform_6, window_bounds = array<i64: 4, 768>}, {pipeline_mode = #tpu.pipeline_mode<synchronous>, transform_indices = @transform_7, window_bounds = array<i64: 768, 48>}, {pipeline_mode = #tpu.pipeline_mode<synchronous>, transform_indices = @transform_8, window_bounds = array<i64: 8, 400>}, {pipeline_mode = #tpu.pipeline_mode<synchronous>, transform_indices = @transform_9, window_bounds = array<i64: 400, 896>}, {pipeline_mode = #tpu.pipeline_mode<synchronous>, transform_indices = @transform_10, window_bounds = array<i64: 1, 3328>}, {transform_indices = @transform_11, window_bounds = array<i64: 8, 896>}, {transform_indices = @transform_12, window_bounds = array<i64: 8, 128>}]} {
    %c0 = arith.constant 0 : index
    %c0_0 = arith.constant 0 : index
    %0 = vector.load %arg1[%c0, %c0_0] : memref<8x784xf32, #tpu.memory_space<vmem>>, vector<8x784xf32>
    %c0_1 = arith.constant 0 : index
    %c0_2 = arith.constant 0 : index
    %1 = vector.load %arg3[%c0_1, %c0_2] : memref<784x400xf32, #tpu.memory_space<vmem>>, vector<784x400xf32>
    %cst = arith.constant dense<0.000000e+00> : vector<8x400xf32>
    %2 = tpu.matmul %0, %1, %cst {dimension_numbers = #tpu.dot_dimension_numbers<[1], [0], [0], [1], [0, 0, 1, 1], [], []>} : vector<8x784xf32>, vector<784x400xf32>, vector<8x400xf32> -> vector<8x400xf32>
    %c0_3 = arith.constant 0 : index
    %c0_4 = arith.constant 0 : index
    %3 = vector.load %arg11[%c0_3, %c0_4] : memref<1x3328xf32, #tpu.memory_space<vmem>>, vector<1x400xf32>
    %4 = vector.broadcast %3 : vector<1x400xf32> to vector<8x400xf32>
    %5 = arith.addf %2, %4 : vector<8x400xf32>
    %cst_5 = arith.constant 0.000000e+00 : f32
    %6 = vector.broadcast %cst_5 : f32 to vector<8x400xf32>
    %7 = arith.maximumf %5, %6 : vector<8x400xf32>
    %c0_6 = arith.constant 0 : index
    %c0_7 = arith.constant 0 : index
    %8 = vector.load %arg4[%c0_6, %c0_7] : memref<400x24xf32, #tpu.memory_space<vmem>>, vector<400x24xf32>
    %cst_8 = arith.constant dense<0.000000e+00> : vector<8x24xf32>
    %9 = tpu.matmul %7, %8, %cst_8 {dimension_numbers = #tpu.dot_dimension_numbers<[1], [0], [0], [1], [0, 0, 1, 1], [], []>} : vector<8x400xf32>, vector<400x24xf32>, vector<8x24xf32> -> vector<8x24xf32>
    %c0_9 = arith.constant 0 : index
    %c512 = arith.constant 512 : index
    %10 = vector.load %arg11[%c0_9, %c512] : memref<1x3328xf32, #tpu.memory_space<vmem>>, vector<1x24xf32>
    %11 = vector.broadcast %10 : vector<1x24xf32> to vector<8x24xf32>
    %12 = arith.addf %9, %11 : vector<8x24xf32>
    %13 = vector.extract_strided_slice %12 {offsets = [0, 0], sizes = [8, 12], strides = [1, 1]} : vector<8x24xf32> to vector<8x12xf32>
    %14 = vector.extract_strided_slice %12 {offsets = [0, 12], sizes = [8, 12], strides = [1, 1]} : vector<8x24xf32> to vector<8x12xf32>
    %15 = math.tanh %14 : vector<8x12xf32>
    %cst_10 = arith.constant 5.000000e-01 : f32
    %16 = vector.broadcast %cst_10 : f32 to vector<8x12xf32>
    %17 = arith.mulf %16, %15 : vector<8x12xf32>
    %18 = math.exp %17 : vector<8x12xf32>
    %19 = arith.mulf %18, %18 : vector<8x12xf32>
    %c0_11 = arith.constant 0 : index
    %c0_12 = arith.constant 0 : index
    %20 = vector.load %arg2[%c0_11, %c0_12] : memref<8x12xf32, #tpu.memory_space<vmem>>, vector<8x12xf32>
    %21 = arith.mulf %20, %18 : vector<8x12xf32>
    %22 = arith.addf %13, %21 : vector<8x12xf32>
    %23 = vector.extract_strided_slice %22 {offsets = [0, 0], sizes = [8, 8], strides = [1, 1]} : vector<8x12xf32> to vector<8x8xf32>
    %24 = vector.extract_strided_slice %22 {offsets = [0, 8], sizes = [8, 4], strides = [1, 1]} : vector<8x12xf32> to vector<8x4xf32>
    %c0_13 = arith.constant 0 : index
    %c0_14 = arith.constant 0 : index
    %25 = vector.load %arg5[%c0_13, %c0_14] : memref<12x256xf32, #tpu.memory_space<vmem>>, vector<12x256xf32>
    %cst_15 = arith.constant dense<0.000000e+00> : vector<8x256xf32>
    %26 = tpu.matmul %22, %25, %cst_15 {dimension_numbers = #tpu.dot_dimension_numbers<[1], [0], [0], [1], [0, 0, 1, 1], [], []>} : vector<8x12xf32>, vector<12x256xf32>, vector<8x256xf32> -> vector<8x256xf32>
    %c0_16 = arith.constant 0 : index
    %c640 = arith.constant 640 : index
    %27 = vector.load %arg11[%c0_16, %c640] : memref<1x3328xf32, #tpu.memory_space<vmem>>, vector<1x256xf32>
    %28 = vector.broadcast %27 : vector<1x256xf32> to vector<8x256xf32>
    %29 = arith.addf %26, %28 : vector<8x256xf32>
    %30 = math.tanh %29 : vector<8x256xf32>
    %c0_17 = arith.constant 0 : index
    %c0_18 = arith.constant 0 : index
    %31 = vector.load %arg6[%c0_17, %c0_18] : memref<256x3xf32, #tpu.memory_space<vmem>>, vector<256x3xf32>
    %cst_19 = arith.constant dense<0.000000e+00> : vector<8x3xf32>
    %32 = tpu.matmul %30, %31, %cst_19 {dimension_numbers = #tpu.dot_dimension_numbers<[1], [0], [0], [1], [0, 0, 1, 1], [], []>} : vector<8x256xf32>, vector<256x3xf32>, vector<8x3xf32> -> vector<8x3xf32>
    %c0_20 = arith.constant 0 : index
    %c896 = arith.constant 896 : index
    %33 = vector.load %arg11[%c0_20, %c896] : memref<1x3328xf32, #tpu.memory_space<vmem>>, vector<1x3xf32>
    %34 = vector.broadcast %33 : vector<1x3xf32> to vector<8x3xf32>
    %35 = arith.addf %32, %34 : vector<8x3xf32>
    %cst_21 = arith.constant dense<0xFF800000> : vector<8xf32>
    %36 = vector.multi_reduction <maximumf>, %35, %cst_21 [1] : vector<8x3xf32> to vector<8xf32>
    %37 = vector.shape_cast %36 : vector<8xf32> to vector<8x1xf32>
    %38 = vector.broadcast %37 : vector<8x1xf32> to vector<8x3xf32>
    %39 = arith.subf %35, %38 : vector<8x3xf32>
    %40 = math.exp %39 : vector<8x3xf32>
    %cst_22 = arith.constant dense<0.000000e+00> : vector<8xf32>
    %41 = vector.multi_reduction <add>, %40, %cst_22 [1] : vector<8x3xf32> to vector<8xf32>
    %42 = vector.shape_cast %41 : vector<8xf32> to vector<8x1xf32>
    %43 = vector.broadcast %42 : vector<8x1xf32> to vector<8x3xf32>
    %44 = arith.divf %40, %43 : vector<8x3xf32>
    %cst_23 = arith.constant 9.99999968E-21 : f32
    %45 = vector.broadcast %cst_23 : f32 to vector<8x3xf32>
    %46 = arith.addf %44, %45 : vector<8x3xf32>
    %c0_24 = arith.constant 0 : index
    %c0_25 = arith.constant 0 : index
    %47 = vector.load %arg7[%c0_24, %c0_25] : memref<4x768xf32, #tpu.memory_space<vmem>>, vector<4x768xf32>
    %cst_26 = arith.constant dense<0.000000e+00> : vector<8x768xf32>
    %48 = tpu.matmul %24, %47, %cst_26 {dimension_numbers = #tpu.dot_dimension_numbers<[1], [0], [0], [1], [0, 0, 1, 1], [], []>} : vector<8x4xf32>, vector<4x768xf32>, vector<8x768xf32> -> vector<8x768xf32>
    %c0_27 = arith.constant 0 : index
    %c1024 = arith.constant 1024 : index
    %49 = vector.load %arg11[%c0_27, %c1024] : memref<1x3328xf32, #tpu.memory_space<vmem>>, vector<1x768xf32>
    %50 = vector.broadcast %49 : vector<1x768xf32> to vector<8x768xf32>
    %51 = arith.addf %48, %50 : vector<8x768xf32>
    %cst_28 = arith.constant 0.000000e+00 : f32
    %52 = vector.broadcast %cst_28 : f32 to vector<8x768xf32>
    %53 = arith.maximumf %51, %52 : vector<8x768xf32>
    %c0_29 = arith.constant 0 : index
    %c0_30 = arith.constant 0 : index
    %54 = vector.load %arg8[%c0_29, %c0_30] : memref<768x48xf32, #tpu.memory_space<vmem>>, vector<768x48xf32>
    %cst_31 = arith.constant dense<0.000000e+00> : vector<8x48xf32>
    %55 = tpu.matmul %53, %54, %cst_31 {dimension_numbers = #tpu.dot_dimension_numbers<[1], [0], [0], [1], [0, 0, 1, 1], [], []>} : vector<8x768xf32>, vector<768x48xf32>, vector<8x48xf32> -> vector<8x48xf32>
    %c0_32 = arith.constant 0 : index
    %c1792 = arith.constant 1792 : index
    %56 = vector.load %arg11[%c0_32, %c1792] : memref<1x3328xf32, #tpu.memory_space<vmem>>, vector<1x48xf32>
    %57 = vector.broadcast %56 : vector<1x48xf32> to vector<8x48xf32>
    %58 = arith.addf %55, %57 : vector<8x48xf32>
    %59 = vector.extract_strided_slice %58 {offsets = [0, 0], sizes = [8, 24], strides = [1, 1]} : vector<8x48xf32> to vector<8x24xf32>
    %60 = vector.extract_strided_slice %58 {offsets = [0, 24], sizes = [8, 24], strides = [1, 1]} : vector<8x48xf32> to vector<8x24xf32>
    %61 = math.tanh %60 : vector<8x24xf32>
    %62 = math.exp %61 : vector<8x24xf32>
    %c0_33 = arith.constant 0 : index
    %c0_34 = arith.constant 0 : index
    %63 = vector.load %arg9[%c0_33, %c0_34] : memref<8x400xf32, #tpu.memory_space<vmem>>, vector<8x400xf32>
    %cst_35 = arith.constant dense<0.000000e+00> : vector<8x400xf32>
    %64 = tpu.matmul %23, %63, %cst_35 {dimension_numbers = #tpu.dot_dimension_numbers<[1], [0], [0], [1], [0, 0, 1, 1], [], []>} : vector<8x8xf32>, vector<8x400xf32>, vector<8x400xf32> -> vector<8x400xf32>
    %c0_36 = arith.constant 0 : index
    %c1920 = arith.constant 1920 : index
    %65 = vector.load %arg11[%c0_36, %c1920] : memref<1x3328xf32, #tpu.memory_space<vmem>>, vector<1x400xf32>
    %66 = vector.broadcast %65 : vector<1x400xf32> to vector<8x400xf32>
    %67 = arith.addf %64, %66 : vector<8x400xf32>
    %cst_37 = arith.constant 0.000000e+00 : f32
    %68 = vector.broadcast %cst_37 : f32 to vector<8x400xf32>
    %69 = arith.maximumf %67, %68 : vector<8x400xf32>
    %c0_38 = arith.constant 0 : index
    %c0_39 = arith.constant 0 : index
    %70 = vector.load %arg10[%c0_38, %c0_39] : memref<400x896xf32, #tpu.memory_space<vmem>>, vector<400x896xf32>
    %cst_40 = arith.constant dense<0.000000e+00> : vector<8x896xf32>
    %71 = tpu.matmul %69, %70, %cst_40 {dimension_numbers = #tpu.dot_dimension_numbers<[1], [0], [0], [1], [0, 0, 1, 1], [], []>} : vector<8x400xf32>, vector<400x896xf32>, vector<8x896xf32> -> vector<8x896xf32>
    %c0_41 = arith.constant 0 : index
    %c2432 = arith.constant 2432 : index
    %72 = vector.load %arg11[%c0_41, %c2432] : memref<1x3328xf32, #tpu.memory_space<vmem>>, vector<1x896xf32>
    %73 = vector.broadcast %72 : vector<1x896xf32> to vector<8x896xf32>
    %74 = arith.addf %71, %73 : vector<8x896xf32>
    %cst_42 = arith.constant 5.000000e-01 : f32
    %75 = vector.broadcast %cst_42 : f32 to vector<8x896xf32>
    %76 = arith.mulf %75, %74 : vector<8x896xf32>
    %77 = math.tanh %76 : vector<8x896xf32>
    %cst_43 = arith.constant 1.000000e+00 : f32
    %78 = vector.broadcast %cst_43 : f32 to vector<8x896xf32>
    %79 = arith.addf %77, %78 : vector<8x896xf32>
    %cst_44 = arith.constant 5.000000e-01 : f32
    %80 = vector.broadcast %cst_44 : f32 to vector<8x896xf32>
    %81 = arith.mulf %80, %79 : vector<8x896xf32>
    %c0_45 = arith.constant 0 : index
    %c0_46 = arith.constant 0 : index
    %82 = vector.load %arg12[%c0_45, %c0_46] : memref<8x896xf32, #tpu.memory_space<vmem>>, vector<8x896xf32>
    tpu.vector_store %arg12[%c0_45, %c0_46], %81 {strides = array<i32>} : memref<8x896xf32, #tpu.memory_space<vmem>>, vector<8x896xf32>,
    %cst_47 = arith.constant 0.000000e+00 : f32
    %83 = vector.broadcast %cst_47 : f32 to vector<8x53xf32>
    %84 = tpu.concatenate %13, %19, %46, %59, %62, %83 in 1 : vector<8x12xf32>, vector<8x12xf32>, vector<8x3xf32>, vector<8x24xf32>, vector<8x24xf32>, vector<8x53xf32> -> vector<8x128xf32>
    %c0_48 = arith.constant 0 : index
    %c0_49 = arith.constant 0 : index
    %85 = vector.load %arg13[%c0_48, %c0_49] : memref<8x128xf32, #tpu.memory_space<vmem>>, vector<8x128xf32>
    tpu.vector_store %arg13[%c0_48, %c0_49], %84 {strides = array<i32>} : memref<8x128xf32, #tpu.memory_space<vmem>>, vector<8x128xf32>,
    return
  }
  func.func @transform_0(%arg0: i32) -> (i32, i32) {
    %c0_i32 = arith.constant 0 : i32
    %c0_i32_0 = arith.constant 0 : i32
    return %arg0, %c0_i32 : i32, i32
  }
  func.func @transform_1(%arg0: i32) -> (i32, i32) {
    %c0_i32 = arith.constant 0 : i32
    %c0_i32_0 = arith.constant 0 : i32
    return %arg0, %c0_i32 : i32, i32
  }
  func.func @transform_2(%arg0: i32) -> (i32, i32) {
    %c0_i32 = arith.constant 0 : i32
    %c0_i32_0 = arith.constant 0 : i32
    %c0_i32_1 = arith.constant 0 : i32
    return %c0_i32, %c0_i32_0 : i32, i32
  }
  func.func @transform_3(%arg0: i32) -> (i32, i32) {
    %c0_i32 = arith.constant 0 : i32
    %c0_i32_0 = arith.constant 0 : i32
    %c0_i32_1 = arith.constant 0 : i32
    return %c0_i32, %c0_i32_0 : i32, i32
  }
  func.func @transform_4(%arg0: i32) -> (i32, i32) {
    %c0_i32 = arith.constant 0 : i32
    %c0_i32_0 = arith.constant 0 : i32
    %c0_i32_1 = arith.constant 0 : i32
    return %c0_i32, %c0_i32_0 : i32, i32
  }
  func.func @transform_5(%arg0: i32) -> (i32, i32) {
    %c0_i32 = arith.constant 0 : i32
    %c0_i32_0 = arith.constant 0 : i32
    %c0_i32_1 = arith.constant 0 : i32
    return %c0_i32, %c0_i32_0 : i32, i32
  }
  func.func @transform_6(%arg0: i32) -> (i32, i32) {
    %c0_i32 = arith.constant 0 : i32
    %c0_i32_0 = arith.constant 0 : i32
    %c0_i32_1 = arith.constant 0 : i32
    return %c0_i32, %c0_i32_0 : i32, i32
  }
  func.func @transform_7(%arg0: i32) -> (i32, i32) {
    %c0_i32 = arith.constant 0 : i32
    %c0_i32_0 = arith.constant 0 : i32
    %c0_i32_1 = arith.constant 0 : i32
    return %c0_i32, %c0_i32_0 : i32, i32
  }
  func.func @transform_8(%arg0: i32) -> (i32, i32) {
    %c0_i32 = arith.constant 0 : i32
    %c0_i32_0 = arith.constant 0 : i32
    %c0_i32_1 = arith.constant 0 : i32
    return %c0_i32, %c0_i32_0 : i32, i32
  }
  func.func @transform_9(%arg0: i32) -> (i32, i32) {
    %c0_i32 = arith.constant 0 : i32
    %c0_i32_0 = arith.constant 0 : i32
    %c0_i32_1 = arith.constant 0 : i32
    return %c0_i32, %c0_i32_0 : i32, i32
  }
  func.func @transform_10(%arg0: i32) -> (i32, i32) {
    %c0_i32 = arith.constant 0 : i32
    %c0_i32_0 = arith.constant 0 : i32
    %c0_i32_1 = arith.constant 0 : i32
    return %c0_i32, %c0_i32_0 : i32, i32
  }
  func.func @transform_11(%arg0: i32) -> (i32, i32) {
    %c0_i32 = arith.constant 0 : i32
    %c0_i32_0 = arith.constant 0 : i32
    return %arg0, %c0_i32 : i32, i32
  }
  func.func @transform_12(%arg0: i32) -> (i32, i32) {
    %c0_i32 = arith.constant 0 : i32
    %c0_i32_0 = arith.constant 0 : i32
    return %arg0, %c0_i32 : i32, i32
  }
}

</mosaic_0001>

<llo_original>
// kernel: gmvae_forward.1
$region0: #{gmvae_forward.1}
  #allocation0 [shape = 'u32[]', space=smem, size = 0x4, offset = 0x4, fixed_abs, tag = 'smem constant byte address 0x4 - core index']
  #allocation1 [shape = 'u32[144,128]{1,0:T(1,128)}', space=vmem, size = 0x12000, scoped, tag = 'internal scratch']
  %s0 = inlined_call_operand.vmem [shape: f32[8,784], index: 0, kind: input, shape index: {}]
  %s1 = inlined_call_operand.vmem [shape: f32[8,12], index: 1, kind: input, shape index: {}]
  %s2 = inlined_call_operand.vmem [shape: f32[784,400], index: 2, kind: input, shape index: {}]
  %s3 = inlined_call_operand.vmem [shape: f32[400,24], index: 3, kind: input, shape index: {}]
  %s4 = inlined_call_operand.vmem [shape: f32[12,256], index: 4, kind: input, shape index: {}]
  %s5 = inlined_call_operand.vmem [shape: f32[256,3], index: 5, kind: input, shape index: {}]
  %s6 = inlined_call_operand.vmem [shape: f32[4,768], index: 6, kind: input, shape index: {}]
  %s7 = inlined_call_operand.vmem [shape: f32[768,48], index: 7, kind: input, shape index: {}]
  %s8 = inlined_call_operand.vmem [shape: f32[8,400], index: 8, kind: input, shape index: {}]
  %s9 = inlined_call_operand.vmem [shape: f32[400,896], index: 9, kind: input, shape index: {}]
  %s10 = inlined_call_operand.vmem [shape: f32[1,3328], index: 10, kind: input, shape index: {}]
  %s11 = inlined_call_operand.vmem [shape: f32[8,896], index: 11, kind: output, shape index: {0}]
  %s12 = inlined_call_operand.vmem [shape: f32[8,128], index: 12, kind: output, shape index: {1}]
  %13 = xla_tuple %s11, %s12
  %s14 = sld [smem:[#allocation0]]
  $region62: #{gmvae_forward.1} parent=0
    _
  %s16 = ssub.s32 1, %s14
  %s17 = scalar_select 0, %s16, %s14
  // Predicated region
  $region2: #{gmvae_forward.1} parent=0 // pred_check
    _
  $region3: #{gmvae_forward.1} parent=0 // pred_check_branch
    %19 = sbr.rel (0) target = $region5
  $region4: #{gmvae_forward.1} parent=0 // pred_region
    _
  $region5: #{gmvae_forward.1} parent=0 // pred_fallthru
    _
  // Predicated region
  $region6: #{gmvae_forward.1} parent=0 // pred_check
    _
  $region7: #{gmvae_forward.1} parent=0 // pred_check_branch
    %21 = sbr.rel (0) target = $region9
  $region8: #{gmvae_forward.1} parent=0 // pred_region
    _
  $region9: #{gmvae_forward.1} parent=0 // pred_fallthru
    _
  // Predicated region
  $region10: #{gmvae_forward.1} parent=0 // pred_check
    _
  $region11: #{gmvae_forward.1} parent=0 // pred_check_branch
    %23 = sbr.rel (0) target = $region13
  $region12: #{gmvae_forward.1} parent=0 // pred_region
    _
  $region13: #{gmvae_forward.1} parent=0 // pred_fallthru
    _
  // Predicated region
  $region14: #{gmvae_forward.1} parent=0 // pred_check
    _
  $region15: #{gmvae_forward.1} parent=0 // pred_check_branch
    %25 = sbr.rel (0) target = $region17
  $region16: #{gmvae_forward.1} parent=0 // pred_region
    _
  $region17: #{gmvae_forward.1} parent=0 // pred_fallthru
    _
  // Predicated region
  $region18: #{gmvae_forward.1} parent=0 // pred_check
    _
  $region19: #{gmvae_forward.1} parent=0 // pred_check_branch
    %27 = sbr.rel (0) target = $region21
  $region20: #{gmvae_forward.1} parent=0 // pred_region
    _
  $region21: #{gmvae_forward.1} parent=0 // pred_fallthru
    _
  // Predicated region
  $region22: #{gmvae_forward.1} parent=0 // pred_check
    _
  $region23: #{gmvae_forward.1} parent=0 // pred_check_branch
    %29 = sbr.rel (0) target = $region25
  $region24: #{gmvae_forward.1} parent=0 // pred_region
    _
  $region25: #{gmvae_forward.1} parent=0 // pred_fallthru
    _
  // Predicated region
  $region26: #{gmvae_forward.1} parent=0 // pred_check
    _
  $region27: #{gmvae_forward.1} parent=0 // pred_check_branch
    %31 = sbr.rel (0) target = $region29
  $region28: #{gmvae_forward.1} parent=0 // pred_region
    _
  $region29: #{gmvae_forward.1} parent=0 // pred_fallthru
    _
  // Predicated region
  $region30: #{gmvae_forward.1} parent=0 // pred_check
    _
  $region31: #{gmvae_forward.1} parent=0 // pred_check_branch
    %33 = sbr.rel (0) target = $region33
  $region32: #{gmvae_forward.1} parent=0 // pred_region
    _
  $region33: #{gmvae_forward.1} parent=0 // pred_fallthru
    _
  // Predicated region
  $region34: #{gmvae_forward.1} parent=0 // pred_check
    _
  $region35: #{gmvae_forward.1} parent=0 // pred_check_branch
    %35 = sbr.rel (0) target = $region37
  $region36: #{gmvae_forward.1} parent=0 // pred_region
    _
  $region37: #{gmvae_forward.1} parent=0 // pred_fallthru
    _
  // Predicated region
  $region38: #{gmvae_forward.1} parent=0 // pred_check
    _
  $region39: #{gmvae_forward.1} parent=0 // pred_check_branch
    %37 = sbr.rel (0) target = $region41
  $region40: #{gmvae_forward.1} parent=0 // pred_region
    _
  $region41: #{gmvae_forward.1} parent=0 // pred_fallthru
    _
  // Predicated region
  $region42: #{gmvae_forward.1} parent=0 // pred_check
    _
  $region43: #{gmvae_forward.1} parent=0 // pred_check_branch
    %39 = sbr.rel (0) target = $region45
  $region44: #{gmvae_forward.1} parent=0 // pred_region
    _
  $region45: #{gmvae_forward.1} parent=0 // pred_fallthru
    _
  %v40 = vld [vmem:[%s0] sm:$0xff]
  %v41 = vld [vmem:[%s0 + $0x8] sm:$0xff]
  %v42 = vld [vmem:[%s0 + $0x10] sm:$0xff]
  %v43 = vld [vmem:[%s0 + $0x18] sm:$0xff]
  %v44 = vld [vmem:[%s0 + $0x20] sm:$0xff]
  %v45 = vld [vmem:[%s0 + $0x28] sm:$0xff]
  %v46 = vld [vmem:[%s0 + $0x30] sm:$0xff]
  %v47 = vld [vmem:[%s2] sm:$0xff]
  %v48 = vld [vmem:[%s2 + $0x8] sm:$0xff]
  %v49 = vld [vmem:[%s2 + $0x10] sm:$0xff]
  %v50 = vld [vmem:[%s2 + $0x18] sm:$0xff]
  %v51 = vld [vmem:[%s2 + $0x20] sm:$0xff]
  %v52 = vld [vmem:[%s2 + $0x28] sm:$0xff]
  %v53 = vld [vmem:[%s2 + $0x30] sm:$0xff]
  %v54 = vld [vmem:[%s2 + $0x38] sm:$0xff]
  %v55 = vld [vmem:[%s2 + $0x40] sm:$0xff]
  %v56 = vld [vmem:[%s2 + $0x48] sm:$0xff]
  %v57 = vld [vmem:[%s2 + $0x50] sm:$0xff]
  %v58 = vld [vmem:[%s2 + $0x58] sm:$0xff]
  %v59 = vld [vmem:[%s2 + $0x60] sm:$0xff]
  %v60 = vld [vmem:[%s2 + $0x68] sm:$0xff]
  %v61 = vld [vmem:[%s2 + $0x70] sm:$0xff]
  %v62 = vld [vmem:[%s2 + $0x78] sm:$0xff]
  %v63 = vld [vmem:[%s2 + $0x80] sm:$0xff]
  %v64 = vld [vmem:[%s2 + $0x88] sm:$0xff]
  %v65 = vld [vmem:[%s2 + $0x90] sm:$0xff]
  %v66 = vld [vmem:[%s2 + $0x98] sm:$0xff]
  %v67 = vld [vmem:[%s2 + $0xa0] sm:$0xff]
  %v68 = vld [vmem:[%s2 + $0xa8] sm:$0xff]
  %v69 = vld [vmem:[%s2 + $0xb0] sm:$0xff]
  %v70 = vld [vmem:[%s2 + $0xb8] sm:$0xff]
  %v71 = vld [vmem:[%s2 + $0xc0] sm:$0xff]
  %v72 = vld [vmem:[%s2 + $0xc8] sm:$0xff]
  %v73 = vld [vmem:[%s2 + $0xd0] sm:$0xff]
  %v74 = vld [vmem:[%s2 + $0xd8] sm:$0xff]
  %v75 = vld [vmem:[%s2 + $0xe0] sm:$0xff]
  %v76 = vld [vmem:[%s2 + $0xe8] sm:$0xff]
  %v77 = vld [vmem:[%s2 + $0xf0] sm:$0xff]
  %v78 = vld [vmem:[%s2 + $0xf8] sm:$0xff]
  %v79 = vld [vmem:[%s2 + $0x100] sm:$0xff]
  %v80 = vld [vmem:[%s2 + $0x108] sm:$0xff]
  %v81 = vld [vmem:[%s2 + $0x110] sm:$0xff]
  %v82 = vld [vmem:[%s2 + $0x118] sm:$0xff]
  %v83 = vld [vmem:[%s2 + $0x120] sm:$0xff]
  %v84 = vld [vmem:[%s2 + $0x128] sm:$0xff]
  %v85 = vld [vmem:[%s2 + $0x130] sm:$0xff]
  %v86 = vld [vmem:[%s2 + $0x138] sm:$0xff]
  %v87 = vld [vmem:[%s2 + $0x140] sm:$0xff]
  %v88 = vld [vmem:[%s2 + $0x148] sm:$0xff]
  %v89 = vld [vmem:[%s2 + $0x150] sm:$0xff]
  %v90 = vld [vmem:[%s2 + $0x158] sm:$0xff]
  %v91 = vld [vmem:[%s2 + $0x160] sm:$0xff]
  %v92 = vld [vmem:[%s2 + $0x168] sm:$0xff]
  %v93 = vld [vmem:[%s2 + $0x170] sm:$0xff]
  %v94 = vld [vmem:[%s2 + $0x178] sm:$0xff]
  %v95 = vld [vmem:[%s2 + $0x180] sm:$0xff]
  %v96 = vld [vmem:[%s2 + $0x188] sm:$0xff]
  %v97 = vld [vmem:[%s2 + $0x190] sm:$0xff]
  %v98 = vld [vmem:[%s2 + $0x198] sm:$0xff]
  %v99 = vld [vmem:[%s2 + $0x1a0] sm:$0xff]
  %v100 = vld [vmem:[%s2 + $0x1a8] sm:$0xff]
  %v101 = vld [vmem:[%s2 + $0x1b0] sm:$0xff]
  %v102 = vld [vmem:[%s2 + $0x1b8] sm:$0xff]
  %v103 = vld [vmem:[%s2 + $0x1c0] sm:$0xff]
  %v104 = vld [vmem:[%s2 + $0x1c8] sm:$0xff]
  %v105 = vld [vmem:[%s2 + $0x1d0] sm:$0xff]
  %v106 = vld [vmem:[%s2 + $0x1d8] sm:$0xff]
  %v107 = vld [vmem:[%s2 + $0x1e0] sm:$0xff]
  %v108 = vld [vmem:[%s2 + $0x1e8] sm:$0xff]
  %v109 = vld [vmem:[%s2 + $0x1f0] sm:$0xff]
  %v110 = vld [vmem:[%s2 + $0x1f8] sm:$0xff]
  %v111 = vld [vmem:[%s2 + $0x200] sm:$0xff]
  %v112 = vld [vmem:[%s2 + $0x208] sm:$0xff]
  %v113 = vld [vmem:[%s2 + $0x210] sm:$0xff]
  %v114 = vld [vmem:[%s2 + $0x218] sm:$0xff]
  %v115 = vld [vmem:[%s2 + $0x220] sm:$0xff]
  %v116 = vld [vmem:[%s2 + $0x228] sm:$0xff]
  %v117 = vld [vmem:[%s2 + $0x230] sm:$0xff]
  %v118 = vld [vmem:[%s2 + $0x238] sm:$0xff]
  %v119 = vld [vmem:[%s2 + $0x240] sm:$0xff]
  %v120 = vld [vmem:[%s2 + $0x248] sm:$0xff]
  %v121 = vld [vmem:[%s2 + $0x250] sm:$0xff]
  %v122 = vld [vmem:[%s2 + $0x258] sm:$0xff]
  %v123 = vld [vmem:[%s2 + $0x260] sm:$0xff]
  %v124 = vld [vmem:[%s2 + $0x268] sm:$0xff]
  %v125 = vld [vmem:[%s2 + $0x270] sm:$0xff]
  %v126 = vld [vmem:[%s2 + $0x278] sm:$0xff]
  %v127 = vld [vmem:[%s2 + $0x280] sm:$0xff]
  %v128 = vld [vmem:[%s2 + $0x288] sm:$0xff]
  %v129 = vld [vmem:[%s2 + $0x290] sm:$0xff]
  %v130 = vld [vmem:[%s2 + $0x298] sm:$0xff]
  %v131 = vld [vmem:[%s2 + $0x2a0] sm:$0xff]
  %v132 = vld [vmem:[%s2 + $0x2a8] sm:$0xff]
  %v133 = vld [vmem:[%s2 + $0x2b0] sm:$0xff]
  %v134 = vld [vmem:[%s2 + $0x2b8] sm:$0xff]
  %v135 = vld [vmem:[%s2 + $0x2c0] sm:$0xff]
  %v136 = vld [vmem:[%s2 + $0x2c8] sm:$0xff]
  %v137 = vld [vmem:[%s2 + $0x2d0] sm:$0xff]
  %v138 = vld [vmem:[%s2 + $0x2d8] sm:$0xff]
  %v139 = vld [vmem:[%s2 + $0x2e0] sm:$0xff]
  %v140 = vld [vmem:[%s2 + $0x2e8] sm:$0xff]
  %v141 = vld [vmem:[%s2 + $0x2f0] sm:$0xff]
  %v142 = vld [vmem:[%s2 + $0x2f8] sm:$0xff]
  %v143 = vld [vmem:[%s2 + $0x300] sm:$0xff]
  %v144 = vld [vmem:[%s2 + $0x308] sm:$0xff]
  %v145 = vld [vmem:[%s2 + $0x310] sm:$0xff]
  %v146 = vld [vmem:[%s2 + $0x318] sm:$0xff]
  %v147 = vld [vmem:[%s2 + $0x320] sm:$0xff]
  %v148 = vld [vmem:[%s2 + $0x328] sm:$0xff]
  %v149 = vld [vmem:[%s2 + $0x330] sm:$0xff]
  %v150 = vld [vmem:[%s2 + $0x338] sm:$0xff]
  %v151 = vld [vmem:[%s2 + $0x340] sm:$0xff]
  %v152 = vld [vmem:[%s2 + $0x348] sm:$0xff]
  %v153 = vld [vmem:[%s2 + $0x350] sm:$0xff]
  %v154 = vld [vmem:[%s2 + $0x358] sm:$0xff]
  %v155 = vld [vmem:[%s2 + $0x360] sm:$0xff]
  %v156 = vld [vmem:[%s2 + $0x368] sm:$0xff]
  %v157 = vld [vmem:[%s2 + $0x370] sm:$0xff]
  %v158 = vld [vmem:[%s2 + $0x378] sm:$0xff]
  %v159 = vld [vmem:[%s2 + $0x380] sm:$0xff]
  %v160 = vld [vmem:[%s2 + $0x388] sm:$0xff]
  %v161 = vld [vmem:[%s2 + $0x390] sm:$0xff]
  %v162 = vld [vmem:[%s2 + $0x398] sm:$0xff]
  %v163 = vld [vmem:[%s2 + $0x3a0] sm:$0xff]
  %v164 = vld [vmem:[%s2 + $0x3a8] sm:$0xff]
  %v165 = vld [vmem:[%s2 + $0x3b0] sm:$0xff]
  %v166 = vld [vmem:[%s2 + $0x3b8] sm:$0xff]
  %v167 = vld [vmem:[%s2 + $0x3c0] sm:$0xff]
  %v168 = vld [vmem:[%s2 + $0x3c8] sm:$0xff]
  %v169 = vld [vmem:[%s2 + $0x3d0] sm:$0xff]
  %v170 = vld [vmem:[%s2 + $0x3d8] sm:$0xff]
  %v171 = vld [vmem:[%s2 + $0x3e0] sm:$0xff]
  %v172 = vld [vmem:[%s2 + $0x3e8] sm:$0xff]
  %v173 = vld [vmem:[%s2 + $0x3f0] sm:$0xff]
  %v174 = vld [vmem:[%s2 + $0x3f8] sm:$0xff]
  %v175 = vld [vmem:[%s2 + $0x400] sm:$0xff]
  %v176 = vld [vmem:[%s2 + $0x408] sm:$0xff]
  %v177 = vld [vmem:[%s2 + $0x410] sm:$0xff]
  %v178 = vld [vmem:[%s2 + $0x418] sm:$0xff]
  %v179 = vld [vmem:[%s2 + $0x420] sm:$0xff]
  %v180 = vld [vmem:[%s2 + $0x428] sm:$0xff]
  %v181 = vld [vmem:[%s2 + $0x430] sm:$0xff]
  %v182 = vld [vmem:[%s2 + $0x438] sm:$0xff]
  %v183 = vld [vmem:[%s2 + $0x440] sm:$0xff]
  %v184 = vld [vmem:[%s2 + $0x448] sm:$0xff]
  %v185 = vld [vmem:[%s2 + $0x450] sm:$0xff]
  %v186 = vld [vmem:[%s2 + $0x458] sm:$0xff]
  %v187 = vld [vmem:[%s2 + $0x460] sm:$0xff]
  %v188 = vld [vmem:[%s2 + $0x468] sm:$0xff]
  %v189 = vld [vmem:[%s2 + $0x470] sm:$0xff]
  %v190 = vld [vmem:[%s2 + $0x478] sm:$0xff]
  %v191 = vld [vmem:[%s2 + $0x480] sm:$0xff]
  %v192 = vld [vmem:[%s2 + $0x488] sm:$0xff]
  %v193 = vld [vmem:[%s2 + $0x490] sm:$0xff]
  %v194 = vld [vmem:[%s2 + $0x498] sm:$0xff]
  %v195 = vld [vmem:[%s2 + $0x4a0] sm:$0xff]
  %v196 = vld [vmem:[%s2 + $0x4a8] sm:$0xff]
  %v197 = vld [vmem:[%s2 + $0x4b0] sm:$0xff]
  %v198 = vld [vmem:[%s2 + $0x4b8] sm:$0xff]
  %v199 = vld [vmem:[%s2 + $0x4c0] sm:$0xff]
  %v200 = vld [vmem:[%s2 + $0x4c8] sm:$0xff]
  %v201 = vld [vmem:[%s2 + $0x4d0] sm:$0xff]
  %v202 = vld [vmem:[%s2 + $0x4d8] sm:$0xff]
  %v203 = vld [vmem:[%s2 + $0x4e0] sm:$0xff]
  %v204 = vld [vmem:[%s2 + $0x4e8] sm:$0xff]
  %v205 = vld [vmem:[%s2 + $0x4f0] sm:$0xff]
  %v206 = vld [vmem:[%s2 + $0x4f8] sm:$0xff]
  %v207 = vld [vmem:[%s2 + $0x500] sm:$0xff]
  %v208 = vld [vmem:[%s2 + $0x508] sm:$0xff]
  %v209 = vld [vmem:[%s2 + $0x510] sm:$0xff]
  %v210 = vld [vmem:[%s2 + $0x518] sm:$0xff]
  %v211 = vld [vmem:[%s2 + $0x520] sm:$0xff]
  %v212 = vld [vmem:[%s2 + $0x528] sm:$0xff]
  %v213 = vld [vmem:[%s2 + $0x530] sm:$0xff]
  %v214 = vld [vmem:[%s2 + $0x538] sm:$0xff]
  %v215 = vld [vmem:[%s2 + $0x540] sm:$0xff]
  %v216 = vld [vmem:[%s2 + $0x548] sm:$0xff]
  %v217 = vld [vmem:[%s2 + $0x550] sm:$0xff]
  %v218 = vld [vmem:[%s2 + $0x558] sm:$0xff]
  %v219 = vld [vmem:[%s2 + $0x560] sm:$0xff]
  %v220 = vld [vmem:[%s2 + $0x568] sm:$0xff]
  %v221 = vld [vmem:[%s2 + $0x570] sm:$0xff]
  %v222 = vld [vmem:[%s2 + $0x578] sm:$0xff]
  %v223 = vld [vmem:[%s2 + $0x580] sm:$0xff]
  %v224 = vld [vmem:[%s2 + $0x588] sm:$0xff]
  %v225 = vld [vmem:[%s2 + $0x590] sm:$0xff]
  %v226 = vld [vmem:[%s2 + $0x598] sm:$0xff]
  %v227 = vld [vmem:[%s2 + $0x5a0] sm:$0xff]
  %v228 = vld [vmem:[%s2 + $0x5a8] sm:$0xff]
  %v229 = vld [vmem:[%s2 + $0x5b0] sm:$0xff]
  %v230 = vld [vmem:[%s2 + $0x5b8] sm:$0xff]
  %v231 = vld [vmem:[%s2 + $0x5c0] sm:$0xff]
  %v232 = vld [vmem:[%s2 + $0x5c8] sm:$0xff]
  %v233 = vld [vmem:[%s2 + $0x5d0] sm:$0xff]
  %v234 = vld [vmem:[%s2 + $0x5d8] sm:$0xff]
  %v235 = vld [vmem:[%s2 + $0x5e0] sm:$0xff]
  %v236 = vld [vmem:[%s2 + $0x5e8] sm:$0xff]
  %v237 = vld [vmem:[%s2 + $0x5f0] sm:$0xff]
  %v238 = vld [vmem:[%s2 + $0x5f8] sm:$0xff]
  %v239 = vld [vmem:[%s2 + $0x600] sm:$0xff]
  %v240 = vld [vmem:[%s2 + $0x608] sm:$0xff]
  %v241 = vld [vmem:[%s2 + $0x610] sm:$0xff]
  %v242 = vld [vmem:[%s2 + $0x618] sm:$0xff]
  %v243 = vld [vmem:[%s2 + $0x620] sm:$0xff]
  %v244 = vld [vmem:[%s2 + $0x628] sm:$0xff]
  %v245 = vld [vmem:[%s2 + $0x630] sm:$0xff]
  %v246 = vld [vmem:[%s2 + $0x638] sm:$0xff]
  %v247 = vld [vmem:[%s2 + $0x640] sm:$0xff]
  %v248 = vld [vmem:[%s2 + $0x648] sm:$0xff]
  %v249 = vld [vmem:[%s2 + $0x650] sm:$0xff]
  %v250 = vld [vmem:[%s2 + $0x658] sm:$0xff]
  %v251 = vld [vmem:[%s2 + $0x660] sm:$0xff]
  %v252 = vld [vmem:[%s2 + $0x668] sm:$0xff]
  %v253 = vld [vmem:[%s2 + $0x670] sm:$0xff]
  %v254 = vld [vmem:[%s2 + $0x678] sm:$0xff]
  %v255 = vld [vmem:[%s2 + $0x680] sm:$0xff]
  %v256 = vld [vmem:[%s2 + $0x688] sm:$0xff]
  %v257 = vld [vmem:[%s2 + $0x690] sm:$0xff]
  %v258 = vld [vmem:[%s2 + $0x698] sm:$0xff]
  %v259 = vld [vmem:[%s2 + $0x6a0] sm:$0xff]
  %v260 = vld [vmem:[%s2 + $0x6a8] sm:$0xff]
  %v261 = vld [vmem:[%s2 + $0x6b0] sm:$0xff]
  %v262 = vld [vmem:[%s2 + $0x6b8] sm:$0xff]
  %v263 = vld [vmem:[%s2 + $0x6c0] sm:$0xff]
  %v264 = vld [vmem:[%s2 + $0x6c8] sm:$0xff]
  %v265 = vld [vmem:[%s2 + $0x6d0] sm:$0xff]
  %v266 = vld [vmem:[%s2 + $0x6d8] sm:$0xff]
  %v267 = vld [vmem:[%s2 + $0x6e0] sm:$0xff]
  %v268 = vld [vmem:[%s2 + $0x6e8] sm:$0xff]
  %v269 = vld [vmem:[%s2 + $0x6f0] sm:$0xff]
  %v270 = vld [vmem:[%s2 + $0x6f8] sm:$0xff]
  %v271 = vld [vmem:[%s2 + $0x700] sm:$0xff]
  %v272 = vld [vmem:[%s2 + $0x708] sm:$0xff]
  %v273 = vld [vmem:[%s2 + $0x710] sm:$0xff]
  %v274 = vld [vmem:[%s2 + $0x718] sm:$0xff]
  %v275 = vld [vmem:[%s2 + $0x720] sm:$0xff]
  %v276 = vld [vmem:[%s2 + $0x728] sm:$0xff]
  %v277 = vld [vmem:[%s2 + $0x730] sm:$0xff]
  %v278 = vld [vmem:[%s2 + $0x738] sm:$0xff]
  %v279 = vld [vmem:[%s2 + $0x740] sm:$0xff]
  %v280 = vld [vmem:[%s2 + $0x748] sm:$0xff]
  %v281 = vld [vmem:[%s2 + $0x750] sm:$0xff]
  %v282 = vld [vmem:[%s2 + $0x758] sm:$0xff]
  %v283 = vld [vmem:[%s2 + $0x760] sm:$0xff]
  %v284 = vld [vmem:[%s2 + $0x768] sm:$0xff]
  %v285 = vld [vmem:[%s2 + $0x770] sm:$0xff]
  %v286 = vld [vmem:[%s2 + $0x778] sm:$0xff]
  %v287 = vld [vmem:[%s2 + $0x780] sm:$0xff]
  %v288 = vld [vmem:[%s2 + $0x788] sm:$0xff]
  %v289 = vld [vmem:[%s2 + $0x790] sm:$0xff]
  %v290 = vld [vmem:[%s2 + $0x798] sm:$0xff]
  %v291 = vld [vmem:[%s2 + $0x7a0] sm:$0xff]
  %v292 = vld [vmem:[%s2 + $0x7a8] sm:$0xff]
  %v293 = vld [vmem:[%s2 + $0x7b0] sm:$0xff]
  %v294 = vld [vmem:[%s2 + $0x7b8] sm:$0xff]
  %v295 = vld [vmem:[%s2 + $0x7c0] sm:$0xff]
  %v296 = vld [vmem:[%s2 + $0x7c8] sm:$0xff]
  %v297 = vld [vmem:[%s2 + $0x7d0] sm:$0xff]
  %v298 = vld [vmem:[%s2 + $0x7d8] sm:$0xff]
  %v299 = vld [vmem:[%s2 + $0x7e0] sm:$0xff]
  %v300 = vld [vmem:[%s2 + $0x7e8] sm:$0xff]
  %v301 = vld [vmem:[%s2 + $0x7f0] sm:$0xff]
  %v302 = vld [vmem:[%s2 + $0x7f8] sm:$0xff]
  %v303 = vld [vmem:[%s2 + $0x800] sm:$0xff]
  %v304 = vld [vmem:[%s2 + $0x808] sm:$0xff]
  %v305 = vld [vmem:[%s2 + $0x810] sm:$0xff]
  %v306 = vld [vmem:[%s2 + $0x818] sm:$0xff]
  %v307 = vld [vmem:[%s2 + $0x820] sm:$0xff]
  %v308 = vld [vmem:[%s2 + $0x828] sm:$0xff]
  %v309 = vld [vmem:[%s2 + $0x830] sm:$0xff]
  %v310 = vld [vmem:[%s2 + $0x838] sm:$0xff]
  %v311 = vld [vmem:[%s2 + $0x840] sm:$0xff]
  %v312 = vld [vmem:[%s2 + $0x848] sm:$0xff]
  %v313 = vld [vmem:[%s2 + $0x850] sm:$0xff]
  %v314 = vld [vmem:[%s2 + $0x858] sm:$0xff]
  %v315 = vld [vmem:[%s2 + $0x860] sm:$0xff]
  %v316 = vld [vmem:[%s2 + $0x868] sm:$0xff]
  %v317 = vld [vmem:[%s2 + $0x870] sm:$0xff]
  %v318 = vld [vmem:[%s2 + $0x878] sm:$0xff]
  %v319 = vld [vmem:[%s2 + $0x880] sm:$0xff]
  %v320 = vld [vmem:[%s2 + $0x888] sm:$0xff]
  %v321 = vld [vmem:[%s2 + $0x890] sm:$0xff]
  %v322 = vld [vmem:[%s2 + $0x898] sm:$0xff]
  %v323 = vld [vmem:[%s2 + $0x8a0] sm:$0xff]
  %v324 = vld [vmem:[%s2 + $0x8a8] sm:$0xff]
  %v325 = vld [vmem:[%s2 + $0x8b0] sm:$0xff]
  %v326 = vld [vmem:[%s2 + $0x8b8] sm:$0xff]
  %v327 = vld [vmem:[%s2 + $0x8c0] sm:$0xff]
  %v328 = vld [vmem:[%s2 + $0x8c8] sm:$0xff]
  %v329 = vld [vmem:[%s2 + $0x8d0] sm:$0xff]
  %v330 = vld [vmem:[%s2 + $0x8d8] sm:$0xff]
  %v331 = vld [vmem:[%s2 + $0x8e0] sm:$0xff]
  %v332 = vld [vmem:[%s2 + $0x8e8] sm:$0xff]
  %v333 = vld [vmem:[%s2 + $0x8f0] sm:$0xff]
  %v334 = vld [vmem:[%s2 + $0x8f8] sm:$0xff]
  %v335 = vld [vmem:[%s2 + $0x900] sm:$0xff]
  %v336 = vld [vmem:[%s2 + $0x908] sm:$0xff]
  %v337 = vld [vmem:[%s2 + $0x910] sm:$0xff]
  %v338 = vld [vmem:[%s2 + $0x918] sm:$0xff]
  %v339 = vld [vmem:[%s2 + $0x920] sm:$0xff]
  %v340 = vld [vmem:[%s2 + $0x928] sm:$0xff]
  %v341 = vld [vmem:[%s2 + $0x930] sm:$0xff]
  %v342 = vld [vmem:[%s2 + $0x938] sm:$0xff]
  %v343 = vld [vmem:[%s2 + $0x940] sm:$0xff]
  %v344 = vld [vmem:[%s2 + $0x948] sm:$0xff]
  %v345 = vld [vmem:[%s2 + $0x950] sm:$0xff]
  %v346 = vld [vmem:[%s2 + $0x958] sm:$0xff]
  %v347 = vld [vmem:[%s2 + $0x960] sm:$0xff]
  %v348 = vld [vmem:[%s2 + $0x968] sm:$0xff]
  %v349 = vld [vmem:[%s2 + $0x970] sm:$0xff]
  %v350 = vld [vmem:[%s2 + $0x978] sm:$0xff]
  %v351 = vld [vmem:[%s2 + $0x980] sm:$0xff]
  %v352 = vld [vmem:[%s2 + $0x988] sm:$0xff]
  %v353 = vld [vmem:[%s2 + $0x990] sm:$0xff]
  %v354 = vld [vmem:[%s2 + $0x998] sm:$0xff]
  %v355 = vld [vmem:[%s2 + $0x9a0] sm:$0xff]
  %v356 = vld [vmem:[%s2 + $0x9a8] sm:$0xff]
  %v357 = vld [vmem:[%s2 + $0x9b0] sm:$0xff]
  %v358 = vld [vmem:[%s2 + $0x9b8] sm:$0xff]
  %v359 = vld [vmem:[%s2 + $0x9c0] sm:$0xff]
  %v360 = vld [vmem:[%s2 + $0x9c8] sm:$0xff]
  %v361 = vld [vmem:[%s2 + $0x9d0] sm:$0xff]
  %v362 = vld [vmem:[%s2 + $0x9d8] sm:$0xff]
  %v363 = vld [vmem:[%s2 + $0x9e0] sm:$0xff]
  %v364 = vld [vmem:[%s2 + $0x9e8] sm:$0xff]
  %v365 = vld [vmem:[%s2 + $0x9f0] sm:$0xff]
  %v366 = vld [vmem:[%s2 + $0x9f8] sm:$0xff]
  %v367 = vld [vmem:[%s2 + $0xa00] sm:$0xff]
  %v368 = vld [vmem:[%s2 + $0xa08] sm:$0xff]
  %v369 = vld [vmem:[%s2 + $0xa10] sm:$0xff]
  %v370 = vld [vmem:[%s2 + $0xa18] sm:$0xff]
  %v371 = vld [vmem:[%s2 + $0xa20] sm:$0xff]
  %v372 = vld [vmem:[%s2 + $0xa28] sm:$0xff]
  %v373 = vld [vmem:[%s2 + $0xa30] sm:$0xff]
  %v374 = vld [vmem:[%s2 + $0xa38] sm:$0xff]
  %v375 = vld [vmem:[%s2 + $0xa40] sm:$0xff]
  %v376 = vld [vmem:[%s2 + $0xa48] sm:$0xff]
  %v377 = vld [vmem:[%s2 + $0xa50] sm:$0xff]
  %v378 = vld [vmem:[%s2 + $0xa58] sm:$0xff]
  %v379 = vld [vmem:[%s2 + $0xa60] sm:$0xff]
  %v380 = vld [vmem:[%s2 + $0xa68] sm:$0xff]
  %v381 = vld [vmem:[%s2 + $0xa70] sm:$0xff]
  %v382 = vld [vmem:[%s2 + $0xa78] sm:$0xff]
  %v383 = vld [vmem:[%s2 + $0xa80] sm:$0xff]
  %v384 = vld [vmem:[%s2 + $0xa88] sm:$0xff]
  %v385 = vld [vmem:[%s2 + $0xa90] sm:$0xff]
  %v386 = vld [vmem:[%s2 + $0xa98] sm:$0xff]
  %v387 = vld [vmem:[%s2 + $0xaa0] sm:$0xff]
  %v388 = vld [vmem:[%s2 + $0xaa8] sm:$0xff]
  %v389 = vld [vmem:[%s2 + $0xab0] sm:$0xff]
  %v390 = vld [vmem:[%s2 + $0xab8] sm:$0xff]
  %v391 = vld [vmem:[%s2 + $0xac0] sm:$0xff]
  %v392 = vld [vmem:[%s2 + $0xac8] sm:$0xff]
  %v393 = vld [vmem:[%s2 + $0xad0] sm:$0xff]
  %v394 = vld [vmem:[%s2 + $0xad8] sm:$0xff]
  %v395 = vld [vmem:[%s2 + $0xae0] sm:$0xff]
  %v396 = vld [vmem:[%s2 + $0xae8] sm:$0xff]
  %v397 = vld [vmem:[%s2 + $0xaf0] sm:$0xff]
  %v398 = vld [vmem:[%s2 + $0xaf8] sm:$0xff]
  %v399 = vld [vmem:[%s2 + $0xb00] sm:$0xff]
  %v400 = vld [vmem:[%s2 + $0xb08] sm:$0xff]
  %v401 = vld [vmem:[%s2 + $0xb10] sm:$0xff]
  %v402 = vld [vmem:[%s2 + $0xb18] sm:$0xff]
  %v403 = vld [vmem:[%s2 + $0xb20] sm:$0xff]
  %v404 = vld [vmem:[%s2 + $0xb28] sm:$0xff]
  %v405 = vld [vmem:[%s2 + $0xb30] sm:$0xff]
  %v406 = vld [vmem:[%s2 + $0xb38] sm:$0xff]
  %v407 = vld [vmem:[%s2 + $0xb40] sm:$0xff]
  %v408 = vld [vmem:[%s2 + $0xb48] sm:$0xff]
  %v409 = vld [vmem:[%s2 + $0xb50] sm:$0xff]
  %v410 = vld [vmem:[%s2 + $0xb58] sm:$0xff]
  %v411 = vld [vmem:[%s2 + $0xb60] sm:$0xff]
  %v412 = vld [vmem:[%s2 + $0xb68] sm:$0xff]
  %v413 = vld [vmem:[%s2 + $0xb70] sm:$0xff]
  %v414 = vld [vmem:[%s2 + $0xb78] sm:$0xff]
  %v415 = vld [vmem:[%s2 + $0xb80] sm:$0xff]
  %v416 = vld [vmem:[%s2 + $0xb88] sm:$0xff]
  %v417 = vld [vmem:[%s2 + $0xb90] sm:$0xff]
  %v418 = vld [vmem:[%s2 + $0xb98] sm:$0xff]
  %v419 = vld [vmem:[%s2 + $0xba0] sm:$0xff]
  %v420 = vld [vmem:[%s2 + $0xba8] sm:$0xff]
  %v421 = vld [vmem:[%s2 + $0xbb0] sm:$0xff]
  %v422 = vld [vmem:[%s2 + $0xbb8] sm:$0xff]
  %v423 = vld [vmem:[%s2 + $0xbc0] sm:$0xff]
  %v424 = vld [vmem:[%s2 + $0xbc8] sm:$0xff]
  %v425 = vld [vmem:[%s2 + $0xbd0] sm:$0xff]
  %v426 = vld [vmem:[%s2 + $0xbd8] sm:$0xff]
  %v427 = vld [vmem:[%s2 + $0xbe0] sm:$0xff]
  %v428 = vld [vmem:[%s2 + $0xbe8] sm:$0xff]
  %v429 = vld [vmem:[%s2 + $0xbf0] sm:$0xff]
  %v430 = vld [vmem:[%s2 + $0xbf8] sm:$0xff]
  %v431 = vld [vmem:[%s2 + $0xc00] sm:$0xff]
  %v432 = vld [vmem:[%s2 + $0xc08] sm:$0xff]
  %v433 = vld [vmem:[%s2 + $0xc10] sm:$0xff]
  %v434 = vld [vmem:[%s2 + $0xc18] sm:$0xff]
  %v435 = vld [vmem:[%s2 + $0xc20] sm:$0xff]
  %v436 = vld [vmem:[%s2 + $0xc28] sm:$0xff]
  %v437 = vld [vmem:[%s2 + $0xc30] sm:$0xff]
  %v438 = vld [vmem:[%s2 + $0xc38] sm:$0xff]
  %v439 = vld [vmem:[%s10] sm:$0xf]
  %v441 = vlaneseq
  %v442 = vshrl.u32 %v441, 7
  %v443 = vsub.s32 0, %v442
  %v444 = vrot.slane %v439, %v443
  %v445 = vlaneseq
  %v446 = vshrl.u32 %v445, 7
  %v447 = vsub.s32 1, %v446
  %v448 = vrot.slane %v439, %v447
  %v449 = vlaneseq
  %v450 = vshrl.u32 %v449, 7
  %v451 = vsub.s32 2, %v450
  %v452 = vrot.slane %v439, %v451
  %v453 = vlaneseq
  %v454 = vshrl.u32 %v453, 7
  %v455 = vsub.s32 3, %v454
  %v456 = vrot.slane %v439, %v455
  %vm461 = vcmask 130048
  %v463 = vsel %vm461, %v46, 0
  %465 = vmatprep.subr.mxu0 %v48
  %466 = vmatpush1.msra.mxu0 %v47
  %467 = vmatprep.subr.mxu0 %v52
  %468 = vmatpush1.msra.mxu0 %v51
  %469 = vmatprep.subr.mxu0 %v56
  %470 = vmatpush1.msra.mxu0 %v55
  %471 = vmatprep.subr.mxu0 %v60
  %472 = vmatpush1.msra.mxu0 %v59
  %473 = vmatprep.subr.mxu0 %v64
  %474 = vmatpush1.msra.mxu0 %v63
  %475 = vmatprep.subr.mxu0 %v68
  %476 = vmatpush1.msra.mxu0 %v67
  %477 = vmatprep.subr.mxu0 %v72
  %478 = vmatpush1.msra.mxu0 %v71
  %479 = vmatprep.subr.mxu0 %v76
  %480 = vmatpush1.msra.mxu0 %v75
  %481 = vmatprep.subr.mxu0 %v80
  %482 = vmatpush1.msra.mxu0 %v79
  %483 = vmatprep.subr.mxu0 %v84
  %484 = vmatpush1.msra.mxu0 %v83
  %485 = vmatprep.subr.mxu0 %v88
  %486 = vmatpush1.msra.mxu0 %v87
  %487 = vmatprep.subr.mxu0 %v92
  %488 = vmatpush1.msra.mxu0 %v91
  %489 = vmatprep.subr.mxu0 %v96
  %490 = vmatpush1.msra.mxu0 %v95
  %491 = vmatprep.subr.mxu0 %v100
  %492 = vmatpush1.msra.mxu0 %v99
  %493 = vmatprep.subr.mxu0 %v104
  %494 = vmatpush1.msra.mxu0 %v103
  %495 = vmatprep.subr.mxu0 %v108
  %496 = vmatpush1.msra.mxu0 %v107
  %497 = vmatprep.subr.mxu0 %v112
  %498 = vmatpush1.msra.mxu0 %v111
  %499 = vmatprep.subr.mxu0 %v116
  %500 = vmatpush1.msra.mxu0 %v115
  %501 = vmatprep.subr.mxu0 %v120
  %502 = vmatpush1.msra.mxu0 %v119
  %503 = vmatprep.subr.mxu0 %v124
  %504 = vmatpush1.msra.mxu0 %v123
  %505 = vmatprep.subr.mxu0 %v128
  %506 = vmatpush1.msra.mxu0 %v127
  %507 = vmatprep.subr.mxu0 %v132
  %508 = vmatpush1.msra.mxu0 %v131
  %509 = vmatprep.subr.mxu0 %v136
  %510 = vmatpush1.msra.mxu0 %v135
  %511 = vmatprep.subr.mxu0 %v140
  %512 = vmatpush1.msra.mxu0 %v139
  %513 = vmatprep.subr.mxu0 %v144
  %514 = vmatpush1.msra.mxu0 %v143
  %515 = vmatprep.subr.mxu0 %v148
  %516 = vmatpush1.msra.mxu0 %v147
  %517 = vmatprep.subr.mxu0 %v152
  %518 = vmatpush1.msra.mxu0 %v151
  %519 = vmatprep.subr.mxu0 %v156
  %520 = vmatpush1.msra.mxu0 %v155
  %521 = vmatprep.subr.mxu0 %v160
  %522 = vmatpush1.msra.mxu0 %v159
  %523 = vmatprep.subr.mxu0 %v164
  %524 = vmatpush1.msra.mxu0 %v163
  %525 = vmatprep.subr.mxu0 %v168
  %526 = vmatpush1.msra.mxu0 %v167
  %527 = vmatprep.subr.mxu0 %v172
  %528 = vmatpush1.msra.mxu0 %v171
  %529 = vmatprep.mubr.f32.mxu0 %v41
  %530 = vmatmul.mubr.f32.gmra.mrb[0].mxu0 %v40
  %v531 = vpop.f32.mrb[0].mxu0
  %v532 = vadd.f32 %v444, %v531
  %v533 = vpop.f32.mrb[0].mxu0
  %v534 = vadd.f32 %v448, %v533
  %535 = vdwg.mxu0
  %536 = vmatprep.subr.mxu0 %v176
  %537 = vmatpush1.msra.mxu0 %v175
  %538 = vmatprep.subr.mxu0 %v180
  %539 = vmatpush1.msra.mxu0 %v179
  %540 = vmatprep.subr.mxu0 %v184
  %541 = vmatpush1.msra.mxu0 %v183
  %542 = vmatprep.subr.mxu0 %v188
  %543 = vmatpush1.msra.mxu0 %v187
  %544 = vmatprep.subr.mxu0 %v192
  %545 = vmatpush1.msra.mxu0 %v191
  %546 = vmatprep.subr.mxu0 %v196
  %547 = vmatpush1.msra.mxu0 %v195
  %548 = vmatprep.subr.mxu0 %v200
  %549 = vmatpush1.msra.mxu0 %v199
  %550 = vmatprep.subr.mxu0 %v204
  %551 = vmatpush1.msra.mxu0 %v203
  %552 = vmatprep.subr.mxu0 %v208
  %553 = vmatpush1.msra.mxu0 %v207
  %554 = vmatprep.subr.mxu0 %v212
  %555 = vmatpush1.msra.mxu0 %v211
  %556 = vmatprep.subr.mxu0 %v216
  %557 = vmatpush1.msra.mxu0 %v215
  %558 = vmatprep.subr.mxu0 %v220
  %559 = vmatpush1.msra.mxu0 %v219
  %560 = vmatprep.subr.mxu0 %v224
  %561 = vmatpush1.msra.mxu0 %v223
  %562 = vmatprep.subr.mxu0 %v228
  %563 = vmatpush1.msra.mxu0 %v227
  %564 = vmatprep.subr.mxu0 %v232
  %565 = vmatpush1.msra.mxu0 %v231
  %566 = vmatprep.subr.mxu0 %v236
  %567 = vmatpush1.msra.mxu0 %v235
  %568 = vmatprep.subr.mxu0 %v240
  %569 = vmatpush1.msra.mxu0 %v239
  %570 = vmatprep.subr.mxu0 %v244
  %571 = vmatpush1.msra.mxu0 %v243
  %572 = vmatprep.subr.mxu0 %v248
  %573 = vmatpush1.msra.mxu0 %v247
  %574 = vmatprep.subr.mxu0 %v252
  %575 = vmatpush1.msra.mxu0 %v251
  %576 = vmatprep.subr.mxu0 %v256
  %577 = vmatpush1.msra.mxu0 %v255
  %578 = vmatprep.subr.mxu0 %v260
  %579 = vmatpush1.msra.mxu0 %v259
  %580 = vmatprep.subr.mxu0 %v264
  %581 = vmatpush1.msra.mxu0 %v263
  %582 = vmatprep.subr.mxu0 %v268
  %583 = vmatpush1.msra.mxu0 %v267
  %584 = vmatprep.subr.mxu0 %v272
  %585 = vmatpush1.msra.mxu0 %v271
  %586 = vmatprep.subr.mxu0 %v276
  %587 = vmatpush1.msra.mxu0 %v275
  %588 = vmatprep.subr.mxu0 %v280
  %589 = vmatpush1.msra.mxu0 %v279
  %590 = vmatprep.subr.mxu0 %v284
  %591 = vmatpush1.msra.mxu0 %v283
  %592 = vmatprep.subr.mxu0 %v288
  %593 = vmatpush1.msra.mxu0 %v287
  %594 = vmatprep.subr.mxu0 %v292
  %595 = vmatpush1.msra.mxu0 %v291
  %596 = vmatprep.subr.mxu0 %v296
  %597 = vmatpush1.msra.mxu0 %v295
  %598 = vmatprep.subr.mxu0 %v300
  %599 = vmatpush1.msra.mxu0 %v299
  %600 = vmatprep.mubr.f32.mxu0 %v43
  %601 = vmatmul.mubr.f32.gmra.mrb[0].mxu0 %v42
  %v602 = vpop.f32.mrb[0].mxu0
  %v603 = vadd.f32 %v532, %v602
  %v604 = vpop.f32.mrb[0].mxu0
  %v605 = vadd.f32 %v534, %v604
  %606 = vdwg.mxu0
  %607 = vmatprep.subr.mxu0 %v304
  %608 = vmatpush1.msra.mxu0 %v303
  %609 = vmatprep.subr.mxu0 %v308
  %610 = vmatpush1.msra.mxu0 %v307
  %611 = vmatprep.subr.mxu0 %v312
  %612 = vmatpush1.msra.mxu0 %v311
  %613 = vmatprep.subr.mxu0 %v316
  %614 = vmatpush1.msra.mxu0 %v315
  %615 = vmatprep.subr.mxu0 %v320
  %616 = vmatpush1.msra.mxu0 %v319
  %617 = vmatprep.subr.mxu0 %v324
  %618 = vmatpush1.msra.mxu0 %v323
  %619 = vmatprep.subr.mxu0 %v328
  %620 = vmatpush1.msra.mxu0 %v327
  %621 = vmatprep.subr.mxu0 %v332
  %622 = vmatpush1.msra.mxu0 %v331
  %623 = vmatprep.subr.mxu0 %v336
  %624 = vmatpush1.msra.mxu0 %v335
  %625 = vmatprep.subr.mxu0 %v340
  %626 = vmatpush1.msra.mxu0 %v339
  %627 = vmatprep.subr.mxu0 %v344
  %628 = vmatpush1.msra.mxu0 %v343
  %629 = vmatprep.subr.mxu0 %v348
  %630 = vmatpush1.msra.mxu0 %v347
  %631 = vmatprep.subr.mxu0 %v352
  %632 = vmatpush1.msra.mxu0 %v351
  %633 = vmatprep.subr.mxu0 %v356
  %634 = vmatpush1.msra.mxu0 %v355
  %635 = vmatprep.subr.mxu0 %v360
  %636 = vmatpush1.msra.mxu0 %v359
  %637 = vmatprep.subr.mxu0 %v364
  %638 = vmatpush1.msra.mxu0 %v363
  %639 = vmatprep.subr.mxu0 %v368
  %640 = vmatpush1.msra.mxu0 %v367
  %641 = vmatprep.subr.mxu0 %v372
  %642 = vmatpush1.msra.mxu0 %v371
  %643 = vmatprep.subr.mxu0 %v376
  %644 = vmatpush1.msra.mxu0 %v375
  %645 = vmatprep.subr.mxu0 %v380
  %646 = vmatpush1.msra.mxu0 %v379
  %647 = vmatprep.subr.mxu0 %v384
  %648 = vmatpush1.msra.mxu0 %v383
  %649 = vmatprep.subr.mxu0 %v388
  %650 = vmatpush1.msra.mxu0 %v387
  %651 = vmatprep.subr.mxu0 %v392
  %652 = vmatpush1.msra.mxu0 %v391
  %653 = vmatprep.subr.mxu0 %v396
  %654 = vmatpush1.msra.mxu0 %v395
  %655 = vmatprep.subr.mxu0 %v400
  %656 = vmatpush1.msra.mxu0 %v399
  %657 = vmatprep.subr.mxu0 %v404
  %658 = vmatpush1.msra.mxu0 %v403
  %659 = vmatprep.subr.mxu0 %v408
  %660 = vmatpush1.msra.mxu0 %v407
  %661 = vmatprep.subr.mxu0 %v412
  %662 = vmatpush1.msra.mxu0 %v411
  %663 = vmatprep.subr.mxu0 %v416
  %664 = vmatpush1.msra.mxu0 %v415
  %665 = vmatprep.subr.mxu0 %v420
  %666 = vmatpush1.msra.mxu0 %v419
  %667 = vmatprep.subr.mxu0 %v424
  %668 = vmatpush1.msra.mxu0 %v423
  %669 = vmatprep.subr.mxu0 %v428
  %670 = vmatpush1.msra.mxu0 %v427
  %671 = vmatprep.mubr.f32.mxu0 %v45
  %672 = vmatmul.mubr.f32.gmra.mrb[0].mxu0 %v44
  %v673 = vpop.f32.mrb[0].mxu0
  %v674 = vadd.f32 %v603, %v673
  %v675 = vpop.f32.mrb[0].mxu0
  %v676 = vadd.f32 %v605, %v675
  %677 = vdwg.mxu0
  %678 = vmatprep.subr.mxu0 %v432
  %679 = vmatpush1.msra.mxu0 %v431
  %680 = vmatprep.subr.mxu0 %v436
  %681 = vmatpush1.msra.mxu0 %v435
  %682 = vmatprep.subr.mxu0 0.0
  %683 = vmatpush1.msra.mxu0 0.0
  %684 = vmatprep.subr.mxu0 0.0
  %685 = vmatpush1.msra.mxu0 0.0
  %686 = vmatprep.subr.mxu0 0.0
  %687 = vmatpush1.msra.mxu0 0.0
  %688 = vmatprep.subr.mxu0 0.0
  %689 = vmatpush1.msra.mxu0 0.0
  %690 = vmatprep.subr.mxu0 0.0
  %691 = vmatpush1.msra.mxu0 0.0
  %692 = vmatprep.subr.mxu0 0.0
  %693 = vmatpush1.msra.mxu0 0.0
  %694 = vmatprep.subr.mxu0 0.0
  %695 = vmatpush1.msra.mxu0 0.0
  %696 = vmatprep.subr.mxu0 0.0
  %697 = vmatpush1.msra.mxu0 0.0
  %698 = vmatprep.subr.mxu0 0.0
  %699 = vmatpush1.msra.mxu0 0.0
  %700 = vmatprep.subr.mxu0 0.0
  %701 = vmatpush1.msra.mxu0 0.0
  %702 = vmatprep.subr.mxu0 0.0
  %703 = vmatpush1.msra.mxu0 0.0
  %704 = vmatprep.subr.mxu0 0.0
  %705 = vmatpush1.msra.mxu0 0.0
  %706 = vmatprep.subr.mxu0 0.0
  %707 = vmatpush1.msra.mxu0 0.0
  %708 = vmatprep.subr.mxu0 0.0
  %709 = vmatpush1.msra.mxu0 0.0
  %710 = vmatprep.subr.mxu0 0.0
  %711 = vmatpush1.msra.mxu0 0.0
  %712 = vmatprep.subr.mxu0 0.0
  %713 = vmatpush1.msra.mxu0 0.0
  %714 = vmatprep.subr.mxu0 0.0
  %715 = vmatpush1.msra.mxu0 0.0
  %716 = vmatprep.subr.mxu0 0.0
  %717 = vmatpush1.msra.mxu0 0.0
  %718 = vmatprep.subr.mxu0 0.0
  %719 = vmatpush1.msra.mxu0 0.0
  %720 = vmatprep.subr.mxu0 0.0
  %721 = vmatpush1.msra.mxu0 0.0
  %722 = vmatprep.subr.mxu0 0.0
  %723 = vmatpush1.msra.mxu0 0.0
  %724 = vmatprep.subr.mxu0 0.0
  %725 = vmatpush1.msra.mxu0 0.0
  %726 = vmatprep.subr.mxu0 0.0
  %727 = vmatpush1.msra.mxu0 0.0
  %728 = vmatprep.subr.mxu0 0.0
  %729 = vmatpush1.msra.mxu0 0.0
  %730 = vmatprep.subr.mxu0 0.0
  %731 = vmatpush1.msra.mxu0 0.0
  %732 = vmatprep.subr.mxu0 0.0
  %733 = vmatpush1.msra.mxu0 0.0
  %734 = vmatprep.subr.mxu0 0.0
  %735 = vmatpush1.msra.mxu0 0.0
  %736 = vmatprep.subr.mxu0 0.0
  %737 = vmatpush1.msra.mxu0 0.0
  %738 = vmatprep.subr.mxu0 0.0
  %739 = vmatpush1.msra.mxu0 0.0
  %740 = vmatprep.subr.mxu0 0.0
  %741 = vmatpush1.msra.mxu0 0.0
  %742 = vmatprep.mubr.f32.mxu0 0.0
  %743 = vmatmul.mubr.f32.gmra.mrb[0].mxu0 %v463
  %v744 = vpop.f32.mrb[0].mxu0
  %v745 = vadd.f32 %v674, %v744
  %v746 = vpop.f32.mrb[0].mxu0
  %v747 = vadd.f32 %v676, %v746
  %748 = vdwg.mxu0
  %749 = vmatprep.subr.mxu0 %v50
  %750 = vmatpush1.msra.mxu0 %v49
  %751 = vmatprep.subr.mxu0 %v54
  %752 = vmatpush1.msra.mxu0 %v53
  %753 = vmatprep.subr.mxu0 %v58
  %754 = vmatpush1.msra.mxu0 %v57
  %755 = vmatprep.subr.mxu0 %v62
  %756 = vmatpush1.msra.mxu0 %v61
  %757 = vmatprep.subr.mxu0 %v66
  %758 = vmatpush1.msra.mxu0 %v65
  %759 = vmatprep.subr.mxu0 %v70
  %760 = vmatpush1.msra.mxu0 %v69
  %761 = vmatprep.subr.mxu0 %v74
  %762 = vmatpush1.msra.mxu0 %v73
  %763 = vmatprep.subr.mxu0 %v78
  %764 = vmatpush1.msra.mxu0 %v77
  %765 = vmatprep.subr.mxu0 %v82
  %766 = vmatpush1.msra.mxu0 %v81
  %767 = vmatprep.subr.mxu0 %v86
  %768 = vmatpush1.msra.mxu0 %v85
  %769 = vmatprep.subr.mxu0 %v90
  %770 = vmatpush1.msra.mxu0 %v89
  %771 = vmatprep.subr.mxu0 %v94
  %772 = vmatpush1.msra.mxu0 %v93
  %773 = vmatprep.subr.mxu0 %v98
  %774 = vmatpush1.msra.mxu0 %v97
  %775 = vmatprep.subr.mxu0 %v102
  %776 = vmatpush1.msra.mxu0 %v101
  %777 = vmatprep.subr.mxu0 %v106
  %778 = vmatpush1.msra.mxu0 %v105
  %779 = vmatprep.subr.mxu0 %v110
  %780 = vmatpush1.msra.mxu0 %v109
  %781 = vmatprep.subr.mxu0 %v114
  %782 = vmatpush1.msra.mxu0 %v113
  %783 = vmatprep.subr.mxu0 %v118
  %784 = vmatpush1.msra.mxu0 %v117
  %785 = vmatprep.subr.mxu0 %v122
  %786 = vmatpush1.msra.mxu0 %v121
  %787 = vmatprep.subr.mxu0 %v126
  %788 = vmatpush1.msra.mxu0 %v125
  %789 = vmatprep.subr.mxu0 %v130
  %790 = vmatpush1.msra.mxu0 %v129
  %791 = vmatprep.subr.mxu0 %v134
  %792 = vmatpush1.msra.mxu0 %v133
  %793 = vmatprep.subr.mxu0 %v138
  %794 = vmatpush1.msra.mxu0 %v137
  %795 = vmatprep.subr.mxu0 %v142
  %796 = vmatpush1.msra.mxu0 %v141
  %797 = vmatprep.subr.mxu0 %v146
  %798 = vmatpush1.msra.mxu0 %v145
  %799 = vmatprep.subr.mxu0 %v150
  %800 = vmatpush1.msra.mxu0 %v149
  %801 = vmatprep.subr.mxu0 %v154
  %802 = vmatpush1.msra.mxu0 %v153
  %803 = vmatprep.subr.mxu0 %v158
  %804 = vmatpush1.msra.mxu0 %v157
  %805 = vmatprep.subr.mxu0 %v162
  %806 = vmatpush1.msra.mxu0 %v161
  %807 = vmatprep.subr.mxu0 %v166
  %808 = vmatpush1.msra.mxu0 %v165
  %809 = vmatprep.subr.mxu0 %v170
  %810 = vmatpush1.msra.mxu0 %v169
  %811 = vmatprep.subr.mxu0 %v174
  %812 = vmatpush1.msra.mxu0 %v173
  %813 = vmatprep.mubr.f32.mxu0 %v41
  %814 = vmatmul.mubr.f32.gmra.mrb[0].mxu0 %v40
  %v815 = vpop.f32.mrb[0].mxu0
  %v816 = vadd.f32 %v452, %v815
  %v817 = vpop.f32.mrb[0].mxu0
  %v818 = vadd.f32 %v456, %v817
  %819 = vdwg.mxu0
  %820 = vmatprep.subr.mxu0 %v178
  %821 = vmatpush1.msra.mxu0 %v177
  %822 = vmatprep.subr.mxu0 %v182
  %823 = vmatpush1.msra.mxu0 %v181
  %824 = vmatprep.subr.mxu0 %v186
  %825 = vmatpush1.msra.mxu0 %v185
  %826 = vmatprep.subr.mxu0 %v190
  %827 = vmatpush1.msra.mxu0 %v189
  %828 = vmatprep.subr.mxu0 %v194
  %829 = vmatpush1.msra.mxu0 %v193
  %830 = vmatprep.subr.mxu0 %v198
  %831 = vmatpush1.msra.mxu0 %v197
  %832 = vmatprep.subr.mxu0 %v202
  %833 = vmatpush1.msra.mxu0 %v201
  %834 = vmatprep.subr.mxu0 %v206
  %835 = vmatpush1.msra.mxu0 %v205
  %836 = vmatprep.subr.mxu0 %v210
  %837 = vmatpush1.msra.mxu0 %v209
  %838 = vmatprep.subr.mxu0 %v214
  %839 = vmatpush1.msra.mxu0 %v213
  %840 = vmatprep.subr.mxu0 %v218
  %841 = vmatpush1.msra.mxu0 %v217
  %842 = vmatprep.subr.mxu0 %v222
  %843 = vmatpush1.msra.mxu0 %v221
  %844 = vmatprep.subr.mxu0 %v226
  %845 = vmatpush1.msra.mxu0 %v225
  %846 = vmatprep.subr.mxu0 %v230
  %847 = vmatpush1.msra.mxu0 %v229
  %848 = vmatprep.subr.mxu0 %v234
  %849 = vmatpush1.msra.mxu0 %v233
  %850 = vmatprep.subr.mxu0 %v238
  %851 = vmatpush1.msra.mxu0 %v237
  %852 = vmatprep.subr.mxu0 %v242
  %853 = vmatpush1.msra.mxu0 %v241
  %854 = vmatprep.subr.mxu0 %v246
  %855 = vmatpush1.msra.mxu0 %v245
  %856 = vmatprep.subr.mxu0 %v250
  %857 = vmatpush1.msra.mxu0 %v249
  %858 = vmatprep.subr.mxu0 %v254
  %859 = vmatpush1.msra.mxu0 %v253
  %860 = vmatprep.subr.mxu0 %v258
  %861 = vmatpush1.msra.mxu0 %v257
  %862 = vmatprep.subr.mxu0 %v262
  %863 = vmatpush1.msra.mxu0 %v261
  %864 = vmatprep.subr.mxu0 %v266
  %865 = vmatpush1.msra.mxu0 %v265
  %866 = vmatprep.subr.mxu0 %v270
  %867 = vmatpush1.msra.mxu0 %v269
  %868 = vmatprep.subr.mxu0 %v274
  %869 = vmatpush1.msra.mxu0 %v273
  %870 = vmatprep.subr.mxu0 %v278
  %871 = vmatpush1.msra.mxu0 %v277
  %872 = vmatprep.subr.mxu0 %v282
  %873 = vmatpush1.msra.mxu0 %v281
  %874 = vmatprep.subr.mxu0 %v286
  %875 = vmatpush1.msra.mxu0 %v285
  %876 = vmatprep.subr.mxu0 %v290
  %877 = vmatpush1.msra.mxu0 %v289
  %878 = vmatprep.subr.mxu0 %v294
  %879 = vmatpush1.msra.mxu0 %v293
  %880 = vmatprep.subr.mxu0 %v298
  %881 = vmatpush1.msra.mxu0 %v297
  %882 = vmatprep.subr.mxu0 %v302
  %883 = vmatpush1.msra.mxu0 %v301
  %884 = vmatprep.mubr.f32.mxu0 %v43
  %885 = vmatmul.mubr.f32.gmra.mrb[0].mxu0 %v42
  %v886 = vpop.f32.mrb[0].mxu0
  %v887 = vadd.f32 %v816, %v886
  %v888 = vpop.f32.mrb[0].mxu0
  %v889 = vadd.f32 %v818, %v888
  %890 = vdwg.mxu0
  %891 = vmatprep.subr.mxu0 %v306
  %892 = vmatpush1.msra.mxu0 %v305
  %893 = vmatprep.subr.mxu0 %v310
  %894 = vmatpush1.msra.mxu0 %v309
  %895 = vmatprep.subr.mxu0 %v314
  %896 = vmatpush1.msra.mxu0 %v313
  %897 = vmatprep.subr.mxu0 %v318
  %898 = vmatpush1.msra.mxu0 %v317
  %899 = vmatprep.subr.mxu0 %v322
  %900 = vmatpush1.msra.mxu0 %v321
  %901 = vmatprep.subr.mxu0 %v326
  %902 = vmatpush1.msra.mxu0 %v325
  %903 = vmatprep.subr.mxu0 %v330
  %904 = vmatpush1.msra.mxu0 %v329
  %905 = vmatprep.subr.mxu0 %v334
  %906 = vmatpush1.msra.mxu0 %v333
  %907 = vmatprep.subr.mxu0 %v338
  %908 = vmatpush1.msra.mxu0 %v337
  %909 = vmatprep.subr.mxu0 %v342
  %910 = vmatpush1.msra.mxu0 %v341
  %911 = vmatprep.subr.mxu0 %v346
  %912 = vmatpush1.msra.mxu0 %v345
  %913 = vmatprep.subr.mxu0 %v350
  %914 = vmatpush1.msra.mxu0 %v349
  %915 = vmatprep.subr.mxu0 %v354
  %916 = vmatpush1.msra.mxu0 %v353
  %917 = vmatprep.subr.mxu0 %v358
  %918 = vmatpush1.msra.mxu0 %v357
  %919 = vmatprep.subr.mxu0 %v362
  %920 = vmatpush1.msra.mxu0 %v361
  %921 = vmatprep.subr.mxu0 %v366
  %922 = vmatpush1.msra.mxu0 %v365
  %923 = vmatprep.subr.mxu0 %v370
  %924 = vmatpush1.msra.mxu0 %v369
  %925 = vmatprep.subr.mxu0 %v374
  %926 = vmatpush1.msra.mxu0 %v373
  %927 = vmatprep.subr.mxu0 %v378
  %928 = vmatpush1.msra.mxu0 %v377
  %929 = vmatprep.subr.mxu0 %v382
  %930 = vmatpush1.msra.mxu0 %v381
  %931 = vmatprep.subr.mxu0 %v386
  %932 = vmatpush1.msra.mxu0 %v385
  %933 = vmatprep.subr.mxu0 %v390
  %934 = vmatpush1.msra.mxu0 %v389
  %935 = vmatprep.subr.mxu0 %v394
  %936 = vmatpush1.msra.mxu0 %v393
  %937 = vmatprep.subr.mxu0 %v398
  %938 = vmatpush1.msra.mxu0 %v397
  %939 = vmatprep.subr.mxu0 %v402
  %940 = vmatpush1.msra.mxu0 %v401
  %941 = vmatprep.subr.mxu0 %v406
  %942 = vmatpush1.msra.mxu0 %v405
  %943 = vmatprep.subr.mxu0 %v410
  %944 = vmatpush1.msra.mxu0 %v409
  %945 = vmatprep.subr.mxu0 %v414
  %946 = vmatpush1.msra.mxu0 %v413
  %947 = vmatprep.subr.mxu0 %v418
  %948 = vmatpush1.msra.mxu0 %v417
  %949 = vmatprep.subr.mxu0 %v422
  %950 = vmatpush1.msra.mxu0 %v421
  %951 = vmatprep.subr.mxu0 %v426
  %952 = vmatpush1.msra.mxu0 %v425
  %953 = vmatprep.subr.mxu0 %v430
  %954 = vmatpush1.msra.mxu0 %v429
  %955 = vmatprep.mubr.f32.mxu0 %v45
  %956 = vmatmul.mubr.f32.gmra.mrb[0].mxu0 %v44
  %v957 = vpop.f32.mrb[0].mxu0
  %v958 = vadd.f32 %v887, %v957
  %v959 = vpop.f32.mrb[0].mxu0
  %v960 = vadd.f32 %v889, %v959
  %961 = vdwg.mxu0
  %962 = vmatprep.subr.mxu0 %v434
  %963 = vmatpush1.msra.mxu0 %v433
  %964 = vmatprep.subr.mxu0 %v438
  %965 = vmatpush1.msra.mxu0 %v437
  %966 = vmatprep.subr.mxu0 0.0
  %967 = vmatpush1.msra.mxu0 0.0
  %968 = vmatprep.subr.mxu0 0.0
  %969 = vmatpush1.msra.mxu0 0.0
  %970 = vmatprep.subr.mxu0 0.0
  %971 = vmatpush1.msra.mxu0 0.0
  %972 = vmatprep.subr.mxu0 0.0
  %973 = vmatpush1.msra.mxu0 0.0
  %974 = vmatprep.subr.mxu0 0.0
  %975 = vmatpush1.msra.mxu0 0.0
  %976 = vmatprep.subr.mxu0 0.0
  %977 = vmatpush1.msra.mxu0 0.0
  %978 = vmatprep.subr.mxu0 0.0
  %979 = vmatpush1.msra.mxu0 0.0
  %980 = vmatprep.subr.mxu0 0.0
  %981 = vmatpush1.msra.mxu0 0.0
  %982 = vmatprep.subr.mxu0 0.0
  %983 = vmatpush1.msra.mxu0 0.0
  %984 = vmatprep.subr.mxu0 0.0
  %985 = vmatpush1.msra.mxu0 0.0
  %986 = vmatprep.subr.mxu0 0.0
  %987 = vmatpush1.msra.mxu0 0.0
  %988 = vmatprep.subr.mxu0 0.0
  %989 = vmatpush1.msra.mxu0 0.0
  %990 = vmatprep.subr.mxu0 0.0
  %991 = vmatpush1.msra.mxu0 0.0
  %992 = vmatprep.subr.mxu0 0.0
  %993 = vmatpush1.msra.mxu0 0.0
  %994 = vmatprep.subr.mxu0 0.0
  %995 = vmatpush1.msra.mxu0 0.0
  %996 = vmatprep.subr.mxu0 0.0
  %997 = vmatpush1.msra.mxu0 0.0
  %998 = vmatprep.subr.mxu0 0.0
  %999 = vmatpush1.msra.mxu0 0.0
  %1000 = vmatprep.subr.mxu0 0.0
  %1001 = vmatpush1.msra.mxu0 0.0
  %1002 = vmatprep.subr.mxu0 0.0
  %1003 = vmatpush1.msra.mxu0 0.0
  %1004 = vmatprep.subr.mxu0 0.0
  %1005 = vmatpush1.msra.mxu0 0.0
  %1006 = vmatprep.subr.mxu0 0.0
  %1007 = vmatpush1.msra.mxu0 0.0
  %1008 = vmatprep.subr.mxu0 0.0
  %1009 = vmatpush1.msra.mxu0 0.0
  %1010 = vmatprep.subr.mxu0 0.0
  %1011 = vmatpush1.msra.mxu0 0.0
  %1012 = vmatprep.subr.mxu0 0.0
  %1013 = vmatpush1.msra.mxu0 0.0
  %1014 = vmatprep.subr.mxu0 0.0
  %1015 = vmatpush1.msra.mxu0 0.0
  %1016 = vmatprep.subr.mxu0 0.0
  %1017 = vmatpush1.msra.mxu0 0.0
  %1018 = vmatprep.subr.mxu0 0.0
  %1019 = vmatpush1.msra.mxu0 0.0
  %1020 = vmatprep.subr.mxu0 0.0
  %1021 = vmatpush1.msra.mxu0 0.0
  %1022 = vmatprep.subr.mxu0 0.0
  %1023 = vmatpush1.msra.mxu0 0.0
  %1024 = vmatprep.subr.mxu0 0.0
  %1025 = vmatpush1.msra.mxu0 0.0
  %1026 = vmatprep.mubr.f32.mxu0 0.0
  %1027 = vmatmul.mubr.f32.gmra.mrb[0].mxu0 %v463
  %v1028 = vpop.f32.mrb[0].mxu0
  %v1029 = vadd.f32 %v958, %v1028
  %v1030 = vpop.f32.mrb[0].mxu0
  %v1031 = vadd.f32 %v960, %v1030
  %1032 = vdwg.mxu0
  %v1033 = vmax.f32 %v745, 0.0
  %v1034 = vmax.f32 %v747, 0.0
  %v1035 = vmax.f32 %v1029, 0.0
  %v1036 = vmax.f32 %v1031, 0.0
  %v1037 = vld [vmem:[%s3] sm:$0xff]
  %v1038 = vld [vmem:[%s3 + $0x8] sm:$0xff]
  %v1039 = vld [vmem:[%s3 + $0x10] sm:$0xff]
  %v1040 = vld [vmem:[%s3 + $0x18] sm:$0xff]
  %v1041 = vld [vmem:[%s3 + $0x20] sm:$0xff]
  %v1042 = vld [vmem:[%s3 + $0x28] sm:$0xff]
  %v1043 = vld [vmem:[%s3 + $0x30] sm:$0xff]
  %v1044 = vld [vmem:[%s3 + $0x38] sm:$0xff]
  %v1045 = vld [vmem:[%s3 + $0x40] sm:$0xff]
  %v1046 = vld [vmem:[%s3 + $0x48] sm:$0xff]
  %v1047 = vld [vmem:[%s3 + $0x50] sm:$0xff]
  %v1048 = vld [vmem:[%s3 + $0x58] sm:$0xff]
  %v1049 = vld [vmem:[%s3 + $0x60] sm:$0xff]
  %v1050 = vld [vmem:[%s3 + $0x68] sm:$0xff]
  %v1051 = vld [vmem:[%s3 + $0x70] sm:$0xff]
  %v1052 = vld [vmem:[%s3 + $0x78] sm:$0xff]
  %v1053 = vld [vmem:[%s3 + $0x80] sm:$0xff]
  %v1054 = vld [vmem:[%s3 + $0x88] sm:$0xff]
  %v1055 = vld [vmem:[%s3 + $0x90] sm:$0xff]
  %v1056 = vld [vmem:[%s3 + $0x98] sm:$0xff]
  %v1057 = vld [vmem:[%s3 + $0xa0] sm:$0xff]
  %v1058 = vld [vmem:[%s3 + $0xa8] sm:$0xff]
  %v1059 = vld [vmem:[%s3 + $0xb0] sm:$0xff]
  %v1060 = vld [vmem:[%s3 + $0xb8] sm:$0xff]
  %v1061 = vld [vmem:[%s3 + $0xc0] sm:$0xff]
  %v1062 = vld [vmem:[%s3 + $0xc8] sm:$0xff]
  %v1063 = vld [vmem:[%s3 + $0xd0] sm:$0xff]
  %v1064 = vld [vmem:[%s3 + $0xd8] sm:$0xff]
  %v1065 = vld [vmem:[%s3 + $0xe0] sm:$0xff]
  %v1066 = vld [vmem:[%s3 + $0xe8] sm:$0xff]
  %v1067 = vld [vmem:[%s3 + $0xf0] sm:$0xff]
  %v1068 = vld [vmem:[%s3 + $0xf8] sm:$0xff]
  %v1069 = vld [vmem:[%s3 + $0x100] sm:$0xff]
  %v1070 = vld [vmem:[%s3 + $0x108] sm:$0xff]
  %v1071 = vld [vmem:[%s3 + $0x110] sm:$0xff]
  %v1072 = vld [vmem:[%s3 + $0x118] sm:$0xff]
  %v1073 = vld [vmem:[%s3 + $0x120] sm:$0xff]
  %v1074 = vld [vmem:[%s3 + $0x128] sm:$0xff]
  %v1075 = vld [vmem:[%s3 + $0x130] sm:$0xff]
  %v1076 = vld [vmem:[%s3 + $0x138] sm:$0xff]
  %v1077 = vld [vmem:[%s3 + $0x140] sm:$0xff]
  %v1078 = vld [vmem:[%s3 + $0x148] sm:$0xff]
  %v1079 = vld [vmem:[%s3 + $0x150] sm:$0xff]
  %v1080 = vld [vmem:[%s3 + $0x158] sm:$0xff]
  %v1081 = vld [vmem:[%s3 + $0x160] sm:$0xff]
  %v1082 = vld [vmem:[%s3 + $0x168] sm:$0xff]
  %v1083 = vld [vmem:[%s3 + $0x170] sm:$0xff]
  %v1084 = vld [vmem:[%s3 + $0x178] sm:$0xff]
  %v1085 = vld [vmem:[%s3 + $0x180] sm:$0xff]
  %v1086 = vld [vmem:[%s3 + $0x188] sm:$0xff]
  %v1087 = vld [vmem:[%s10 + $0x4] sm:$0x1]
  %v1089 = vlaneseq
  %v1090 = vshrl.u32 %v1089, 7
  %v1091 = vsub.s32 0, %v1090
  %v1092 = vrot.slane %v1087, %v1091
  %v1095 = vsel %vm461, %v1036, 0
  %1097 = vmatprep.subr.mxu0 0.0
  %1098 = vmatpush1.msra.mxu0 %v1037
  %1099 = vmatprep.subr.mxu0 0.0
  %1100 = vmatpush1.msra.mxu0 %v1038
  %1101 = vmatprep.subr.mxu0 0.0
  %1102 = vmatpush1.msra.mxu0 %v1039
  %1103 = vmatprep.subr.mxu0 0.0
  %1104 = vmatpush1.msra.mxu0 %v1040
  %1105 = vmatprep.subr.mxu0 0.0
  %1106 = vmatpush1.msra.mxu0 %v1041
  %1107 = vmatprep.subr.mxu0 0.0
  %1108 = vmatpush1.msra.mxu0 %v1042
  %1109 = vmatprep.subr.mxu0 0.0
  %1110 = vmatpush1.msra.mxu0 %v1043
  %1111 = vmatprep.subr.mxu0 0.0
  %1112 = vmatpush1.msra.mxu0 %v1044
  %1113 = vmatprep.subr.mxu0 0.0
  %1114 = vmatpush1.msra.mxu0 %v1045
  %1115 = vmatprep.subr.mxu0 0.0
  %1116 = vmatpush1.msra.mxu0 %v1046
  %1117 = vmatprep.subr.mxu0 0.0
  %1118 = vmatpush1.msra.mxu0 %v1047
  %1119 = vmatprep.subr.mxu0 0.0
  %1120 = vmatpush1.msra.mxu0 %v1048
  %1121 = vmatprep.subr.mxu0 0.0
  %1122 = vmatpush1.msra.mxu0 %v1049
  %1123 = vmatprep.subr.mxu0 0.0
  %1124 = vmatpush1.msra.mxu0 %v1050
  %1125 = vmatprep.subr.mxu0 0.0
  %1126 = vmatpush1.msra.mxu0 %v1051
  %1127 = vmatprep.subr.mxu0 0.0
  %1128 = vmatpush1.msra.mxu0 %v1052
  %1129 = vmatprep.subr.mxu0 0.0
  %1130 = vmatpush1.msra.mxu0 %v1053
  %1131 = vmatprep.subr.mxu0 0.0
  %1132 = vmatpush1.msra.mxu0 %v1054
  %1133 = vmatprep.subr.mxu0 0.0
  %1134 = vmatpush1.msra.mxu0 %v1055
  %1135 = vmatprep.subr.mxu0 0.0
  %1136 = vmatpush1.msra.mxu0 %v1056
  %1137 = vmatprep.subr.mxu0 0.0
  %1138 = vmatpush1.msra.mxu0 %v1057
  %1139 = vmatprep.subr.mxu0 0.0
  %1140 = vmatpush1.msra.mxu0 %v1058
  %1141 = vmatprep.subr.mxu0 0.0
  %1142 = vmatpush1.msra.mxu0 %v1059
  %1143 = vmatprep.subr.mxu0 0.0
  %1144 = vmatpush1.msra.mxu0 %v1060
  %1145 = vmatprep.subr.mxu0 0.0
  %1146 = vmatpush1.msra.mxu0 %v1061
  %1147 = vmatprep.subr.mxu0 0.0
  %1148 = vmatpush1.msra.mxu0 %v1062
  %1149 = vmatprep.subr.mxu0 0.0
  %1150 = vmatpush1.msra.mxu0 %v1063
  %1151 = vmatprep.subr.mxu0 0.0
  %1152 = vmatpush1.msra.mxu0 %v1064
  %1153 = vmatprep.subr.mxu0 0.0
  %1154 = vmatpush1.msra.mxu0 %v1065
  %1155 = vmatprep.subr.mxu0 0.0
  %1156 = vmatpush1.msra.mxu0 %v1066
  %1157 = vmatprep.subr.mxu0 0.0
  %1158 = vmatpush1.msra.mxu0 %v1067
  %1159 = vmatprep.subr.mxu0 0.0
  %1160 = vmatpush1.msra.mxu0 %v1068
  %1161 = vmatprep.mubr.f32.mxu0 %v1034
  %1162 = vmatmul.mubr.f32.gmra.mrb[0].mxu0 %v1033
  %v1163 = vpop.f32.mrb[0].mxu0
  %v1164 = vadd.f32 %v1092, %v1163
  %v1165 = vpop.f32.mrb[0].mxu0
  %1166 = vdwg.mxu0
  %1167 = vmatprep.subr.mxu0 0.0
  %1168 = vmatpush1.msra.mxu0 %v1069
  %1169 = vmatprep.subr.mxu0 0.0
  %1170 = vmatpush1.msra.mxu0 %v1070
  %1171 = vmatprep.subr.mxu0 0.0
  %1172 = vmatpush1.msra.mxu0 %v1071
  %1173 = vmatprep.subr.mxu0 0.0
  %1174 = vmatpush1.msra.mxu0 %v1072
  %1175 = vmatprep.subr.mxu0 0.0
  %1176 = vmatpush1.msra.mxu0 %v1073
  %1177 = vmatprep.subr.mxu0 0.0
  %1178 = vmatpush1.msra.mxu0 %v1074
  %1179 = vmatprep.subr.mxu0 0.0
  %1180 = vmatpush1.msra.mxu0 %v1075
  %1181 = vmatprep.subr.mxu0 0.0
  %1182 = vmatpush1.msra.mxu0 %v1076
  %1183 = vmatprep.subr.mxu0 0.0
  %1184 = vmatpush1.msra.mxu0 %v1077
  %1185 = vmatprep.subr.mxu0 0.0
  %1186 = vmatpush1.msra.mxu0 %v1078
  %1187 = vmatprep.subr.mxu0 0.0
  %1188 = vmatpush1.msra.mxu0 %v1079
  %1189 = vmatprep.subr.mxu0 0.0
  %1190 = vmatpush1.msra.mxu0 %v1080
  %1191 = vmatprep.subr.mxu0 0.0
  %1192 = vmatpush1.msra.mxu0 %v1081
  %1193 = vmatprep.subr.mxu0 0.0
  %1194 = vmatpush1.msra.mxu0 %v1082
  %1195 = vmatprep.subr.mxu0 0.0
  %1196 = vmatpush1.msra.mxu0 %v1083
  %1197 = vmatprep.subr.mxu0 0.0
  %1198 = vmatpush1.msra.mxu0 %v1084
  %1199 = vmatprep.subr.mxu0 0.0
  %1200 = vmatpush1.msra.mxu0 %v1085
  %1201 = vmatprep.subr.mxu0 0.0
  %1202 = vmatpush1.msra.mxu0 %v1086
  %1203 = vmatprep.subr.mxu0 0.0
  %1204 = vmatpush1.msra.mxu0 0.0
  %1205 = vmatprep.subr.mxu0 0.0
  %1206 = vmatpush1.msra.mxu0 0.0
  %1207 = vmatprep.subr.mxu0 0.0
  %1208 = vmatpush1.msra.mxu0 0.0
  %1209 = vmatprep.subr.mxu0 0.0
  %1210 = vmatpush1.msra.mxu0 0.0
  %1211 = vmatprep.subr.mxu0 0.0
  %1212 = vmatpush1.msra.mxu0 0.0
  %1213 = vmatprep.subr.mxu0 0.0
  %1214 = vmatpush1.msra.mxu0 0.0
  %1215 = vmatprep.subr.mxu0 0.0
  %1216 = vmatpush1.msra.mxu0 0.0
  %1217 = vmatprep.subr.mxu0 0.0
  %1218 = vmatpush1.msra.mxu0 0.0
  %1219 = vmatprep.subr.mxu0 0.0
  %1220 = vmatpush1.msra.mxu0 0.0
  %1221 = vmatprep.subr.mxu0 0.0
  %1222 = vmatpush1.msra.mxu0 0.0
  %1223 = vmatprep.subr.mxu0 0.0
  %1224 = vmatpush1.msra.mxu0 0.0
  %1225 = vmatprep.subr.mxu0 0.0
  %1226 = vmatpush1.msra.mxu0 0.0
  %1227 = vmatprep.subr.mxu0 0.0
  %1228 = vmatpush1.msra.mxu0 0.0
  %1229 = vmatprep.subr.mxu0 0.0
  %1230 = vmatpush1.msra.mxu0 0.0
  %1231 = vmatprep.mubr.f32.mxu0 %v1095
  %1232 = vmatmul.mubr.f32.gmra.mrb[0].mxu0 %v1035
  %v1233 = vpop.f32.mrb[0].mxu0
  %v1234 = vadd.f32 %v1164, %v1233
  %v1235 = vpop.f32.mrb[0].mxu0
  %1236 = vdwg.mxu0
  %v1237 = vtanh.pop %v1234
  %v1238 = vmul.f32 %v1237, 0.5
  %v1239 = vmul.f32 %v1238, 1.442695
  %v1240 = vpow.pop %v1239
  %v1241 = vmul.f32 %v1240, %v1240
  %v1242 = vld [vmem:[%s1] sm:$0xff]
  %1244 = vrot.lane.b32.xlu0 %v1240, 116
  %v1245 = vpop.permute.xlu0 %1244
  %v1247 = vmul.f32 %v1242, %v1245
  %v1248 = vadd.f32 %v1234, %v1247
  %v1249 = vld [vmem:[%s4] sm:$0xff]
  %v1250 = vld [vmem:[%s4 + $0x8] sm:$0xff]
  %v1251 = vld [vmem:[%s4 + $0x10] sm:$0xf]
  %v1252 = vld [vmem:[%s4 + $0x18] sm:$0xf]
  %v1253 = vld [vmem:[%s10 + $0x5] sm:$0x3]
  %v1255 = vlaneseq
  %v1256 = vshrl.u32 %v1255, 7
  %v1257 = vsub.s32 0, %v1256
  %v1258 = vrot.slane %v1253, %v1257
  %v1259 = vlaneseq
  %v1260 = vshrl.u32 %v1259, 7
  %v1261 = vsub.s32 1, %v1260
  %v1262 = vrot.slane %v1253, %v1261
  %vm1265 = vcmask 97280
  %v1267 = vsel %vm1265, %v1248, 0
  %vm1269 = vcmask 1043456
  %v1271 = vsel %vm1269, %v1251, 0
  %v1274 = vsel %vm1269, %v1252, 0
  %1276 = vmatprep.subr.mxu0 %v1250
  %1277 = vmatpush1.msra.mxu0 %v1249
  %1278 = vmatprep.subr.mxu0 %v1274
  %1279 = vmatpush1.msra.mxu0 %v1271
  %1280 = vmatprep.subr.mxu0 0.0
  %1281 = vmatpush1.msra.mxu0 0.0
  %1282 = vmatprep.subr.mxu0 0.0
  %1283 = vmatpush1.msra.mxu0 0.0
  %1284 = vmatprep.subr.mxu0 0.0
  %1285 = vmatpush1.msra.mxu0 0.0
  %1286 = vmatprep.subr.mxu0 0.0
  %1287 = vmatpush1.msra.mxu0 0.0
  %1288 = vmatprep.subr.mxu0 0.0
  %1289 = vmatpush1.msra.mxu0 0.0
  %1290 = vmatprep.subr.mxu0 0.0
  %1291 = vmatpush1.msra.mxu0 0.0
  %1292 = vmatprep.subr.mxu0 0.0
  %1293 = vmatpush1.msra.mxu0 0.0
  %1294 = vmatprep.subr.mxu0 0.0
  %1295 = vmatpush1.msra.mxu0 0.0
  %1296 = vmatprep.subr.mxu0 0.0
  %1297 = vmatpush1.msra.mxu0 0.0
  %1298 = vmatprep.subr.mxu0 0.0
  %1299 = vmatpush1.msra.mxu0 0.0
  %1300 = vmatprep.subr.mxu0 0.0
  %1301 = vmatpush1.msra.mxu0 0.0
  %1302 = vmatprep.subr.mxu0 0.0
  %1303 = vmatpush1.msra.mxu0 0.0
  %1304 = vmatprep.subr.mxu0 0.0
  %1305 = vmatpush1.msra.mxu0 0.0
  %1306 = vmatprep.subr.mxu0 0.0
  %1307 = vmatpush1.msra.mxu0 0.0
  %1308 = vmatprep.subr.mxu0 0.0
  %1309 = vmatpush1.msra.mxu0 0.0
  %1310 = vmatprep.subr.mxu0 0.0
  %1311 = vmatpush1.msra.mxu0 0.0
  %1312 = vmatprep.subr.mxu0 0.0
  %1313 = vmatpush1.msra.mxu0 0.0
  %1314 = vmatprep.subr.mxu0 0.0
  %1315 = vmatpush1.msra.mxu0 0.0
  %1316 = vmatprep.subr.mxu0 0.0
  %1317 = vmatpush1.msra.mxu0 0.0
  %1318 = vmatprep.subr.mxu0 0.0
  %1319 = vmatpush1.msra.mxu0 0.0
  %1320 = vmatprep.subr.mxu0 0.0
  %1321 = vmatpush1.msra.mxu0 0.0
  %1322 = vmatprep.subr.mxu0 0.0
  %1323 = vmatpush1.msra.mxu0 0.0
  %1324 = vmatprep.subr.mxu0 0.0
  %1325 = vmatpush1.msra.mxu0 0.0
  %1326 = vmatprep.subr.mxu0 0.0
  %1327 = vmatpush1.msra.mxu0 0.0
  %1328 = vmatprep.subr.mxu0 0.0
  %1329 = vmatpush1.msra.mxu0 0.0
  %1330 = vmatprep.subr.mxu0 0.0
  %1331 = vmatpush1.msra.mxu0 0.0
  %1332 = vmatprep.subr.mxu0 0.0
  %1333 = vmatpush1.msra.mxu0 0.0
  %1334 = vmatprep.subr.mxu0 0.0
  %1335 = vmatpush1.msra.mxu0 0.0
  %1336 = vmatprep.subr.mxu0 0.0
  %1337 = vmatpush1.msra.mxu0 0.0
  %1338 = vmatprep.subr.mxu0 0.0
  %1339 = vmatpush1.msra.mxu0 0.0
  %1340 = vmatprep.mubr.f32.mxu0 0.0
  %1341 = vmatmul.mubr.f32.gmra.mrb[0].mxu0 %v1267
  %v1342 = vpop.f32.mrb[0].mxu0
  %v1343 = vadd.f32 %v1258, %v1342
  %v1344 = vpop.f32.mrb[0].mxu0
  %v1345 = vadd.f32 %v1262, %v1344
  %1346 = vdwg.mxu0
  %v1347 = vtanh.pop %v1343
  %v1348 = vtanh.pop %v1345
  %v1349 = vld [vmem:[%s5] sm:$0xff]
  %v1350 = vld [vmem:[%s5 + $0x8] sm:$0xff]
  %v1351 = vld [vmem:[%s5 + $0x10] sm:$0xff]
  %v1352 = vld [vmem:[%s5 + $0x18] sm:$0xff]
  %v1353 = vld [vmem:[%s5 + $0x20] sm:$0xff]
  %v1354 = vld [vmem:[%s5 + $0x28] sm:$0xff]
  %v1355 = vld [vmem:[%s5 + $0x30] sm:$0xff]
  %v1356 = vld [vmem:[%s5 + $0x38] sm:$0xff]
  %v1357 = vld [vmem:[%s5 + $0x40] sm:$0xff]
  %v1358 = vld [vmem:[%s5 + $0x48] sm:$0xff]
  %v1359 = vld [vmem:[%s5 + $0x50] sm:$0xff]
  %v1360 = vld [vmem:[%s5 + $0x58] sm:$0xff]
  %v1361 = vld [vmem:[%s5 + $0x60] sm:$0xff]
  %v1362 = vld [vmem:[%s5 + $0x68] sm:$0xff]
  %v1363 = vld [vmem:[%s5 + $0x70] sm:$0xff]
  %v1364 = vld [vmem:[%s5 + $0x78] sm:$0xff]
  %v1365 = vld [vmem:[%s5 + $0x80] sm:$0xff]
  %v1366 = vld [vmem:[%s5 + $0x88] sm:$0xff]
  %v1367 = vld [vmem:[%s5 + $0x90] sm:$0xff]
  %v1368 = vld [vmem:[%s5 + $0x98] sm:$0xff]
  %v1369 = vld [vmem:[%s5 + $0xa0] sm:$0xff]
  %v1370 = vld [vmem:[%s5 + $0xa8] sm:$0xff]
  %v1371 = vld [vmem:[%s5 + $0xb0] sm:$0xff]
  %v1372 = vld [vmem:[%s5 + $0xb8] sm:$0xff]
  %v1373 = vld [vmem:[%s5 + $0xc0] sm:$0xff]
  %v1374 = vld [vmem:[%s5 + $0xc8] sm:$0xff]
  %v1375 = vld [vmem:[%s5 + $0xd0] sm:$0xff]
  %v1376 = vld [vmem:[%s5 + $0xd8] sm:$0xff]
  %v1377 = vld [vmem:[%s5 + $0xe0] sm:$0xff]
  %v1378 = vld [vmem:[%s5 + $0xe8] sm:$0xff]
  %v1379 = vld [vmem:[%s5 + $0xf0] sm:$0xff]
  %v1380 = vld [vmem:[%s5 + $0xf8] sm:$0xff]
  %v1381 = vld [vmem:[%s10 + $0x7] sm:$0x1]
  %v1383 = vlaneseq
  %v1384 = vshrl.u32 %v1383, 7
  %v1385 = vsub.s32 0, %v1384
  %v1386 = vrot.slane %v1381, %v1385
  %1388 = vmatprep.subr.mxu0 0.0
  %1389 = vmatpush1.msra.mxu0 %v1349
  %1390 = vmatprep.subr.mxu0 0.0
  %1391 = vmatpush1.msra.mxu0 %v1350
  %1392 = vmatprep.subr.mxu0 0.0
  %1393 = vmatpush1.msra.mxu0 %v1351
  %1394 = vmatprep.subr.mxu0 0.0
  %1395 = vmatpush1.msra.mxu0 %v1352
  %1396 = vmatprep.subr.mxu0 0.0
  %1397 = vmatpush1.msra.mxu0 %v1353
  %1398 = vmatprep.subr.mxu0 0.0
  %1399 = vmatpush1.msra.mxu0 %v1354
  %1400 = vmatprep.subr.mxu0 0.0
  %1401 = vmatpush1.msra.mxu0 %v1355
  %1402 = vmatprep.subr.mxu0 0.0
  %1403 = vmatpush1.msra.mxu0 %v1356
  %1404 = vmatprep.subr.mxu0 0.0
  %1405 = vmatpush1.msra.mxu0 %v1357
  %1406 = vmatprep.subr.mxu0 0.0
  %1407 = vmatpush1.msra.mxu0 %v1358
  %1408 = vmatprep.subr.mxu0 0.0
  %1409 = vmatpush1.msra.mxu0 %v1359
  %1410 = vmatprep.subr.mxu0 0.0
  %1411 = vmatpush1.msra.mxu0 %v1360
  %1412 = vmatprep.subr.mxu0 0.0
  %1413 = vmatpush1.msra.mxu0 %v1361
  %1414 = vmatprep.subr.mxu0 0.0
  %1415 = vmatpush1.msra.mxu0 %v1362
  %1416 = vmatprep.subr.mxu0 0.0
  %1417 = vmatpush1.msra.mxu0 %v1363
  %1418 = vmatprep.subr.mxu0 0.0
  %1419 = vmatpush1.msra.mxu0 %v1364
  %1420 = vmatprep.subr.mxu0 0.0
  %1421 = vmatpush1.msra.mxu0 %v1365
  %1422 = vmatprep.subr.mxu0 0.0
  %1423 = vmatpush1.msra.mxu0 %v1366
  %1424 = vmatprep.subr.mxu0 0.0
  %1425 = vmatpush1.msra.mxu0 %v1367
  %1426 = vmatprep.subr.mxu0 0.0
  %1427 = vmatpush1.msra.mxu0 %v1368
  %1428 = vmatprep.subr.mxu0 0.0
  %1429 = vmatpush1.msra.mxu0 %v1369
  %1430 = vmatprep.subr.mxu0 0.0
  %1431 = vmatpush1.msra.mxu0 %v1370
  %1432 = vmatprep.subr.mxu0 0.0
  %1433 = vmatpush1.msra.mxu0 %v1371
  %1434 = vmatprep.subr.mxu0 0.0
  %1435 = vmatpush1.msra.mxu0 %v1372
  %1436 = vmatprep.subr.mxu0 0.0
  %1437 = vmatpush1.msra.mxu0 %v1373
  %1438 = vmatprep.subr.mxu0 0.0
  %1439 = vmatpush1.msra.mxu0 %v1374
  %1440 = vmatprep.subr.mxu0 0.0
  %1441 = vmatpush1.msra.mxu0 %v1375
  %1442 = vmatprep.subr.mxu0 0.0
  %1443 = vmatpush1.msra.mxu0 %v1376
  %1444 = vmatprep.subr.mxu0 0.0
  %1445 = vmatpush1.msra.mxu0 %v1377
  %1446 = vmatprep.subr.mxu0 0.0
  %1447 = vmatpush1.msra.mxu0 %v1378
  %1448 = vmatprep.subr.mxu0 0.0
  %1449 = vmatpush1.msra.mxu0 %v1379
  %1450 = vmatprep.subr.mxu0 0.0
  %1451 = vmatpush1.msra.mxu0 %v1380
  %1452 = vmatprep.mubr.f32.mxu0 %v1348
  %1453 = vmatmul.mubr.f32.gmra.mrb[0].mxu0 %v1347
  %v1454 = vpop.f32.mrb[0].mxu0
  %v1455 = vadd.f32 %v1386, %v1454
  %v1456 = vpop.f32.mrb[0].mxu0
  %1457 = vdwg.mxu0
  %vm1458 = vcmask 23552
  %v1459 = vsel %vm1458, %v1455, -inf
  %1460 = vmax.xlane.f32.xlu0 %v1459
  %v1461 = vpop.xlane.xlu0 %1460
  %v1462 = vsub.f32 %v1455, %v1461
  %v1463 = vmul.f32 %v1462, 1.442695
  %v1464 = vpow.pop %v1463
  %v1465 = vsel %vm1458, %v1464, 0.0
  %1466 = vadd.xlane.f32.xlu0 %v1465
  %v1467 = vpop.xlane.xlu0 %1466
  %v1468 = vrcp.pop %v1467
  %v1469 = vmul.f32 %v1464, %v1468
  %v1470 = vadd.f32 %v1469, 1e-20
  %v1471 = vld [vmem:[%s6] sm:$0xff]
  %v1472 = vld [vmem:[%s6 + $0x8] sm:$0xff]
  %v1473 = vld [vmem:[%s6 + $0x10] sm:$0xff]
  %v1474 = vld [vmem:[%s10 + $0x8] sm:$0x3f]
  %v1476 = vlaneseq
  %v1477 = vshrl.u32 %v1476, 7
  %v1478 = vsub.s32 0, %v1477
  %v1479 = vrot.slane %v1474, %v1478
  %v1480 = vlaneseq
  %v1481 = vshrl.u32 %v1480, 7
  %v1482 = vsub.s32 1, %v1481
  %v1483 = vrot.slane %v1474, %v1482
  %v1484 = vlaneseq
  %v1485 = vshrl.u32 %v1484, 7
  %v1486 = vsub.s32 2, %v1485
  %v1487 = vrot.slane %v1474, %v1486
  %v1488 = vlaneseq
  %v1489 = vshrl.u32 %v1488, 7
  %v1490 = vsub.s32 3, %v1489
  %v1491 = vrot.slane %v1474, %v1490
  %v1492 = vlaneseq
  %v1493 = vshrl.u32 %v1492, 7
  %v1494 = vsub.s32 4, %v1493
  %v1495 = vrot.slane %v1474, %v1494
  %v1496 = vlaneseq
  %v1497 = vshrl.u32 %v1496, 7
  %v1498 = vsub.s32 5, %v1497
  %v1499 = vrot.slane %v1474, %v1498
  %1506 = vrot.lane.b32.xlu0 %v1248, 120
  %v1507 = vpop.permute.xlu0 %1506
  %v1511 = vcombine.high %v1471, %v1471
  %v1512 = vcombine.high %v1472, %v1472
  %v1513 = vcombine.high %v1473, %v1473
  %vm1514 = vcmask 31744
  %v1515 = vsel %vm1514, %v1507, 0
  %v1517 = vsel %vm1269, %v1471, 0
  %v1519 = vsel %vm1269, %v1511, 0
  %v1521 = vsel %vm1269, %v1472, 0
  %v1523 = vsel %vm1269, %v1512, 0
  %v1525 = vsel %vm1269, %v1473, 0
  %v1527 = vsel %vm1269, %v1513, 0
  %1529 = vmatprep.subr.mxu0 %v1519
  %1530 = vmatpush1.msra.mxu0 %v1517
  %1531 = vmatprep.subr.mxu0 0.0
  %1532 = vmatpush1.msra.mxu0 0.0
  %1533 = vmatprep.subr.mxu0 0.0
  %1534 = vmatpush1.msra.mxu0 0.0
  %1535 = vmatprep.subr.mxu0 0.0
  %1536 = vmatpush1.msra.mxu0 0.0
  %1537 = vmatprep.subr.mxu0 0.0
  %1538 = vmatpush1.msra.mxu0 0.0
  %1539 = vmatprep.subr.mxu0 0.0
  %1540 = vmatpush1.msra.mxu0 0.0
  %1541 = vmatprep.subr.mxu0 0.0
  %1542 = vmatpush1.msra.mxu0 0.0
  %1543 = vmatprep.subr.mxu0 0.0
  %1544 = vmatpush1.msra.mxu0 0.0
  %1545 = vmatprep.subr.mxu0 0.0
  %1546 = vmatpush1.msra.mxu0 0.0
  %1547 = vmatprep.subr.mxu0 0.0
  %1548 = vmatpush1.msra.mxu0 0.0
  %1549 = vmatprep.subr.mxu0 0.0
  %1550 = vmatpush1.msra.mxu0 0.0
  %1551 = vmatprep.subr.mxu0 0.0
  %1552 = vmatpush1.msra.mxu0 0.0
  %1553 = vmatprep.subr.mxu0 0.0
  %1554 = vmatpush1.msra.mxu0 0.0
  %1555 = vmatprep.subr.mxu0 0.0
  %1556 = vmatpush1.msra.mxu0 0.0
  %1557 = vmatprep.subr.mxu0 0.0
  %1558 = vmatpush1.msra.mxu0 0.0
  %1559 = vmatprep.subr.mxu0 0.0
  %1560 = vmatpush1.msra.mxu0 0.0
  %1561 = vmatprep.subr.mxu0 0.0
  %1562 = vmatpush1.msra.mxu0 0.0
  %1563 = vmatprep.subr.mxu0 0.0
  %1564 = vmatpush1.msra.mxu0 0.0
  %1565 = vmatprep.subr.mxu0 0.0
  %1566 = vmatpush1.msra.mxu0 0.0
  %1567 = vmatprep.subr.mxu0 0.0
  %1568 = vmatpush1.msra.mxu0 0.0
  %1569 = vmatprep.subr.mxu0 0.0
  %1570 = vmatpush1.msra.mxu0 0.0
  %1571 = vmatprep.subr.mxu0 0.0
  %1572 = vmatpush1.msra.mxu0 0.0
  %1573 = vmatprep.subr.mxu0 0.0
  %1574 = vmatpush1.msra.mxu0 0.0
  %1575 = vmatprep.subr.mxu0 0.0
  %1576 = vmatpush1.msra.mxu0 0.0
  %1577 = vmatprep.subr.mxu0 0.0
  %1578 = vmatpush1.msra.mxu0 0.0
  %1579 = vmatprep.subr.mxu0 0.0
  %1580 = vmatpush1.msra.mxu0 0.0
  %1581 = vmatprep.subr.mxu0 0.0
  %1582 = vmatpush1.msra.mxu0 0.0
  %1583 = vmatprep.subr.mxu0 0.0
  %1584 = vmatpush1.msra.mxu0 0.0
  %1585 = vmatprep.subr.mxu0 0.0
  %1586 = vmatpush1.msra.mxu0 0.0
  %1587 = vmatprep.subr.mxu0 0.0
  %1588 = vmatpush1.msra.mxu0 0.0
  %1589 = vmatprep.subr.mxu0 0.0
  %1590 = vmatpush1.msra.mxu0 0.0
  %1591 = vmatprep.subr.mxu0 0.0
  %1592 = vmatpush1.msra.mxu0 0.0
  %1593 = vmatprep.mubr.f32.mxu0 0.0
  %1594 = vmatmul.mubr.f32.gmra.mrb[0].mxu0 %v1515
  %v1595 = vpop.f32.mrb[0].mxu0
  %v1596 = vadd.f32 %v1479, %v1595
  %v1597 = vpop.f32.mrb[0].mxu0
  %v1598 = vadd.f32 %v1483, %v1597
  %1599 = vdwg.mxu0
  %1600 = vmatprep.subr.mxu0 %v1523
  %1601 = vmatpush1.msra.mxu0 %v1521
  %1602 = vmatprep.subr.mxu0 0.0
  %1603 = vmatpush1.msra.mxu0 0.0
  %1604 = vmatprep.subr.mxu0 0.0
  %1605 = vmatpush1.msra.mxu0 0.0
  %1606 = vmatprep.subr.mxu0 0.0
  %1607 = vmatpush1.msra.mxu0 0.0
  %1608 = vmatprep.subr.mxu0 0.0
  %1609 = vmatpush1.msra.mxu0 0.0
  %1610 = vmatprep.subr.mxu0 0.0
  %1611 = vmatpush1.msra.mxu0 0.0
  %1612 = vmatprep.subr.mxu0 0.0
  %1613 = vmatpush1.msra.mxu0 0.0
  %1614 = vmatprep.subr.mxu0 0.0
  %1615 = vmatpush1.msra.mxu0 0.0
  %1616 = vmatprep.subr.mxu0 0.0
  %1617 = vmatpush1.msra.mxu0 0.0
  %1618 = vmatprep.subr.mxu0 0.0
  %1619 = vmatpush1.msra.mxu0 0.0
  %1620 = vmatprep.subr.mxu0 0.0
  %1621 = vmatpush1.msra.mxu0 0.0
  %1622 = vmatprep.subr.mxu0 0.0
  %1623 = vmatpush1.msra.mxu0 0.0
  %1624 = vmatprep.subr.mxu0 0.0
  %1625 = vmatpush1.msra.mxu0 0.0
  %1626 = vmatprep.subr.mxu0 0.0
  %1627 = vmatpush1.msra.mxu0 0.0
  %1628 = vmatprep.subr.mxu0 0.0
  %1629 = vmatpush1.msra.mxu0 0.0
  %1630 = vmatprep.subr.mxu0 0.0
  %1631 = vmatpush1.msra.mxu0 0.0
  %1632 = vmatprep.subr.mxu0 0.0
  %1633 = vmatpush1.msra.mxu0 0.0
  %1634 = vmatprep.subr.mxu0 0.0
  %1635 = vmatpush1.msra.mxu0 0.0
  %1636 = vmatprep.subr.mxu0 0.0
  %1637 = vmatpush1.msra.mxu0 0.0
  %1638 = vmatprep.subr.mxu0 0.0
  %1639 = vmatpush1.msra.mxu0 0.0
  %1640 = vmatprep.subr.mxu0 0.0
  %1641 = vmatpush1.msra.mxu0 0.0
  %1642 = vmatprep.subr.mxu0 0.0
  %1643 = vmatpush1.msra.mxu0 0.0
  %1644 = vmatprep.subr.mxu0 0.0
  %1645 = vmatpush1.msra.mxu0 0.0
  %1646 = vmatprep.subr.mxu0 0.0
  %1647 = vmatpush1.msra.mxu0 0.0
  %1648 = vmatprep.subr.mxu0 0.0
  %1649 = vmatpush1.msra.mxu0 0.0
  %1650 = vmatprep.subr.mxu0 0.0
  %1651 = vmatpush1.msra.mxu0 0.0
  %1652 = vmatprep.subr.mxu0 0.0
  %1653 = vmatpush1.msra.mxu0 0.0
  %1654 = vmatprep.subr.mxu0 0.0
  %1655 = vmatpush1.msra.mxu0 0.0
  %1656 = vmatprep.subr.mxu0 0.0
  %1657 = vmatpush1.msra.mxu0 0.0
  %1658 = vmatprep.subr.mxu0 0.0
  %1659 = vmatpush1.msra.mxu0 0.0
  %1660 = vmatprep.subr.mxu0 0.0
  %1661 = vmatpush1.msra.mxu0 0.0
  %1662 = vmatprep.subr.mxu0 0.0
  %1663 = vmatpush1.msra.mxu0 0.0
  %1664 = vmatprep.mubr.f32.mxu0 0.0
  %1665 = vmatmul.mubr.f32.gmra.mrb[0].mxu0 %v1515
  %v1666 = vpop.f32.mrb[0].mxu0
  %v1667 = vadd.f32 %v1487, %v1666
  %v1668 = vpop.f32.mrb[0].mxu0
  %v1669 = vadd.f32 %v1491, %v1668
  %1670 = vdwg.mxu0
  %1671 = vmatprep.subr.mxu0 %v1527
  %1672 = vmatpush1.msra.mxu0 %v1525
  %1673 = vmatprep.subr.mxu0 0.0
  %1674 = vmatpush1.msra.mxu0 0.0
  %1675 = vmatprep.subr.mxu0 0.0
  %1676 = vmatpush1.msra.mxu0 0.0
  %1677 = vmatprep.subr.mxu0 0.0
  %1678 = vmatpush1.msra.mxu0 0.0
  %1679 = vmatprep.subr.mxu0 0.0
  %1680 = vmatpush1.msra.mxu0 0.0
  %1681 = vmatprep.subr.mxu0 0.0
  %1682 = vmatpush1.msra.mxu0 0.0
  %1683 = vmatprep.subr.mxu0 0.0
  %1684 = vmatpush1.msra.mxu0 0.0
  %1685 = vmatprep.subr.mxu0 0.0
  %1686 = vmatpush1.msra.mxu0 0.0
  %1687 = vmatprep.subr.mxu0 0.0
  %1688 = vmatpush1.msra.mxu0 0.0
  %1689 = vmatprep.subr.mxu0 0.0
  %1690 = vmatpush1.msra.mxu0 0.0
  %1691 = vmatprep.subr.mxu0 0.0
  %1692 = vmatpush1.msra.mxu0 0.0
  %1693 = vmatprep.subr.mxu0 0.0
  %1694 = vmatpush1.msra.mxu0 0.0
  %1695 = vmatprep.subr.mxu0 0.0
  %1696 = vmatpush1.msra.mxu0 0.0
  %1697 = vmatprep.subr.mxu0 0.0
  %1698 = vmatpush1.msra.mxu0 0.0
  %1699 = vmatprep.subr.mxu0 0.0
  %1700 = vmatpush1.msra.mxu0 0.0
  %1701 = vmatprep.subr.mxu0 0.0
  %1702 = vmatpush1.msra.mxu0 0.0
  %1703 = vmatprep.subr.mxu0 0.0
  %1704 = vmatpush1.msra.mxu0 0.0
  %1705 = vmatprep.subr.mxu0 0.0
  %1706 = vmatpush1.msra.mxu0 0.0
  %1707 = vmatprep.subr.mxu0 0.0
  %1708 = vmatpush1.msra.mxu0 0.0
  %1709 = vmatprep.subr.mxu0 0.0
  %1710 = vmatpush1.msra.mxu0 0.0
  %1711 = vmatprep.subr.mxu0 0.0
  %1712 = vmatpush1.msra.mxu0 0.0
  %1713 = vmatprep.subr.mxu0 0.0
  %1714 = vmatpush1.msra.mxu0 0.0
  %1715 = vmatprep.subr.mxu0 0.0
  %1716 = vmatpush1.msra.mxu0 0.0
  %1717 = vmatprep.subr.mxu0 0.0
  %1718 = vmatpush1.msra.mxu0 0.0
  %1719 = vmatprep.subr.mxu0 0.0
  %1720 = vmatpush1.msra.mxu0 0.0
  %1721 = vmatprep.subr.mxu0 0.0
  %1722 = vmatpush1.msra.mxu0 0.0
  %1723 = vmatprep.subr.mxu0 0.0
  %1724 = vmatpush1.msra.mxu0 0.0
  %1725 = vmatprep.subr.mxu0 0.0
  %1726 = vmatpush1.msra.mxu0 0.0
  %1727 = vmatprep.subr.mxu0 0.0
  %1728 = vmatpush1.msra.mxu0 0.0
  %1729 = vmatprep.subr.mxu0 0.0
  %1730 = vmatpush1.msra.mxu0 0.0
  %1731 = vmatprep.subr.mxu0 0.0
  %1732 = vmatpush1.msra.mxu0 0.0
  %1733 = vmatprep.subr.mxu0 0.0
  %1734 = vmatpush1.msra.mxu0 0.0
  %1735 = vmatprep.mubr.f32.mxu0 0.0
  %1736 = vmatmul.mubr.f32.gmra.mrb[0].mxu0 %v1515
  %v1737 = vpop.f32.mrb[0].mxu0
  %v1738 = vadd.f32 %v1495, %v1737
  %v1739 = vpop.f32.mrb[0].mxu0
  %v1740 = vadd.f32 %v1499, %v1739
  %1741 = vdwg.mxu0
  %v1742 = vmax.f32 %v1596, 0.0
  %v1743 = vmax.f32 %v1598, 0.0
  %v1744 = vmax.f32 %v1667, 0.0
  %v1745 = vmax.f32 %v1669, 0.0
  %v1746 = vmax.f32 %v1738, 0.0
  %v1747 = vmax.f32 %v1740, 0.0
  %v1748 = vld [vmem:[%s7] sm:$0xff]
  %v1749 = vld [vmem:[%s7 + $0x8] sm:$0xff]
  %v1750 = vld [vmem:[%s7 + $0x10] sm:$0xff]
  %v1751 = vld [vmem:[%s7 + $0x18] sm:$0xff]
  %v1752 = vld [vmem:[%s7 + $0x20] sm:$0xff]
  %v1753 = vld [vmem:[%s7 + $0x28] sm:$0xff]
  %v1754 = vld [vmem:[%s7 + $0x30] sm:$0xff]
  %v1755 = vld [vmem:[%s7 + $0x38] sm:$0xff]
  %v1756 = vld [vmem:[%s7 + $0x40] sm:$0xff]
  %v1757 = vld [vmem:[%s7 + $0x48] sm:$0xff]
  %v1758 = vld [vmem:[%s7 + $0x50] sm:$0xff]
  %v1759 = vld [vmem:[%s7 + $0x58] sm:$0xff]
  %v1760 = vld [vmem:[%s7 + $0x60] sm:$0xff]
  %v1761 = vld [vmem:[%s7 + $0x68] sm:$0xff]
  %v1762 = vld [vmem:[%s7 + $0x70] sm:$0xff]
  %v1763 = vld [vmem:[%s7 + $0x78] sm:$0xff]
  %v1764 = vld [vmem:[%s7 + $0x80] sm:$0xff]
  %v1765 = vld [vmem:[%s7 + $0x88] sm:$0xff]
  %v1766 = vld [vmem:[%s7 + $0x90] sm:$0xff]
  %v1767 = vld [vmem:[%s7 + $0x98] sm:$0xff]
  %v1768 = vld [vmem:[%s7 + $0xa0] sm:$0xff]
  %v1769 = vld [vmem:[%s7 + $0xa8] sm:$0xff]
  %v1770 = vld [vmem:[%s7 + $0xb0] sm:$0xff]
  %v1771 = vld [vmem:[%s7 + $0xb8] sm:$0xff]
  %v1772 = vld [vmem:[%s7 + $0xc0] sm:$0xff]
  %v1773 = vld [vmem:[%s7 + $0xc8] sm:$0xff]
  %v1774 = vld [vmem:[%s7 + $0xd0] sm:$0xff]
  %v1775 = vld [vmem:[%s7 + $0xd8] sm:$0xff]
  %v1776 = vld [vmem:[%s7 + $0xe0] sm:$0xff]
  %v1777 = vld [vmem:[%s7 + $0xe8] sm:$0xff]
  %v1778 = vld [vmem:[%s7 + $0xf0] sm:$0xff]
  %v1779 = vld [vmem:[%s7 + $0xf8] sm:$0xff]
  %v1780 = vld [vmem:[%s7 + $0x100] sm:$0xff]
  %v1781 = vld [vmem:[%s7 + $0x108] sm:$0xff]
  %v1782 = vld [vmem:[%s7 + $0x110] sm:$0xff]
  %v1783 = vld [vmem:[%s7 + $0x118] sm:$0xff]
  %v1784 = vld [vmem:[%s7 + $0x120] sm:$0xff]
  %v1785 = vld [vmem:[%s7 + $0x128] sm:$0xff]
  %v1786 = vld [vmem:[%s7 + $0x130] sm:$0xff]
  %v1787 = vld [vmem:[%s7 + $0x138] sm:$0xff]
  %v1788 = vld [vmem:[%s7 + $0x140] sm:$0xff]
  %v1789 = vld [vmem:[%s7 + $0x148] sm:$0xff]
  %v1790 = vld [vmem:[%s7 + $0x150] sm:$0xff]
  %v1791 = vld [vmem:[%s7 + $0x158] sm:$0xff]
  %v1792 = vld [vmem:[%s7 + $0x160] sm:$0xff]
  %v1793 = vld [vmem:[%s7 + $0x168] sm:$0xff]
  %v1794 = vld [vmem:[%s7 + $0x170] sm:$0xff]
  %v1795 = vld [vmem:[%s7 + $0x178] sm:$0xff]
  %v1796 = vld [vmem:[%s7 + $0x180] sm:$0xff]
  %v1797 = vld [vmem:[%s7 + $0x188] sm:$0xff]
  %v1798 = vld [vmem:[%s7 + $0x190] sm:$0xff]
  %v1799 = vld [vmem:[%s7 + $0x198] sm:$0xff]
  %v1800 = vld [vmem:[%s7 + $0x1a0] sm:$0xff]
  %v1801 = vld [vmem:[%s7 + $0x1a8] sm:$0xff]
  %v1802 = vld [vmem:[%s7 + $0x1b0] sm:$0xff]
  %v1803 = vld [vmem:[%s7 + $0x1b8] sm:$0xff]
  %v1804 = vld [vmem:[%s7 + $0x1c0] sm:$0xff]
  %v1805 = vld [vmem:[%s7 + $0x1c8] sm:$0xff]
  %v1806 = vld [vmem:[%s7 + $0x1d0] sm:$0xff]
  %v1807 = vld [vmem:[%s7 + $0x1d8] sm:$0xff]
  %v1808 = vld [vmem:[%s7 + $0x1e0] sm:$0xff]
  %v1809 = vld [vmem:[%s7 + $0x1e8] sm:$0xff]
  %v1810 = vld [vmem:[%s7 + $0x1f0] sm:$0xff]
  %v1811 = vld [vmem:[%s7 + $0x1f8] sm:$0xff]
  %v1812 = vld [vmem:[%s7 + $0x200] sm:$0xff]
  %v1813 = vld [vmem:[%s7 + $0x208] sm:$0xff]
  %v1814 = vld [vmem:[%s7 + $0x210] sm:$0xff]
  %v1815 = vld [vmem:[%s7 + $0x218] sm:$0xff]
  %v1816 = vld [vmem:[%s7 + $0x220] sm:$0xff]
  %v1817 = vld [vmem:[%s7 + $0x228] sm:$0xff]
  %v1818 = vld [vmem:[%s7 + $0x230] sm:$0xff]
  %v1819 = vld [vmem:[%s7 + $0x238] sm:$0xff]
  %v1820 = vld [vmem:[%s7 + $0x240] sm:$0xff]
  %v1821 = vld [vmem:[%s7 + $0x248] sm:$0xff]
  %v1822 = vld [vmem:[%s7 + $0x250] sm:$0xff]
  %v1823 = vld [vmem:[%s7 + $0x258] sm:$0xff]
  %v1824 = vld [vmem:[%s7 + $0x260] sm:$0xff]
  %v1825 = vld [vmem:[%s7 + $0x268] sm:$0xff]
  %v1826 = vld [vmem:[%s7 + $0x270] sm:$0xff]
  %v1827 = vld [vmem:[%s7 + $0x278] sm:$0xff]
  %v1828 = vld [vmem:[%s7 + $0x280] sm:$0xff]
  %v1829 = vld [vmem:[%s7 + $0x288] sm:$0xff]
  %v1830 = vld [vmem:[%s7 + $0x290] sm:$0xff]
  %v1831 = vld [vmem:[%s7 + $0x298] sm:$0xff]
  %v1832 = vld [vmem:[%s7 + $0x2a0] sm:$0xff]
  %v1833 = vld [vmem:[%s7 + $0x2a8] sm:$0xff]
  %v1834 = vld [vmem:[%s7 + $0x2b0] sm:$0xff]
  %v1835 = vld [vmem:[%s7 + $0x2b8] sm:$0xff]
  %v1836 = vld [vmem:[%s7 + $0x2c0] sm:$0xff]
  %v1837 = vld [vmem:[%s7 + $0x2c8] sm:$0xff]
  %v1838 = vld [vmem:[%s7 + $0x2d0] sm:$0xff]
  %v1839 = vld [vmem:[%s7 + $0x2d8] sm:$0xff]
  %v1840 = vld [vmem:[%s7 + $0x2e0] sm:$0xff]
  %v1841 = vld [vmem:[%s7 + $0x2e8] sm:$0xff]
  %v1842 = vld [vmem:[%s7 + $0x2f0] sm:$0xff]
  %v1843 = vld [vmem:[%s7 + $0x2f8] sm:$0xff]
  %v1844 = vld [vmem:[%s10 + $0xe] sm:$0x1]
  %v1846 = vlaneseq
  %v1847 = vshrl.u32 %v1846, 7
  %v1848 = vsub.s32 0, %v1847
  %v1849 = vrot.slane %v1844, %v1848
  %1851 = vmatprep.subr.mxu0 0.0
  %1852 = vmatpush1.msra.mxu0 %v1748
  %1853 = vmatprep.subr.mxu0 0.0
  %1854 = vmatpush1.msra.mxu0 %v1749
  %1855 = vmatprep.subr.mxu0 0.0
  %1856 = vmatpush1.msra.mxu0 %v1750
  %1857 = vmatprep.subr.mxu0 0.0
  %1858 = vmatpush1.msra.mxu0 %v1751
  %1859 = vmatprep.subr.mxu0 0.0
  %1860 = vmatpush1.msra.mxu0 %v1752
  %1861 = vmatprep.subr.mxu0 0.0
  %1862 = vmatpush1.msra.mxu0 %v1753
  %1863 = vmatprep.subr.mxu0 0.0
  %1864 = vmatpush1.msra.mxu0 %v1754
  %1865 = vmatprep.subr.mxu0 0.0
  %1866 = vmatpush1.msra.mxu0 %v1755
  %1867 = vmatprep.subr.mxu0 0.0
  %1868 = vmatpush1.msra.mxu0 %v1756
  %1869 = vmatprep.subr.mxu0 0.0
  %1870 = vmatpush1.msra.mxu0 %v1757
  %1871 = vmatprep.subr.mxu0 0.0
  %1872 = vmatpush1.msra.mxu0 %v1758
  %1873 = vmatprep.subr.mxu0 0.0
  %1874 = vmatpush1.msra.mxu0 %v1759
  %1875 = vmatprep.subr.mxu0 0.0
  %1876 = vmatpush1.msra.mxu0 %v1760
  %1877 = vmatprep.subr.mxu0 0.0
  %1878 = vmatpush1.msra.mxu0 %v1761
  %1879 = vmatprep.subr.mxu0 0.0
  %1880 = vmatpush1.msra.mxu0 %v1762
  %1881 = vmatprep.subr.mxu0 0.0
  %1882 = vmatpush1.msra.mxu0 %v1763
  %1883 = vmatprep.subr.mxu0 0.0
  %1884 = vmatpush1.msra.mxu0 %v1764
  %1885 = vmatprep.subr.mxu0 0.0
  %1886 = vmatpush1.msra.mxu0 %v1765
  %1887 = vmatprep.subr.mxu0 0.0
  %1888 = vmatpush1.msra.mxu0 %v1766
  %1889 = vmatprep.subr.mxu0 0.0
  %1890 = vmatpush1.msra.mxu0 %v1767
  %1891 = vmatprep.subr.mxu0 0.0
  %1892 = vmatpush1.msra.mxu0 %v1768
  %1893 = vmatprep.subr.mxu0 0.0
  %1894 = vmatpush1.msra.mxu0 %v1769
  %1895 = vmatprep.subr.mxu0 0.0
  %1896 = vmatpush1.msra.mxu0 %v1770
  %1897 = vmatprep.subr.mxu0 0.0
  %1898 = vmatpush1.msra.mxu0 %v1771
  %1899 = vmatprep.subr.mxu0 0.0
  %1900 = vmatpush1.msra.mxu0 %v1772
  %1901 = vmatprep.subr.mxu0 0.0
  %1902 = vmatpush1.msra.mxu0 %v1773
  %1903 = vmatprep.subr.mxu0 0.0
  %1904 = vmatpush1.msra.mxu0 %v1774
  %1905 = vmatprep.subr.mxu0 0.0
  %1906 = vmatpush1.msra.mxu0 %v1775
  %1907 = vmatprep.subr.mxu0 0.0
  %1908 = vmatpush1.msra.mxu0 %v1776
  %1909 = vmatprep.subr.mxu0 0.0
  %1910 = vmatpush1.msra.mxu0 %v1777
  %1911 = vmatprep.subr.mxu0 0.0
  %1912 = vmatpush1.msra.mxu0 %v1778
  %1913 = vmatprep.subr.mxu0 0.0
  %1914 = vmatpush1.msra.mxu0 %v1779
  %1915 = vmatprep.mubr.f32.mxu0 %v1743
  %1916 = vmatmul.mubr.f32.gmra.mrb[0].mxu0 %v1742
  %v1917 = vpop.f32.mrb[0].mxu0
  %v1918 = vadd.f32 %v1849, %v1917
  %v1919 = vpop.f32.mrb[0].mxu0
  %1920 = vdwg.mxu0
  %1921 = vmatprep.subr.mxu0 0.0
  %1922 = vmatpush1.msra.mxu0 %v1780
  %1923 = vmatprep.subr.mxu0 0.0
  %1924 = vmatpush1.msra.mxu0 %v1781
  %1925 = vmatprep.subr.mxu0 0.0
  %1926 = vmatpush1.msra.mxu0 %v1782
  %1927 = vmatprep.subr.mxu0 0.0
  %1928 = vmatpush1.msra.mxu0 %v1783
  %1929 = vmatprep.subr.mxu0 0.0
  %1930 = vmatpush1.msra.mxu0 %v1784
  %1931 = vmatprep.subr.mxu0 0.0
  %1932 = vmatpush1.msra.mxu0 %v1785
  %1933 = vmatprep.subr.mxu0 0.0
  %1934 = vmatpush1.msra.mxu0 %v1786
  %1935 = vmatprep.subr.mxu0 0.0
  %1936 = vmatpush1.msra.mxu0 %v1787
  %1937 = vmatprep.subr.mxu0 0.0
  %1938 = vmatpush1.msra.mxu0 %v1788
  %1939 = vmatprep.subr.mxu0 0.0
  %1940 = vmatpush1.msra.mxu0 %v1789
  %1941 = vmatprep.subr.mxu0 0.0
  %1942 = vmatpush1.msra.mxu0 %v1790
  %1943 = vmatprep.subr.mxu0 0.0
  %1944 = vmatpush1.msra.mxu0 %v1791
  %1945 = vmatprep.subr.mxu0 0.0
  %1946 = vmatpush1.msra.mxu0 %v1792
  %1947 = vmatprep.subr.mxu0 0.0
  %1948 = vmatpush1.msra.mxu0 %v1793
  %1949 = vmatprep.subr.mxu0 0.0
  %1950 = vmatpush1.msra.mxu0 %v1794
  %1951 = vmatprep.subr.mxu0 0.0
  %1952 = vmatpush1.msra.mxu0 %v1795
  %1953 = vmatprep.subr.mxu0 0.0
  %1954 = vmatpush1.msra.mxu0 %v1796
  %1955 = vmatprep.subr.mxu0 0.0
  %1956 = vmatpush1.msra.mxu0 %v1797
  %1957 = vmatprep.subr.mxu0 0.0
  %1958 = vmatpush1.msra.mxu0 %v1798
  %1959 = vmatprep.subr.mxu0 0.0
  %1960 = vmatpush1.msra.mxu0 %v1799
  %1961 = vmatprep.subr.mxu0 0.0
  %1962 = vmatpush1.msra.mxu0 %v1800
  %1963 = vmatprep.subr.mxu0 0.0
  %1964 = vmatpush1.msra.mxu0 %v1801
  %1965 = vmatprep.subr.mxu0 0.0
  %1966 = vmatpush1.msra.mxu0 %v1802
  %1967 = vmatprep.subr.mxu0 0.0
  %1968 = vmatpush1.msra.mxu0 %v1803
  %1969 = vmatprep.subr.mxu0 0.0
  %1970 = vmatpush1.msra.mxu0 %v1804
  %1971 = vmatprep.subr.mxu0 0.0
  %1972 = vmatpush1.msra.mxu0 %v1805
  %1973 = vmatprep.subr.mxu0 0.0
  %1974 = vmatpush1.msra.mxu0 %v1806
  %1975 = vmatprep.subr.mxu0 0.0
  %1976 = vmatpush1.msra.mxu0 %v1807
  %1977 = vmatprep.subr.mxu0 0.0
  %1978 = vmatpush1.msra.mxu0 %v1808
  %1979 = vmatprep.subr.mxu0 0.0
  %1980 = vmatpush1.msra.mxu0 %v1809
  %1981 = vmatprep.subr.mxu0 0.0
  %1982 = vmatpush1.msra.mxu0 %v1810
  %1983 = vmatprep.subr.mxu0 0.0
  %1984 = vmatpush1.msra.mxu0 %v1811
  %1985 = vmatprep.mubr.f32.mxu0 %v1745
  %1986 = vmatmul.mubr.f32.gmra.mrb[0].mxu0 %v1744
  %v1987 = vpop.f32.mrb[0].mxu0
  %v1988 = vadd.f32 %v1918, %v1987
  %v1989 = vpop.f32.mrb[0].mxu0
  %1990 = vdwg.mxu0
  %1991 = vmatprep.subr.mxu0 0.0
  %1992 = vmatpush1.msra.mxu0 %v1812
  %1993 = vmatprep.subr.mxu0 0.0
  %1994 = vmatpush1.msra.mxu0 %v1813
  %1995 = vmatprep.subr.mxu0 0.0
  %1996 = vmatpush1.msra.mxu0 %v1814
  %1997 = vmatprep.subr.mxu0 0.0
  %1998 = vmatpush1.msra.mxu0 %v1815
  %1999 = vmatprep.subr.mxu0 0.0
  %2000 = vmatpush1.msra.mxu0 %v1816
  %2001 = vmatprep.subr.mxu0 0.0
  %2002 = vmatpush1.msra.mxu0 %v1817
  %2003 = vmatprep.subr.mxu0 0.0
  %2004 = vmatpush1.msra.mxu0 %v1818
  %2005 = vmatprep.subr.mxu0 0.0
  %2006 = vmatpush1.msra.mxu0 %v1819
  %2007 = vmatprep.subr.mxu0 0.0
  %2008 = vmatpush1.msra.mxu0 %v1820
  %2009 = vmatprep.subr.mxu0 0.0
  %2010 = vmatpush1.msra.mxu0 %v1821
  %2011 = vmatprep.subr.mxu0 0.0
  %2012 = vmatpush1.msra.mxu0 %v1822
  %2013 = vmatprep.subr.mxu0 0.0
  %2014 = vmatpush1.msra.mxu0 %v1823
  %2015 = vmatprep.subr.mxu0 0.0
  %2016 = vmatpush1.msra.mxu0 %v1824
  %2017 = vmatprep.subr.mxu0 0.0
  %2018 = vmatpush1.msra.mxu0 %v1825
  %2019 = vmatprep.subr.mxu0 0.0
  %2020 = vmatpush1.msra.mxu0 %v1826
  %2021 = vmatprep.subr.mxu0 0.0
  %2022 = vmatpush1.msra.mxu0 %v1827
  %2023 = vmatprep.subr.mxu0 0.0
  %2024 = vmatpush1.msra.mxu0 %v1828
  %2025 = vmatprep.subr.mxu0 0.0
  %2026 = vmatpush1.msra.mxu0 %v1829
  %2027 = vmatprep.subr.mxu0 0.0
  %2028 = vmatpush1.msra.mxu0 %v1830
  %2029 = vmatprep.subr.mxu0 0.0
  %2030 = vmatpush1.msra.mxu0 %v1831
  %2031 = vmatprep.subr.mxu0 0.0
  %2032 = vmatpush1.msra.mxu0 %v1832
  %2033 = vmatprep.subr.mxu0 0.0
  %2034 = vmatpush1.msra.mxu0 %v1833
  %2035 = vmatprep.subr.mxu0 0.0
  %2036 = vmatpush1.msra.mxu0 %v1834
  %2037 = vmatprep.subr.mxu0 0.0
  %2038 = vmatpush1.msra.mxu0 %v1835
  %2039 = vmatprep.subr.mxu0 0.0
  %2040 = vmatpush1.msra.mxu0 %v1836
  %2041 = vmatprep.subr.mxu0 0.0
  %2042 = vmatpush1.msra.mxu0 %v1837
  %2043 = vmatprep.subr.mxu0 0.0
  %2044 = vmatpush1.msra.mxu0 %v1838
  %2045 = vmatprep.subr.mxu0 0.0
  %2046 = vmatpush1.msra.mxu0 %v1839
  %2047 = vmatprep.subr.mxu0 0.0
  %2048 = vmatpush1.msra.mxu0 %v1840
  %2049 = vmatprep.subr.mxu0 0.0
  %2050 = vmatpush1.msra.mxu0 %v1841
  %2051 = vmatprep.subr.mxu0 0.0
  %2052 = vmatpush1.msra.mxu0 %v1842
  %2053 = vmatprep.subr.mxu0 0.0
  %2054 = vmatpush1.msra.mxu0 %v1843
  %2055 = vmatprep.mubr.f32.mxu0 %v1747
  %2056 = vmatmul.mubr.f32.gmra.mrb[0].mxu0 %v1746
  %v2057 = vpop.f32.mrb[0].mxu0
  %v2058 = vadd.f32 %v1988, %v2057
  %v2059 = vpop.f32.mrb[0].mxu0
  %2060 = vdwg.mxu0
  %v2061 = vtanh.pop %v2058
  %v2062 = vmul.f32 %v2061, 1.442695
  %v2063 = vpow.pop %v2062
  %v2064 = vld [vmem:[%s8] sm:$0xff]
  %v2065 = vld [vmem:[%s8 + $0x8] sm:$0xff]
  %v2066 = vld [vmem:[%s8 + $0x10] sm:$0xff]
  %v2067 = vld [vmem:[%s8 + $0x18] sm:$0xff]
  %v2068 = vld [vmem:[%s10 + $0xf] sm:$0xf]
  %v2070 = vlaneseq
  %v2071 = vshrl.u32 %v2070, 7
  %v2072 = vsub.s32 0, %v2071
  %v2073 = vrot.slane %v2068, %v2072
  %v2074 = vlaneseq
  %v2075 = vshrl.u32 %v2074, 7
  %v2076 = vsub.s32 1, %v2075
  %v2077 = vrot.slane %v2068, %v2076
  %v2078 = vlaneseq
  %v2079 = vshrl.u32 %v2078, 7
  %v2080 = vsub.s32 2, %v2079
  %v2081 = vrot.slane %v2068, %v2080
  %v2082 = vlaneseq
  %v2083 = vshrl.u32 %v2082, 7
  %v2084 = vsub.s32 3, %v2083
  %v2085 = vrot.slane %v2068, %v2084
  %vm2090 = vcmask 64512
  %v2091 = vsel %vm2090, %v1248, 0
  %2093 = vmatprep.subr.mxu0 %v2065
  %2094 = vmatpush1.msra.mxu0 %v2064
  %2095 = vmatprep.subr.mxu0 0.0
  %2096 = vmatpush1.msra.mxu0 0.0
  %2097 = vmatprep.subr.mxu0 0.0
  %2098 = vmatpush1.msra.mxu0 0.0
  %2099 = vmatprep.subr.mxu0 0.0
  %2100 = vmatpush1.msra.mxu0 0.0
  %2101 = vmatprep.subr.mxu0 0.0
  %2102 = vmatpush1.msra.mxu0 0.0
  %2103 = vmatprep.subr.mxu0 0.0
  %2104 = vmatpush1.msra.mxu0 0.0
  %2105 = vmatprep.subr.mxu0 0.0
  %2106 = vmatpush1.msra.mxu0 0.0
  %2107 = vmatprep.subr.mxu0 0.0
  %2108 = vmatpush1.msra.mxu0 0.0
  %2109 = vmatprep.subr.mxu0 0.0
  %2110 = vmatpush1.msra.mxu0 0.0
  %2111 = vmatprep.subr.mxu0 0.0
  %2112 = vmatpush1.msra.mxu0 0.0
  %2113 = vmatprep.subr.mxu0 0.0
  %2114 = vmatpush1.msra.mxu0 0.0
  %2115 = vmatprep.subr.mxu0 0.0
  %2116 = vmatpush1.msra.mxu0 0.0
  %2117 = vmatprep.subr.mxu0 0.0
  %2118 = vmatpush1.msra.mxu0 0.0
  %2119 = vmatprep.subr.mxu0 0.0
  %2120 = vmatpush1.msra.mxu0 0.0
  %2121 = vmatprep.subr.mxu0 0.0
  %2122 = vmatpush1.msra.mxu0 0.0
  %2123 = vmatprep.subr.mxu0 0.0
  %2124 = vmatpush1.msra.mxu0 0.0
  %2125 = vmatprep.subr.mxu0 0.0
  %2126 = vmatpush1.msra.mxu0 0.0
  %2127 = vmatprep.subr.mxu0 0.0
  %2128 = vmatpush1.msra.mxu0 0.0
  %2129 = vmatprep.subr.mxu0 0.0
  %2130 = vmatpush1.msra.mxu0 0.0
  %2131 = vmatprep.subr.mxu0 0.0
  %2132 = vmatpush1.msra.mxu0 0.0
  %2133 = vmatprep.subr.mxu0 0.0
  %2134 = vmatpush1.msra.mxu0 0.0
  %2135 = vmatprep.subr.mxu0 0.0
  %2136 = vmatpush1.msra.mxu0 0.0
  %2137 = vmatprep.subr.mxu0 0.0
  %2138 = vmatpush1.msra.mxu0 0.0
  %2139 = vmatprep.subr.mxu0 0.0
  %2140 = vmatpush1.msra.mxu0 0.0
  %2141 = vmatprep.subr.mxu0 0.0
  %2142 = vmatpush1.msra.mxu0 0.0
  %2143 = vmatprep.subr.mxu0 0.0
  %2144 = vmatpush1.msra.mxu0 0.0
  %2145 = vmatprep.subr.mxu0 0.0
  %2146 = vmatpush1.msra.mxu0 0.0
  %2147 = vmatprep.subr.mxu0 0.0
  %2148 = vmatpush1.msra.mxu0 0.0
  %2149 = vmatprep.subr.mxu0 0.0
  %2150 = vmatpush1.msra.mxu0 0.0
  %2151 = vmatprep.subr.mxu0 0.0
  %2152 = vmatpush1.msra.mxu0 0.0
  %2153 = vmatprep.subr.mxu0 0.0
  %2154 = vmatpush1.msra.mxu0 0.0
  %2155 = vmatprep.subr.mxu0 0.0
  %2156 = vmatpush1.msra.mxu0 0.0
  %2157 = vmatprep.mubr.f32.mxu0 0.0
  %2158 = vmatmul.mubr.f32.gmra.mrb[0].mxu0 %v2091
  %v2159 = vpop.f32.mrb[0].mxu0
  %v2160 = vadd.f32 %v2073, %v2159
  %v2161 = vpop.f32.mrb[0].mxu0
  %v2162 = vadd.f32 %v2077, %v2161
  %2163 = vdwg.mxu0
  %2164 = vmatprep.subr.mxu0 %v2067
  %2165 = vmatpush1.msra.mxu0 %v2066
  %2166 = vmatprep.subr.mxu0 0.0
  %2167 = vmatpush1.msra.mxu0 0.0
  %2168 = vmatprep.subr.mxu0 0.0
  %2169 = vmatpush1.msra.mxu0 0.0
  %2170 = vmatprep.subr.mxu0 0.0
  %2171 = vmatpush1.msra.mxu0 0.0
  %2172 = vmatprep.subr.mxu0 0.0
  %2173 = vmatpush1.msra.mxu0 0.0
  %2174 = vmatprep.subr.mxu0 0.0
  %2175 = vmatpush1.msra.mxu0 0.0
  %2176 = vmatprep.subr.mxu0 0.0
  %2177 = vmatpush1.msra.mxu0 0.0
  %2178 = vmatprep.subr.mxu0 0.0
  %2179 = vmatpush1.msra.mxu0 0.0
  %2180 = vmatprep.subr.mxu0 0.0
  %2181 = vmatpush1.msra.mxu0 0.0
  %2182 = vmatprep.subr.mxu0 0.0
  %2183 = vmatpush1.msra.mxu0 0.0
  %2184 = vmatprep.subr.mxu0 0.0
  %2185 = vmatpush1.msra.mxu0 0.0
  %2186 = vmatprep.subr.mxu0 0.0
  %2187 = vmatpush1.msra.mxu0 0.0
  %2188 = vmatprep.subr.mxu0 0.0
  %2189 = vmatpush1.msra.mxu0 0.0
  %2190 = vmatprep.subr.mxu0 0.0
  %2191 = vmatpush1.msra.mxu0 0.0
  %2192 = vmatprep.subr.mxu0 0.0
  %2193 = vmatpush1.msra.mxu0 0.0
  %2194 = vmatprep.subr.mxu0 0.0
  %2195 = vmatpush1.msra.mxu0 0.0
  %2196 = vmatprep.subr.mxu0 0.0
  %2197 = vmatpush1.msra.mxu0 0.0
  %2198 = vmatprep.subr.mxu0 0.0
  %2199 = vmatpush1.msra.mxu0 0.0
  %2200 = vmatprep.subr.mxu0 0.0
  %2201 = vmatpush1.msra.mxu0 0.0
  %2202 = vmatprep.subr.mxu0 0.0
  %2203 = vmatpush1.msra.mxu0 0.0
  %2204 = vmatprep.subr.mxu0 0.0
  %2205 = vmatpush1.msra.mxu0 0.0
  %2206 = vmatprep.subr.mxu0 0.0
  %2207 = vmatpush1.msra.mxu0 0.0
  %2208 = vmatprep.subr.mxu0 0.0
  %2209 = vmatpush1.msra.mxu0 0.0
  %2210 = vmatprep.subr.mxu0 0.0
  %2211 = vmatpush1.msra.mxu0 0.0
  %2212 = vmatprep.subr.mxu0 0.0
  %2213 = vmatpush1.msra.mxu0 0.0
  %2214 = vmatprep.subr.mxu0 0.0
  %2215 = vmatpush1.msra.mxu0 0.0
  %2216 = vmatprep.subr.mxu0 0.0
  %2217 = vmatpush1.msra.mxu0 0.0
  %2218 = vmatprep.subr.mxu0 0.0
  %2219 = vmatpush1.msra.mxu0 0.0
  %2220 = vmatprep.subr.mxu0 0.0
  %2221 = vmatpush1.msra.mxu0 0.0
  %2222 = vmatprep.subr.mxu0 0.0
  %2223 = vmatpush1.msra.mxu0 0.0
  %2224 = vmatprep.subr.mxu0 0.0
  %2225 = vmatpush1.msra.mxu0 0.0
  %2226 = vmatprep.subr.mxu0 0.0
  %2227 = vmatpush1.msra.mxu0 0.0
  %2228 = vmatprep.mubr.f32.mxu0 0.0
  %2229 = vmatmul.mubr.f32.gmra.mrb[0].mxu0 %v2091
  %v2230 = vpop.f32.mrb[0].mxu0
  %v2231 = vadd.f32 %v2081, %v2230
  %v2232 = vpop.f32.mrb[0].mxu0
  %v2233 = vadd.f32 %v2085, %v2232
  %2234 = vdwg.mxu0
  %v2235 = vmax.f32 %v2160, 0.0
  %v2236 = vmax.f32 %v2162, 0.0
  %v2237 = vmax.f32 %v2231, 0.0
  %v2238 = vmax.f32 %v2233, 0.0
  %v2239 = vld [vmem:[%s9] sm:$0xff]
  %v2240 = vld [vmem:[%s9 + $0x8] sm:$0xff]
  %v2241 = vld [vmem:[%s9 + $0x10] sm:$0xff]
  %v2242 = vld [vmem:[%s9 + $0x18] sm:$0xff]
  %v2243 = vld [vmem:[%s9 + $0x20] sm:$0xff]
  %v2244 = vld [vmem:[%s9 + $0x28] sm:$0xff]
  %v2245 = vld [vmem:[%s9 + $0x30] sm:$0xff]
  %v2246 = vld [vmem:[%s9 + $0x38] sm:$0xff]
  %v2247 = vld [vmem:[%s9 + $0x40] sm:$0xff]
  %v2248 = vld [vmem:[%s9 + $0x48] sm:$0xff]
  %v2249 = vld [vmem:[%s9 + $0x50] sm:$0xff]
  %v2250 = vld [vmem:[%s9 + $0x58] sm:$0xff]
  %v2251 = vld [vmem:[%s9 + $0x60] sm:$0xff]
  %v2252 = vld [vmem:[%s9 + $0x68] sm:$0xff]
  %v2253 = vld [vmem:[%s9 + $0x70] sm:$0xff]
  %v2254 = vld [vmem:[%s9 + $0x78] sm:$0xff]
  %v2255 = vld [vmem:[%s9 + $0x80] sm:$0xff]
  %v2256 = vld [vmem:[%s9 + $0x88] sm:$0xff]
  %v2257 = vld [vmem:[%s9 + $0x90] sm:$0xff]
  %v2258 = vld [vmem:[%s9 + $0x98] sm:$0xff]
  %v2259 = vld [vmem:[%s9 + $0xa0] sm:$0xff]
  %v2260 = vld [vmem:[%s9 + $0xa8] sm:$0xff]
  %v2261 = vld [vmem:[%s9 + $0xb0] sm:$0xff]
  %v2262 = vld [vmem:[%s9 + $0xb8] sm:$0xff]
  %v2263 = vld [vmem:[%s9 + $0xc0] sm:$0xff]
  %v2264 = vld [vmem:[%s9 + $0xc8] sm:$0xff]
  %v2265 = vld [vmem:[%s9 + $0xd0] sm:$0xff]
  %v2266 = vld [vmem:[%s9 + $0xd8] sm:$0xff]
  %v2267 = vld [vmem:[%s9 + $0xe0] sm:$0xff]
  %v2268 = vld [vmem:[%s9 + $0xe8] sm:$0xff]
  %v2269 = vld [vmem:[%s9 + $0xf0] sm:$0xff]
  %v2270 = vld [vmem:[%s9 + $0xf8] sm:$0xff]
  %v2271 = vld [vmem:[%s9 + $0x100] sm:$0xff]
  %v2272 = vld [vmem:[%s9 + $0x108] sm:$0xff]
  %v2273 = vld [vmem:[%s9 + $0x110] sm:$0xff]
  %v2274 = vld [vmem:[%s9 + $0x118] sm:$0xff]
  %v2275 = vld [vmem:[%s9 + $0x120] sm:$0xff]
  %v2276 = vld [vmem:[%s9 + $0x128] sm:$0xff]
  %v2277 = vld [vmem:[%s9 + $0x130] sm:$0xff]
  %v2278 = vld [vmem:[%s9 + $0x138] sm:$0xff]
  %v2279 = vld [vmem:[%s9 + $0x140] sm:$0xff]
  %v2280 = vld [vmem:[%s9 + $0x148] sm:$0xff]
  %v2281 = vld [vmem:[%s9 + $0x150] sm:$0xff]
  %v2282 = vld [vmem:[%s9 + $0x158] sm:$0xff]
  %v2283 = vld [vmem:[%s9 + $0x160] sm:$0xff]
  %v2284 = vld [vmem:[%s9 + $0x168] sm:$0xff]
  %v2285 = vld [vmem:[%s9 + $0x170] sm:$0xff]
  %v2286 = vld [vmem:[%s9 + $0x178] sm:$0xff]
  %v2287 = vld [vmem:[%s9 + $0x180] sm:$0xff]
  %v2288 = vld [vmem:[%s9 + $0x188] sm:$0xff]
  %v2289 = vld [vmem:[%s9 + $0x190] sm:$0xff]
  %v2290 = vld [vmem:[%s9 + $0x198] sm:$0xff]
  %v2291 = vld [vmem:[%s9 + $0x1a0] sm:$0xff]
  %v2292 = vld [vmem:[%s9 + $0x1a8] sm:$0xff]
  %v2293 = vld [vmem:[%s9 + $0x1b0] sm:$0xff]
  %v2294 = vld [vmem:[%s9 + $0x1b8] sm:$0xff]
  %v2295 = vld [vmem:[%s9 + $0x1c0] sm:$0xff]
  %v2296 = vld [vmem:[%s9 + $0x1c8] sm:$0xff]
  %v2297 = vld [vmem:[%s9 + $0x1d0] sm:$0xff]
  %v2298 = vld [vmem:[%s9 + $0x1d8] sm:$0xff]
  %v2299 = vld [vmem:[%s9 + $0x1e0] sm:$0xff]
  %v2300 = vld [vmem:[%s9 + $0x1e8] sm:$0xff]
  %v2301 = vld [vmem:[%s9 + $0x1f0] sm:$0xff]
  %v2302 = vld [vmem:[%s9 + $0x1f8] sm:$0xff]
  %v2303 = vld [vmem:[%s9 + $0x200] sm:$0xff]
  %v2304 = vld [vmem:[%s9 + $0x208] sm:$0xff]
  %v2305 = vld [vmem:[%s9 + $0x210] sm:$0xff]
  %v2306 = vld [vmem:[%s9 + $0x218] sm:$0xff]
  %v2307 = vld [vmem:[%s9 + $0x220] sm:$0xff]
  %v2308 = vld [vmem:[%s9 + $0x228] sm:$0xff]
  %v2309 = vld [vmem:[%s9 + $0x230] sm:$0xff]
  %v2310 = vld [vmem:[%s9 + $0x238] sm:$0xff]
  %v2311 = vld [vmem:[%s9 + $0x240] sm:$0xff]
  %v2312 = vld [vmem:[%s9 + $0x248] sm:$0xff]
  %v2313 = vld [vmem:[%s9 + $0x250] sm:$0xff]
  %v2314 = vld [vmem:[%s9 + $0x258] sm:$0xff]
  %v2315 = vld [vmem:[%s9 + $0x260] sm:$0xff]
  %v2316 = vld [vmem:[%s9 + $0x268] sm:$0xff]
  %v2317 = vld [vmem:[%s9 + $0x270] sm:$0xff]
  %v2318 = vld [vmem:[%s9 + $0x278] sm:$0xff]
  %v2319 = vld [vmem:[%s9 + $0x280] sm:$0xff]
  %v2320 = vld [vmem:[%s9 + $0x288] sm:$0xff]
  %v2321 = vld [vmem:[%s9 + $0x290] sm:$0xff]
  %v2322 = vld [vmem:[%s9 + $0x298] sm:$0xff]
  %v2323 = vld [vmem:[%s9 + $0x2a0] sm:$0xff]
  %v2324 = vld [vmem:[%s9 + $0x2a8] sm:$0xff]
  %v2325 = vld [vmem:[%s9 + $0x2b0] sm:$0xff]
  %v2326 = vld [vmem:[%s9 + $0x2b8] sm:$0xff]
  %v2327 = vld [vmem:[%s9 + $0x2c0] sm:$0xff]
  %v2328 = vld [vmem:[%s9 + $0x2c8] sm:$0xff]
  %v2329 = vld [vmem:[%s9 + $0x2d0] sm:$0xff]
  %v2330 = vld [vmem:[%s9 + $0x2d8] sm:$0xff]
  %v2331 = vld [vmem:[%s9 + $0x2e0] sm:$0xff]
  %v2332 = vld [vmem:[%s9 + $0x2e8] sm:$0xff]
  %v2333 = vld [vmem:[%s9 + $0x2f0] sm:$0xff]
  %v2334 = vld [vmem:[%s9 + $0x2f8] sm:$0xff]
  %v2335 = vld [vmem:[%s9 + $0x300] sm:$0xff]
  %v2336 = vld [vmem:[%s9 + $0x308] sm:$0xff]
  %v2337 = vld [vmem:[%s9 + $0x310] sm:$0xff]
  %v2338 = vld [vmem:[%s9 + $0x318] sm:$0xff]
  %v2339 = vld [vmem:[%s9 + $0x320] sm:$0xff]
  %v2340 = vld [vmem:[%s9 + $0x328] sm:$0xff]
  %v2341 = vld [vmem:[%s9 + $0x330] sm:$0xff]
  %v2342 = vld [vmem:[%s9 + $0x338] sm:$0xff]
  %v2343 = vld [vmem:[%s9 + $0x340] sm:$0xff]
  %v2344 = vld [vmem:[%s9 + $0x348] sm:$0xff]
  %v2345 = vld [vmem:[%s9 + $0x350] sm:$0xff]
  %v2346 = vld [vmem:[%s9 + $0x358] sm:$0xff]
  %v2347 = vld [vmem:[%s9 + $0x360] sm:$0xff]
  %v2348 = vld [vmem:[%s9 + $0x368] sm:$0xff]
  %v2349 = vld [vmem:[%s9 + $0x370] sm:$0xff]
  %v2350 = vld [vmem:[%s9 + $0x378] sm:$0xff]
  %v2351 = vld [vmem:[%s9 + $0x380] sm:$0xff]
  %v2352 = vld [vmem:[%s9 + $0x388] sm:$0xff]
  %v2353 = vld [vmem:[%s9 + $0x390] sm:$0xff]
  %v2354 = vld [vmem:[%s9 + $0x398] sm:$0xff]
  %v2355 = vld [vmem:[%s9 + $0x3a0] sm:$0xff]
  %v2356 = vld [vmem:[%s9 + $0x3a8] sm:$0xff]
  %v2357 = vld [vmem:[%s9 + $0x3b0] sm:$0xff]
  %v2358 = vld [vmem:[%s9 + $0x3b8] sm:$0xff]
  %v2359 = vld [vmem:[%s9 + $0x3c0] sm:$0xff]
  %v2360 = vld [vmem:[%s9 + $0x3c8] sm:$0xff]
  %v2361 = vld [vmem:[%s9 + $0x3d0] sm:$0xff]
  %v2362 = vld [vmem:[%s9 + $0x3d8] sm:$0xff]
  %v2363 = vld [vmem:[%s9 + $0x3e0] sm:$0xff]
  %v2364 = vld [vmem:[%s9 + $0x3e8] sm:$0xff]
  %v2365 = vld [vmem:[%s9 + $0x3f0] sm:$0xff]
  %v2366 = vld [vmem:[%s9 + $0x3f8] sm:$0xff]
  %v2367 = vld [vmem:[%s9 + $0x400] sm:$0xff]
  %v2368 = vld [vmem:[%s9 + $0x408] sm:$0xff]
  %v2369 = vld [vmem:[%s9 + $0x410] sm:$0xff]
  %v2370 = vld [vmem:[%s9 + $0x418] sm:$0xff]
  %v2371 = vld [vmem:[%s9 + $0x420] sm:$0xff]
  %v2372 = vld [vmem:[%s9 + $0x428] sm:$0xff]
  %v2373 = vld [vmem:[%s9 + $0x430] sm:$0xff]
  %v2374 = vld [vmem:[%s9 + $0x438] sm:$0xff]
  %v2375 = vld [vmem:[%s9 + $0x440] sm:$0xff]
  %v2376 = vld [vmem:[%s9 + $0x448] sm:$0xff]
  %v2377 = vld [vmem:[%s9 + $0x450] sm:$0xff]
  %v2378 = vld [vmem:[%s9 + $0x458] sm:$0xff]
  %v2379 = vld [vmem:[%s9 + $0x460] sm:$0xff]
  %v2380 = vld [vmem:[%s9 + $0x468] sm:$0xff]
  %v2381 = vld [vmem:[%s9 + $0x470] sm:$0xff]
  %v2382 = vld [vmem:[%s9 + $0x478] sm:$0xff]
  %v2383 = vld [vmem:[%s9 + $0x480] sm:$0xff]
  %v2384 = vld [vmem:[%s9 + $0x488] sm:$0xff]
  %v2385 = vld [vmem:[%s9 + $0x490] sm:$0xff]
  %v2386 = vld [vmem:[%s9 + $0x498] sm:$0xff]
  %v2387 = vld [vmem:[%s9 + $0x4a0] sm:$0xff]
  %v2388 = vld [vmem:[%s9 + $0x4a8] sm:$0xff]
  %v2389 = vld [vmem:[%s9 + $0x4b0] sm:$0xff]
  %v2390 = vld [vmem:[%s9 + $0x4b8] sm:$0xff]
  %v2391 = vld [vmem:[%s9 + $0x4c0] sm:$0xff]
  %v2392 = vld [vmem:[%s9 + $0x4c8] sm:$0xff]
  %v2393 = vld [vmem:[%s9 + $0x4d0] sm:$0xff]
  %v2394 = vld [vmem:[%s9 + $0x4d8] sm:$0xff]
  %v2395 = vld [vmem:[%s9 + $0x4e0] sm:$0xff]
  %v2396 = vld [vmem:[%s9 + $0x4e8] sm:$0xff]
  %v2397 = vld [vmem:[%s9 + $0x4f0] sm:$0xff]
  %v2398 = vld [vmem:[%s9 + $0x4f8] sm:$0xff]
  %v2399 = vld [vmem:[%s9 + $0x500] sm:$0xff]
  %v2400 = vld [vmem:[%s9 + $0x508] sm:$0xff]
  %v2401 = vld [vmem:[%s9 + $0x510] sm:$0xff]
  %v2402 = vld [vmem:[%s9 + $0x518] sm:$0xff]
  %v2403 = vld [vmem:[%s9 + $0x520] sm:$0xff]
  %v2404 = vld [vmem:[%s9 + $0x528] sm:$0xff]
  %v2405 = vld [vmem:[%s9 + $0x530] sm:$0xff]
  %v2406 = vld [vmem:[%s9 + $0x538] sm:$0xff]
  %v2407 = vld [vmem:[%s9 + $0x540] sm:$0xff]
  %v2408 = vld [vmem:[%s9 + $0x548] sm:$0xff]
  %v2409 = vld [vmem:[%s9 + $0x550] sm:$0xff]
  %v2410 = vld [vmem:[%s9 + $0x558] sm:$0xff]
  %v2411 = vld [vmem:[%s9 + $0x560] sm:$0xff]
  %v2412 = vld [vmem:[%s9 + $0x568] sm:$0xff]
  %v2413 = vld [vmem:[%s9 + $0x570] sm:$0xff]
  %v2414 = vld [vmem:[%s9 + $0x578] sm:$0xff]
  %v2415 = vld [vmem:[%s9 + $0x580] sm:$0xff]
  %v2416 = vld [vmem:[%s9 + $0x588] sm:$0xff]
  %v2417 = vld [vmem:[%s9 + $0x590] sm:$0xff]
  %v2418 = vld [vmem:[%s9 + $0x598] sm:$0xff]
  %v2419 = vld [vmem:[%s9 + $0x5a0] sm:$0xff]
  %v2420 = vld [vmem:[%s9 + $0x5a8] sm:$0xff]
  %v2421 = vld [vmem:[%s9 + $0x5b0] sm:$0xff]
  %v2422 = vld [vmem:[%s9 + $0x5b8] sm:$0xff]
  %v2423 = vld [vmem:[%s9 + $0x5c0] sm:$0xff]
  %v2424 = vld [vmem:[%s9 + $0x5c8] sm:$0xff]
  %v2425 = vld [vmem:[%s9 + $0x5d0] sm:$0xff]
  %v2426 = vld [vmem:[%s9 + $0x5d8] sm:$0xff]
  %v2427 = vld [vmem:[%s9 + $0x5e0] sm:$0xff]
  %v2428 = vld [vmem:[%s9 + $0x5e8] sm:$0xff]
  %v2429 = vld [vmem:[%s9 + $0x5f0] sm:$0xff]
  %v2430 = vld [vmem:[%s9 + $0x5f8] sm:$0xff]
  %v2431 = vld [vmem:[%s9 + $0x600] sm:$0xff]
  %v2432 = vld [vmem:[%s9 + $0x608] sm:$0xff]
  %v2433 = vld [vmem:[%s9 + $0x610] sm:$0xff]
  %v2434 = vld [vmem:[%s9 + $0x618] sm:$0xff]
  %v2435 = vld [vmem:[%s9 + $0x620] sm:$0xff]
  %v2436 = vld [vmem:[%s9 + $0x628] sm:$0xff]
  %v2437 = vld [vmem:[%s9 + $0x630] sm:$0xff]
  %v2438 = vld [vmem:[%s9 + $0x638] sm:$0xff]
  %v2439 = vld [vmem:[%s9 + $0x640] sm:$0xff]
  %v2440 = vld [vmem:[%s9 + $0x648] sm:$0xff]
  %v2441 = vld [vmem:[%s9 + $0x650] sm:$0xff]
  %v2442 = vld [vmem:[%s9 + $0x658] sm:$0xff]
  %v2443 = vld [vmem:[%s9 + $0x660] sm:$0xff]
  %v2444 = vld [vmem:[%s9 + $0x668] sm:$0xff]
  %v2445 = vld [vmem:[%s9 + $0x670] sm:$0xff]
  %v2446 = vld [vmem:[%s9 + $0x678] sm:$0xff]
  %v2447 = vld [vmem:[%s9 + $0x680] sm:$0xff]
  %v2448 = vld [vmem:[%s9 + $0x688] sm:$0xff]
  %v2449 = vld [vmem:[%s9 + $0x690] sm:$0xff]
  %v2450 = vld [vmem:[%s9 + $0x698] sm:$0xff]
  %v2451 = vld [vmem:[%s9 + $0x6a0] sm:$0xff]
  %v2452 = vld [vmem:[%s9 + $0x6a8] sm:$0xff]
  %v2453 = vld [vmem:[%s9 + $0x6b0] sm:$0xff]
  %v2454 = vld [vmem:[%s9 + $0x6b8] sm:$0xff]
  %v2455 = vld [vmem:[%s9 + $0x6c0] sm:$0xff]
  %v2456 = vld [vmem:[%s9 + $0x6c8] sm:$0xff]
  %v2457 = vld [vmem:[%s9 + $0x6d0] sm:$0xff]
  %v2458 = vld [vmem:[%s9 + $0x6d8] sm:$0xff]
  %v2459 = vld [vmem:[%s9 + $0x6e0] sm:$0xff]
  %v2460 = vld [vmem:[%s9 + $0x6e8] sm:$0xff]
  %v2461 = vld [vmem:[%s9 + $0x6f0] sm:$0xff]
  %v2462 = vld [vmem:[%s9 + $0x6f8] sm:$0xff]
  %v2463 = vld [vmem:[%s9 + $0x700] sm:$0xff]
  %v2464 = vld [vmem:[%s9 + $0x708] sm:$0xff]
  %v2465 = vld [vmem:[%s9 + $0x710] sm:$0xff]
  %v2466 = vld [vmem:[%s9 + $0x718] sm:$0xff]
  %v2467 = vld [vmem:[%s9 + $0x720] sm:$0xff]
  %v2468 = vld [vmem:[%s9 + $0x728] sm:$0xff]
  %v2469 = vld [vmem:[%s9 + $0x730] sm:$0xff]
  %v2470 = vld [vmem:[%s9 + $0x738] sm:$0xff]
  %v2471 = vld [vmem:[%s9 + $0x740] sm:$0xff]
  %v2472 = vld [vmem:[%s9 + $0x748] sm:$0xff]
  %v2473 = vld [vmem:[%s9 + $0x750] sm:$0xff]
  %v2474 = vld [vmem:[%s9 + $0x758] sm:$0xff]
  %v2475 = vld [vmem:[%s9 + $0x760] sm:$0xff]
  %v2476 = vld [vmem:[%s9 + $0x768] sm:$0xff]
  %v2477 = vld [vmem:[%s9 + $0x770] sm:$0xff]
  %v2478 = vld [vmem:[%s9 + $0x778] sm:$0xff]
  %v2479 = vld [vmem:[%s9 + $0x780] sm:$0xff]
  %v2480 = vld [vmem:[%s9 + $0x788] sm:$0xff]
  %v2481 = vld [vmem:[%s9 + $0x790] sm:$0xff]
  %v2482 = vld [vmem:[%s9 + $0x798] sm:$0xff]
  %v2483 = vld [vmem:[%s9 + $0x7a0] sm:$0xff]
  %v2484 = vld [vmem:[%s9 + $0x7a8] sm:$0xff]
  %v2485 = vld [vmem:[%s9 + $0x7b0] sm:$0xff]
  %v2486 = vld [vmem:[%s9 + $0x7b8] sm:$0xff]
  %v2487 = vld [vmem:[%s9 + $0x7c0] sm:$0xff]
  %v2488 = vld [vmem:[%s9 + $0x7c8] sm:$0xff]
  %v2489 = vld [vmem:[%s9 + $0x7d0] sm:$0xff]
  %v2490 = vld [vmem:[%s9 + $0x7d8] sm:$0xff]
  %v2491 = vld [vmem:[%s9 + $0x7e0] sm:$0xff]
  %v2492 = vld [vmem:[%s9 + $0x7e8] sm:$0xff]
  %v2493 = vld [vmem:[%s9 + $0x7f0] sm:$0xff]
  %v2494 = vld [vmem:[%s9 + $0x7f8] sm:$0xff]
  %v2495 = vld [vmem:[%s9 + $0x800] sm:$0xff]
  %v2496 = vld [vmem:[%s9 + $0x808] sm:$0xff]
  %v2497 = vld [vmem:[%s9 + $0x810] sm:$0xff]
  %v2498 = vld [vmem:[%s9 + $0x818] sm:$0xff]
  %v2499 = vld [vmem:[%s9 + $0x820] sm:$0xff]
  %v2500 = vld [vmem:[%s9 + $0x828] sm:$0xff]
  %v2501 = vld [vmem:[%s9 + $0x830] sm:$0xff]
  %v2502 = vld [vmem:[%s9 + $0x838] sm:$0xff]
  %v2503 = vld [vmem:[%s9 + $0x840] sm:$0xff]
  %v2504 = vld [vmem:[%s9 + $0x848] sm:$0xff]
  %v2505 = vld [vmem:[%s9 + $0x850] sm:$0xff]
  %v2506 = vld [vmem:[%s9 + $0x858] sm:$0xff]
  %v2507 = vld [vmem:[%s9 + $0x860] sm:$0xff]
  %v2508 = vld [vmem:[%s9 + $0x868] sm:$0xff]
  %v2509 = vld [vmem:[%s9 + $0x870] sm:$0xff]
  %v2510 = vld [vmem:[%s9 + $0x878] sm:$0xff]
  %v2511 = vld [vmem:[%s9 + $0x880] sm:$0xff]
  %v2512 = vld [vmem:[%s9 + $0x888] sm:$0xff]
  %v2513 = vld [vmem:[%s9 + $0x890] sm:$0xff]
  %v2514 = vld [vmem:[%s9 + $0x898] sm:$0xff]
  %v2515 = vld [vmem:[%s9 + $0x8a0] sm:$0xff]
  %v2516 = vld [vmem:[%s9 + $0x8a8] sm:$0xff]
  %v2517 = vld [vmem:[%s9 + $0x8b0] sm:$0xff]
  %v2518 = vld [vmem:[%s9 + $0x8b8] sm:$0xff]
  %v2519 = vld [vmem:[%s9 + $0x8c0] sm:$0xff]
  %v2520 = vld [vmem:[%s9 + $0x8c8] sm:$0xff]
  %v2521 = vld [vmem:[%s9 + $0x8d0] sm:$0xff]
  %v2522 = vld [vmem:[%s9 + $0x8d8] sm:$0xff]
  %v2523 = vld [vmem:[%s9 + $0x8e0] sm:$0xff]
  %v2524 = vld [vmem:[%s9 + $0x8e8] sm:$0xff]
  %v2525 = vld [vmem:[%s9 + $0x8f0] sm:$0xff]
  %v2526 = vld [vmem:[%s9 + $0x8f8] sm:$0xff]
  %v2527 = vld [vmem:[%s9 + $0x900] sm:$0xff]
  %v2528 = vld [vmem:[%s9 + $0x908] sm:$0xff]
  %v2529 = vld [vmem:[%s9 + $0x910] sm:$0xff]
  %v2530 = vld [vmem:[%s9 + $0x918] sm:$0xff]
  %v2531 = vld [vmem:[%s9 + $0x920] sm:$0xff]
  %v2532 = vld [vmem:[%s9 + $0x928] sm:$0xff]
  %v2533 = vld [vmem:[%s9 + $0x930] sm:$0xff]
  %v2534 = vld [vmem:[%s9 + $0x938] sm:$0xff]
  %v2535 = vld [vmem:[%s9 + $0x940] sm:$0xff]
  %v2536 = vld [vmem:[%s9 + $0x948] sm:$0xff]
  %v2537 = vld [vmem:[%s9 + $0x950] sm:$0xff]
  %v2538 = vld [vmem:[%s9 + $0x958] sm:$0xff]
  %v2539 = vld [vmem:[%s9 + $0x960] sm:$0xff]
  %v2540 = vld [vmem:[%s9 + $0x968] sm:$0xff]
  %v2541 = vld [vmem:[%s9 + $0x970] sm:$0xff]
  %v2542 = vld [vmem:[%s9 + $0x978] sm:$0xff]
  %v2543 = vld [vmem:[%s9 + $0x980] sm:$0xff]
  %v2544 = vld [vmem:[%s9 + $0x988] sm:$0xff]
  %v2545 = vld [vmem:[%s9 + $0x990] sm:$0xff]
  %v2546 = vld [vmem:[%s9 + $0x998] sm:$0xff]
  %v2547 = vld [vmem:[%s9 + $0x9a0] sm:$0xff]
  %v2548 = vld [vmem:[%s9 + $0x9a8] sm:$0xff]
  %v2549 = vld [vmem:[%s9 + $0x9b0] sm:$0xff]
  %v2550 = vld [vmem:[%s9 + $0x9b8] sm:$0xff]
  %v2551 = vld [vmem:[%s9 + $0x9c0] sm:$0xff]
  %v2552 = vld [vmem:[%s9 + $0x9c8] sm:$0xff]
  %v2553 = vld [vmem:[%s9 + $0x9d0] sm:$0xff]
  %v2554 = vld [vmem:[%s9 + $0x9d8] sm:$0xff]
  %v2555 = vld [vmem:[%s9 + $0x9e0] sm:$0xff]
  %v2556 = vld [vmem:[%s9 + $0x9e8] sm:$0xff]
  %v2557 = vld [vmem:[%s9 + $0x9f0] sm:$0xff]
  %v2558 = vld [vmem:[%s9 + $0x9f8] sm:$0xff]
  %v2559 = vld [vmem:[%s9 + $0xa00] sm:$0xff]
  %v2560 = vld [vmem:[%s9 + $0xa08] sm:$0xff]
  %v2561 = vld [vmem:[%s9 + $0xa10] sm:$0xff]
  %v2562 = vld [vmem:[%s9 + $0xa18] sm:$0xff]
  %v2563 = vld [vmem:[%s9 + $0xa20] sm:$0xff]
  %v2564 = vld [vmem:[%s9 + $0xa28] sm:$0xff]
  %v2565 = vld [vmem:[%s9 + $0xa30] sm:$0xff]
  %v2566 = vld [vmem:[%s9 + $0xa38] sm:$0xff]
  %v2567 = vld [vmem:[%s9 + $0xa40] sm:$0xff]
  %v2568 = vld [vmem:[%s9 + $0xa48] sm:$0xff]
  %v2569 = vld [vmem:[%s9 + $0xa50] sm:$0xff]
  %v2570 = vld [vmem:[%s9 + $0xa58] sm:$0xff]
  %v2571 = vld [vmem:[%s9 + $0xa60] sm:$0xff]
  %v2572 = vld [vmem:[%s9 + $0xa68] sm:$0xff]
  %v2573 = vld [vmem:[%s9 + $0xa70] sm:$0xff]
  %v2574 = vld [vmem:[%s9 + $0xa78] sm:$0xff]
  %v2575 = vld [vmem:[%s9 + $0xa80] sm:$0xff]
  %v2576 = vld [vmem:[%s9 + $0xa88] sm:$0xff]
  %v2577 = vld [vmem:[%s9 + $0xa90] sm:$0xff]
  %v2578 = vld [vmem:[%s9 + $0xa98] sm:$0xff]
  %v2579 = vld [vmem:[%s9 + $0xaa0] sm:$0xff]
  %v2580 = vld [vmem:[%s9 + $0xaa8] sm:$0xff]
  %v2581 = vld [vmem:[%s9 + $0xab0] sm:$0xff]
  %v2582 = vld [vmem:[%s9 + $0xab8] sm:$0xff]
  %v2583 = vld [vmem:[%s9 + $0xac0] sm:$0xff]
  %v2584 = vld [vmem:[%s9 + $0xac8] sm:$0xff]
  %v2585 = vld [vmem:[%s9 + $0xad0] sm:$0xff]
  %v2586 = vld [vmem:[%s9 + $0xad8] sm:$0xff]
  %v2587 = vld [vmem:[%s9 + $0xae0] sm:$0xff]
  %v2588 = vld [vmem:[%s9 + $0xae8] sm:$0xff]
  %v2589 = vld [vmem:[%s10 + $0x13] sm:$0xff]
  %v2591 = vlaneseq
  %v2592 = vshrl.u32 %v2591, 7
  %v2593 = vsub.s32 0, %v2592
  %v2594 = vrot.slane %v2589, %v2593
  %v2595 = vlaneseq
  %v2596 = vshrl.u32 %v2595, 7
  %v2597 = vsub.s32 1, %v2596
  %v2598 = vrot.slane %v2589, %v2597
  %v2599 = vlaneseq
  %v2600 = vshrl.u32 %v2599, 7
  %v2601 = vsub.s32 2, %v2600
  %v2602 = vrot.slane %v2589, %v2601
  %v2603 = vlaneseq
  %v2604 = vshrl.u32 %v2603, 7
  %v2605 = vsub.s32 3, %v2604
  %v2606 = vrot.slane %v2589, %v2605
  %v2607 = vlaneseq
  %v2608 = vshrl.u32 %v2607, 7
  %v2609 = vsub.s32 4, %v2608
  %v2610 = vrot.slane %v2589, %v2609
  %v2611 = vlaneseq
  %v2612 = vshrl.u32 %v2611, 7
  %v2613 = vsub.s32 5, %v2612
  %v2614 = vrot.slane %v2589, %v2613
  %v2615 = vlaneseq
  %v2616 = vshrl.u32 %v2615, 7
  %v2617 = vsub.s32 6, %v2616
  %v2618 = vrot.slane %v2589, %v2617
  %v2627 = vsel %vm461, %v2238, 0
  %2629 = vmatprep.subr.mxu0 %v2240
  %2630 = vmatpush1.msra.mxu0 %v2239
  %2631 = vmatprep.subr.mxu0 %v2247
  %2632 = vmatpush1.msra.mxu0 %v2246
  %2633 = vmatprep.subr.mxu0 %v2254
  %2634 = vmatpush1.msra.mxu0 %v2253
  %2635 = vmatprep.subr.mxu0 %v2261
  %2636 = vmatpush1.msra.mxu0 %v2260
  %2637 = vmatprep.subr.mxu0 %v2268
  %2638 = vmatpush1.msra.mxu0 %v2267
  %2639 = vmatprep.subr.mxu0 %v2275
  %2640 = vmatpush1.msra.mxu0 %v2274
  %2641 = vmatprep.subr.mxu0 %v2282
  %2642 = vmatpush1.msra.mxu0 %v2281
  %2643 = vmatprep.subr.mxu0 %v2289
  %2644 = vmatpush1.msra.mxu0 %v2288
  %2645 = vmatprep.subr.mxu0 %v2296
  %2646 = vmatpush1.msra.mxu0 %v2295
  %2647 = vmatprep.subr.mxu0 %v2303
  %2648 = vmatpush1.msra.mxu0 %v2302
  %2649 = vmatprep.subr.mxu0 %v2310
  %2650 = vmatpush1.msra.mxu0 %v2309
  %2651 = vmatprep.subr.mxu0 %v2317
  %2652 = vmatpush1.msra.mxu0 %v2316
  %2653 = vmatprep.subr.mxu0 %v2324
  %2654 = vmatpush1.msra.mxu0 %v2323
  %2655 = vmatprep.subr.mxu0 %v2331
  %2656 = vmatpush1.msra.mxu0 %v2330
  %2657 = vmatprep.subr.mxu0 %v2338
  %2658 = vmatpush1.msra.mxu0 %v2337
  %2659 = vmatprep.subr.mxu0 %v2345
  %2660 = vmatpush1.msra.mxu0 %v2344
  %2661 = vmatprep.subr.mxu0 %v2352
  %2662 = vmatpush1.msra.mxu0 %v2351
  %2663 = vmatprep.subr.mxu0 %v2359
  %2664 = vmatpush1.msra.mxu0 %v2358
  %2665 = vmatprep.subr.mxu0 %v2366
  %2666 = vmatpush1.msra.mxu0 %v2365
  %2667 = vmatprep.subr.mxu0 %v2373
  %2668 = vmatpush1.msra.mxu0 %v2372
  %2669 = vmatprep.subr.mxu0 %v2380
  %2670 = vmatpush1.msra.mxu0 %v2379
  %2671 = vmatprep.subr.mxu0 %v2387
  %2672 = vmatpush1.msra.mxu0 %v2386
  %2673 = vmatprep.subr.mxu0 %v2394
  %2674 = vmatpush1.msra.mxu0 %v2393
  %2675 = vmatprep.subr.mxu0 %v2401
  %2676 = vmatpush1.msra.mxu0 %v2400
  %2677 = vmatprep.subr.mxu0 %v2408
  %2678 = vmatpush1.msra.mxu0 %v2407
  %2679 = vmatprep.subr.mxu0 %v2415
  %2680 = vmatpush1.msra.mxu0 %v2414
  %2681 = vmatprep.subr.mxu0 %v2422
  %2682 = vmatpush1.msra.mxu0 %v2421
  %2683 = vmatprep.subr.mxu0 %v2429
  %2684 = vmatpush1.msra.mxu0 %v2428
  %2685 = vmatprep.subr.mxu0 %v2436
  %2686 = vmatpush1.msra.mxu0 %v2435
  %2687 = vmatprep.subr.mxu0 %v2443
  %2688 = vmatpush1.msra.mxu0 %v2442
  %2689 = vmatprep.subr.mxu0 %v2450
  %2690 = vmatpush1.msra.mxu0 %v2449
  %2691 = vmatprep.subr.mxu0 %v2457
  %2692 = vmatpush1.msra.mxu0 %v2456
  %2693 = vmatprep.mubr.f32.mxu0 %v2236
  %2694 = vmatmul.mubr.f32.gmra.mrb[0].mxu0 %v2235
  %v2695 = vpop.f32.mrb[0].mxu0
  %v2696 = vadd.f32 %v2594, %v2695
  %v2697 = vpop.f32.mrb[0].mxu0
  %v2698 = vadd.f32 %v2598, %v2697
  %2699 = vdwg.mxu0
  %2700 = vmatprep.subr.mxu0 %v2464
  %2701 = vmatpush1.msra.mxu0 %v2463
  %2702 = vmatprep.subr.mxu0 %v2471
  %2703 = vmatpush1.msra.mxu0 %v2470
  %2704 = vmatprep.subr.mxu0 %v2478
  %2705 = vmatpush1.msra.mxu0 %v2477
  %2706 = vmatprep.subr.mxu0 %v2485
  %2707 = vmatpush1.msra.mxu0 %v2484
  %2708 = vmatprep.subr.mxu0 %v2492
  %2709 = vmatpush1.msra.mxu0 %v2491
  %2710 = vmatprep.subr.mxu0 %v2499
  %2711 = vmatpush1.msra.mxu0 %v2498
  %2712 = vmatprep.subr.mxu0 %v2506
  %2713 = vmatpush1.msra.mxu0 %v2505
  %2714 = vmatprep.subr.mxu0 %v2513
  %2715 = vmatpush1.msra.mxu0 %v2512
  %2716 = vmatprep.subr.mxu0 %v2520
  %2717 = vmatpush1.msra.mxu0 %v2519
  %2718 = vmatprep.subr.mxu0 %v2527
  %2719 = vmatpush1.msra.mxu0 %v2526
  %2720 = vmatprep.subr.mxu0 %v2534
  %2721 = vmatpush1.msra.mxu0 %v2533
  %2722 = vmatprep.subr.mxu0 %v2541
  %2723 = vmatpush1.msra.mxu0 %v2540
  %2724 = vmatprep.subr.mxu0 %v2548
  %2725 = vmatpush1.msra.mxu0 %v2547
  %2726 = vmatprep.subr.mxu0 %v2555
  %2727 = vmatpush1.msra.mxu0 %v2554
  %2728 = vmatprep.subr.mxu0 %v2562
  %2729 = vmatpush1.msra.mxu0 %v2561
  %2730 = vmatprep.subr.mxu0 %v2569
  %2731 = vmatpush1.msra.mxu0 %v2568
  %2732 = vmatprep.subr.mxu0 %v2576
  %2733 = vmatpush1.msra.mxu0 %v2575
  %2734 = vmatprep.subr.mxu0 %v2583
  %2735 = vmatpush1.msra.mxu0 %v2582
  %2736 = vmatprep.subr.mxu0 0.0
  %2737 = vmatpush1.msra.mxu0 0.0
  %2738 = vmatprep.subr.mxu0 0.0
  %2739 = vmatpush1.msra.mxu0 0.0
  %2740 = vmatprep.subr.mxu0 0.0
  %2741 = vmatpush1.msra.mxu0 0.0
  %2742 = vmatprep.subr.mxu0 0.0
  %2743 = vmatpush1.msra.mxu0 0.0
  %2744 = vmatprep.subr.mxu0 0.0
  %2745 = vmatpush1.msra.mxu0 0.0
  %2746 = vmatprep.subr.mxu0 0.0
  %2747 = vmatpush1.msra.mxu0 0.0
  %2748 = vmatprep.subr.mxu0 0.0
  %2749 = vmatpush1.msra.mxu0 0.0
  %2750 = vmatprep.subr.mxu0 0.0
  %2751 = vmatpush1.msra.mxu0 0.0
  %2752 = vmatprep.subr.mxu0 0.0
  %2753 = vmatpush1.msra.mxu0 0.0
  %2754 = vmatprep.subr.mxu0 0.0
  %2755 = vmatpush1.msra.mxu0 0.0
  %2756 = vmatprep.subr.mxu0 0.0
  %2757 = vmatpush1.msra.mxu0 0.0
  %2758 = vmatprep.subr.mxu0 0.0
  %2759 = vmatpush1.msra.mxu0 0.0
  %2760 = vmatprep.subr.mxu0 0.0
  %2761 = vmatpush1.msra.mxu0 0.0
  %2762 = vmatprep.subr.mxu0 0.0
  %2763 = vmatpush1.msra.mxu0 0.0
  %2764 = vmatprep.mubr.f32.mxu0 %v2627
  %2765 = vmatmul.mubr.f32.gmra.mrb[0].mxu0 %v2237
  %v2766 = vpop.f32.mrb[0].mxu0
  %v2767 = vadd.f32 %v2696, %v2766
  %v2768 = vpop.f32.mrb[0].mxu0
  %v2769 = vadd.f32 %v2698, %v2768
  %2770 = vdwg.mxu0
  %2771 = vmatprep.subr.mxu0 %v2242
  %2772 = vmatpush1.msra.mxu0 %v2241
  %2773 = vmatprep.subr.mxu0 %v2249
  %2774 = vmatpush1.msra.mxu0 %v2248
  %2775 = vmatprep.subr.mxu0 %v2256
  %2776 = vmatpush1.msra.mxu0 %v2255
  %2777 = vmatprep.subr.mxu0 %v2263
  %2778 = vmatpush1.msra.mxu0 %v2262
  %2779 = vmatprep.subr.mxu0 %v2270
  %2780 = vmatpush1.msra.mxu0 %v2269
  %2781 = vmatprep.subr.mxu0 %v2277
  %2782 = vmatpush1.msra.mxu0 %v2276
  %2783 = vmatprep.subr.mxu0 %v2284
  %2784 = vmatpush1.msra.mxu0 %v2283
  %2785 = vmatprep.subr.mxu0 %v2291
  %2786 = vmatpush1.msra.mxu0 %v2290
  %2787 = vmatprep.subr.mxu0 %v2298
  %2788 = vmatpush1.msra.mxu0 %v2297
  %2789 = vmatprep.subr.mxu0 %v2305
  %2790 = vmatpush1.msra.mxu0 %v2304
  %2791 = vmatprep.subr.mxu0 %v2312
  %2792 = vmatpush1.msra.mxu0 %v2311
  %2793 = vmatprep.subr.mxu0 %v2319
  %2794 = vmatpush1.msra.mxu0 %v2318
  %2795 = vmatprep.subr.mxu0 %v2326
  %2796 = vmatpush1.msra.mxu0 %v2325
  %2797 = vmatprep.subr.mxu0 %v2333
  %2798 = vmatpush1.msra.mxu0 %v2332
  %2799 = vmatprep.subr.mxu0 %v2340
  %2800 = vmatpush1.msra.mxu0 %v2339
  %2801 = vmatprep.subr.mxu0 %v2347
  %2802 = vmatpush1.msra.mxu0 %v2346
  %2803 = vmatprep.subr.mxu0 %v2354
  %2804 = vmatpush1.msra.mxu0 %v2353
  %2805 = vmatprep.subr.mxu0 %v2361
  %2806 = vmatpush1.msra.mxu0 %v2360
  %2807 = vmatprep.subr.mxu0 %v2368
  %2808 = vmatpush1.msra.mxu0 %v2367
  %2809 = vmatprep.subr.mxu0 %v2375
  %2810 = vmatpush1.msra.mxu0 %v2374
  %2811 = vmatprep.subr.mxu0 %v2382
  %2812 = vmatpush1.msra.mxu0 %v2381
  %2813 = vmatprep.subr.mxu0 %v2389
  %2814 = vmatpush1.msra.mxu0 %v2388
  %2815 = vmatprep.subr.mxu0 %v2396
  %2816 = vmatpush1.msra.mxu0 %v2395
  %2817 = vmatprep.subr.mxu0 %v2403
  %2818 = vmatpush1.msra.mxu0 %v2402
  %2819 = vmatprep.subr.mxu0 %v2410
  %2820 = vmatpush1.msra.mxu0 %v2409
  %2821 = vmatprep.subr.mxu0 %v2417
  %2822 = vmatpush1.msra.mxu0 %v2416
  %2823 = vmatprep.subr.mxu0 %v2424
  %2824 = vmatpush1.msra.mxu0 %v2423
  %2825 = vmatprep.subr.mxu0 %v2431
  %2826 = vmatpush1.msra.mxu0 %v2430
  %2827 = vmatprep.subr.mxu0 %v2438
  %2828 = vmatpush1.msra.mxu0 %v2437
  %2829 = vmatprep.subr.mxu0 %v2445
  %2830 = vmatpush1.msra.mxu0 %v2444
  %2831 = vmatprep.subr.mxu0 %v2452
  %2832 = vmatpush1.msra.mxu0 %v2451
  %2833 = vmatprep.subr.mxu0 %v2459
  %2834 = vmatpush1.msra.mxu0 %v2458
  %2835 = vmatprep.mubr.f32.mxu0 %v2236
  %2836 = vmatmul.mubr.f32.gmra.mrb[0].mxu0 %v2235
  %v2837 = vpop.f32.mrb[0].mxu0
  %v2838 = vadd.f32 %v2602, %v2837
  %v2839 = vpop.f32.mrb[0].mxu0
  %v2840 = vadd.f32 %v2606, %v2839
  %2841 = vdwg.mxu0
  %2842 = vmatprep.subr.mxu0 %v2466
  %2843 = vmatpush1.msra.mxu0 %v2465
  %2844 = vmatprep.subr.mxu0 %v2473
  %2845 = vmatpush1.msra.mxu0 %v2472
  %2846 = vmatprep.subr.mxu0 %v2480
  %2847 = vmatpush1.msra.mxu0 %v2479
  %2848 = vmatprep.subr.mxu0 %v2487
  %2849 = vmatpush1.msra.mxu0 %v2486
  %2850 = vmatprep.subr.mxu0 %v2494
  %2851 = vmatpush1.msra.mxu0 %v2493
  %2852 = vmatprep.subr.mxu0 %v2501
  %2853 = vmatpush1.msra.mxu0 %v2500
  %2854 = vmatprep.subr.mxu0 %v2508
  %2855 = vmatpush1.msra.mxu0 %v2507
  %2856 = vmatprep.subr.mxu0 %v2515
  %2857 = vmatpush1.msra.mxu0 %v2514
  %2858 = vmatprep.subr.mxu0 %v2522
  %2859 = vmatpush1.msra.mxu0 %v2521
  %2860 = vmatprep.subr.mxu0 %v2529
  %2861 = vmatpush1.msra.mxu0 %v2528
  %2862 = vmatprep.subr.mxu0 %v2536
  %2863 = vmatpush1.msra.mxu0 %v2535
  %2864 = vmatprep.subr.mxu0 %v2543
  %2865 = vmatpush1.msra.mxu0 %v2542
  %2866 = vmatprep.subr.mxu0 %v2550
  %2867 = vmatpush1.msra.mxu0 %v2549
  %2868 = vmatprep.subr.mxu0 %v2557
  %2869 = vmatpush1.msra.mxu0 %v2556
  %2870 = vmatprep.subr.mxu0 %v2564
  %2871 = vmatpush1.msra.mxu0 %v2563
  %2872 = vmatprep.subr.mxu0 %v2571
  %2873 = vmatpush1.msra.mxu0 %v2570
  %2874 = vmatprep.subr.mxu0 %v2578
  %2875 = vmatpush1.msra.mxu0 %v2577
  %2876 = vmatprep.subr.mxu0 %v2585
  %2877 = vmatpush1.msra.mxu0 %v2584
  %2878 = vmatprep.subr.mxu0 0.0
  %2879 = vmatpush1.msra.mxu0 0.0
  %2880 = vmatprep.subr.mxu0 0.0
  %2881 = vmatpush1.msra.mxu0 0.0
  %2882 = vmatprep.subr.mxu0 0.0
  %2883 = vmatpush1.msra.mxu0 0.0
  %2884 = vmatprep.subr.mxu0 0.0
  %2885 = vmatpush1.msra.mxu0 0.0
  %2886 = vmatprep.subr.mxu0 0.0
  %2887 = vmatpush1.msra.mxu0 0.0
  %2888 = vmatprep.subr.mxu0 0.0
  %2889 = vmatpush1.msra.mxu0 0.0
  %2890 = vmatprep.subr.mxu0 0.0
  %2891 = vmatpush1.msra.mxu0 0.0
  %2892 = vmatprep.subr.mxu0 0.0
  %2893 = vmatpush1.msra.mxu0 0.0
  %2894 = vmatprep.subr.mxu0 0.0
  %2895 = vmatpush1.msra.mxu0 0.0
  %2896 = vmatprep.subr.mxu0 0.0
  %2897 = vmatpush1.msra.mxu0 0.0
  %2898 = vmatprep.subr.mxu0 0.0
  %2899 = vmatpush1.msra.mxu0 0.0
  %2900 = vmatprep.subr.mxu0 0.0
  %2901 = vmatpush1.msra.mxu0 0.0
  %2902 = vmatprep.subr.mxu0 0.0
  %2903 = vmatpush1.msra.mxu0 0.0
  %2904 = vmatprep.subr.mxu0 0.0
  %2905 = vmatpush1.msra.mxu0 0.0
  %2906 = vmatprep.mubr.f32.mxu0 %v2627
  %2907 = vmatmul.mubr.f32.gmra.mrb[0].mxu0 %v2237
  %v2908 = vpop.f32.mrb[0].mxu0
  %v2909 = vadd.f32 %v2838, %v2908
  %v2910 = vpop.f32.mrb[0].mxu0
  %v2911 = vadd.f32 %v2840, %v2910
  %2912 = vdwg.mxu0
  %2913 = vmatprep.subr.mxu0 %v2244
  %2914 = vmatpush1.msra.mxu0 %v2243
  %2915 = vmatprep.subr.mxu0 %v2251
  %2916 = vmatpush1.msra.mxu0 %v2250
  %2917 = vmatprep.subr.mxu0 %v2258
  %2918 = vmatpush1.msra.mxu0 %v2257
  %2919 = vmatprep.subr.mxu0 %v2265
  %2920 = vmatpush1.msra.mxu0 %v2264
  %2921 = vmatprep.subr.mxu0 %v2272
  %2922 = vmatpush1.msra.mxu0 %v2271
  %2923 = vmatprep.subr.mxu0 %v2279
  %2924 = vmatpush1.msra.mxu0 %v2278
  %2925 = vmatprep.subr.mxu0 %v2286
  %2926 = vmatpush1.msra.mxu0 %v2285
  %2927 = vmatprep.subr.mxu0 %v2293
  %2928 = vmatpush1.msra.mxu0 %v2292
  %2929 = vmatprep.subr.mxu0 %v2300
  %2930 = vmatpush1.msra.mxu0 %v2299
  %2931 = vmatprep.subr.mxu0 %v2307
  %2932 = vmatpush1.msra.mxu0 %v2306
  %2933 = vmatprep.subr.mxu0 %v2314
  %2934 = vmatpush1.msra.mxu0 %v2313
  %2935 = vmatprep.subr.mxu0 %v2321
  %2936 = vmatpush1.msra.mxu0 %v2320
  %2937 = vmatprep.subr.mxu0 %v2328
  %2938 = vmatpush1.msra.mxu0 %v2327
  %2939 = vmatprep.subr.mxu0 %v2335
  %2940 = vmatpush1.msra.mxu0 %v2334
  %2941 = vmatprep.subr.mxu0 %v2342
  %2942 = vmatpush1.msra.mxu0 %v2341
  %2943 = vmatprep.subr.mxu0 %v2349
  %2944 = vmatpush1.msra.mxu0 %v2348
  %2945 = vmatprep.subr.mxu0 %v2356
  %2946 = vmatpush1.msra.mxu0 %v2355
  %2947 = vmatprep.subr.mxu0 %v2363
  %2948 = vmatpush1.msra.mxu0 %v2362
  %2949 = vmatprep.subr.mxu0 %v2370
  %2950 = vmatpush1.msra.mxu0 %v2369
  %2951 = vmatprep.subr.mxu0 %v2377
  %2952 = vmatpush1.msra.mxu0 %v2376
  %2953 = vmatprep.subr.mxu0 %v2384
  %2954 = vmatpush1.msra.mxu0 %v2383
  %2955 = vmatprep.subr.mxu0 %v2391
  %2956 = vmatpush1.msra.mxu0 %v2390
  %2957 = vmatprep.subr.mxu0 %v2398
  %2958 = vmatpush1.msra.mxu0 %v2397
  %2959 = vmatprep.subr.mxu0 %v2405
  %2960 = vmatpush1.msra.mxu0 %v2404
  %2961 = vmatprep.subr.mxu0 %v2412
  %2962 = vmatpush1.msra.mxu0 %v2411
  %2963 = vmatprep.subr.mxu0 %v2419
  %2964 = vmatpush1.msra.mxu0 %v2418
  %2965 = vmatprep.subr.mxu0 %v2426
  %2966 = vmatpush1.msra.mxu0 %v2425
  %2967 = vmatprep.subr.mxu0 %v2433
  %2968 = vmatpush1.msra.mxu0 %v2432
  %2969 = vmatprep.subr.mxu0 %v2440
  %2970 = vmatpush1.msra.mxu0 %v2439
  %2971 = vmatprep.subr.mxu0 %v2447
  %2972 = vmatpush1.msra.mxu0 %v2446
  %2973 = vmatprep.subr.mxu0 %v2454
  %2974 = vmatpush1.msra.mxu0 %v2453
  %2975 = vmatprep.subr.mxu0 %v2461
  %2976 = vmatpush1.msra.mxu0 %v2460
  %2977 = vmatprep.mubr.f32.mxu0 %v2236
  %2978 = vmatmul.mubr.f32.gmra.mrb[0].mxu0 %v2235
  %v2979 = vpop.f32.mrb[0].mxu0
  %v2980 = vadd.f32 %v2610, %v2979
  %v2981 = vpop.f32.mrb[0].mxu0
  %v2982 = vadd.f32 %v2614, %v2981
  %2983 = vdwg.mxu0
  %2984 = vmatprep.subr.mxu0 %v2468
  %2985 = vmatpush1.msra.mxu0 %v2467
  %2986 = vmatprep.subr.mxu0 %v2475
  %2987 = vmatpush1.msra.mxu0 %v2474
  %2988 = vmatprep.subr.mxu0 %v2482
  %2989 = vmatpush1.msra.mxu0 %v2481
  %2990 = vmatprep.subr.mxu0 %v2489
  %2991 = vmatpush1.msra.mxu0 %v2488
  %2992 = vmatprep.subr.mxu0 %v2496
  %2993 = vmatpush1.msra.mxu0 %v2495
  %2994 = vmatprep.subr.mxu0 %v2503
  %2995 = vmatpush1.msra.mxu0 %v2502
  %2996 = vmatprep.subr.mxu0 %v2510
  %2997 = vmatpush1.msra.mxu0 %v2509
  %2998 = vmatprep.subr.mxu0 %v2517
  %2999 = vmatpush1.msra.mxu0 %v2516
  %3000 = vmatprep.subr.mxu0 %v2524
  %3001 = vmatpush1.msra.mxu0 %v2523
  %3002 = vmatprep.subr.mxu0 %v2531
  %3003 = vmatpush1.msra.mxu0 %v2530
  %3004 = vmatprep.subr.mxu0 %v2538
  %3005 = vmatpush1.msra.mxu0 %v2537
  %3006 = vmatprep.subr.mxu0 %v2545
  %3007 = vmatpush1.msra.mxu0 %v2544
  %3008 = vmatprep.subr.mxu0 %v2552
  %3009 = vmatpush1.msra.mxu0 %v2551
  %3010 = vmatprep.subr.mxu0 %v2559
  %3011 = vmatpush1.msra.mxu0 %v2558
  %3012 = vmatprep.subr.mxu0 %v2566
  %3013 = vmatpush1.msra.mxu0 %v2565
  %3014 = vmatprep.subr.mxu0 %v2573
  %3015 = vmatpush1.msra.mxu0 %v2572
  %3016 = vmatprep.subr.mxu0 %v2580
  %3017 = vmatpush1.msra.mxu0 %v2579
  %3018 = vmatprep.subr.mxu0 %v2587
  %3019 = vmatpush1.msra.mxu0 %v2586
  %3020 = vmatprep.subr.mxu0 0.0
  %3021 = vmatpush1.msra.mxu0 0.0
  %3022 = vmatprep.subr.mxu0 0.0
  %3023 = vmatpush1.msra.mxu0 0.0
  %3024 = vmatprep.subr.mxu0 0.0
  %3025 = vmatpush1.msra.mxu0 0.0
  %3026 = vmatprep.subr.mxu0 0.0
  %3027 = vmatpush1.msra.mxu0 0.0
  %3028 = vmatprep.subr.mxu0 0.0
  %3029 = vmatpush1.msra.mxu0 0.0
  %3030 = vmatprep.subr.mxu0 0.0
  %3031 = vmatpush1.msra.mxu0 0.0
  %3032 = vmatprep.subr.mxu0 0.0
  %3033 = vmatpush1.msra.mxu0 0.0
  %3034 = vmatprep.subr.mxu0 0.0
  %3035 = vmatpush1.msra.mxu0 0.0
  %3036 = vmatprep.subr.mxu0 0.0
  %3037 = vmatpush1.msra.mxu0 0.0
  %3038 = vmatprep.subr.mxu0 0.0
  %3039 = vmatpush1.msra.mxu0 0.0
  %3040 = vmatprep.subr.mxu0 0.0
  %3041 = vmatpush1.msra.mxu0 0.0
  %3042 = vmatprep.subr.mxu0 0.0
  %3043 = vmatpush1.msra.mxu0 0.0
  %3044 = vmatprep.subr.mxu0 0.0
  %3045 = vmatpush1.msra.mxu0 0.0
  %3046 = vmatprep.subr.mxu0 0.0
  %3047 = vmatpush1.msra.mxu0 0.0
  %3048 = vmatprep.mubr.f32.mxu0 %v2627
  %3049 = vmatmul.mubr.f32.gmra.mrb[0].mxu0 %v2237
  %v3050 = vpop.f32.mrb[0].mxu0
  %v3051 = vadd.f32 %v2980, %v3050
  %v3052 = vpop.f32.mrb[0].mxu0
  %v3053 = vadd.f32 %v2982, %v3052
  %3054 = vdwg.mxu0
  %3055 = vmatprep.subr.mxu0 0.0
  %3056 = vmatpush1.msra.mxu0 %v2245
  %3057 = vmatprep.subr.mxu0 0.0
  %3058 = vmatpush1.msra.mxu0 %v2252
  %3059 = vmatprep.subr.mxu0 0.0
  %3060 = vmatpush1.msra.mxu0 %v2259
  %3061 = vmatprep.subr.mxu0 0.0
  %3062 = vmatpush1.msra.mxu0 %v2266
  %3063 = vmatprep.subr.mxu0 0.0
  %3064 = vmatpush1.msra.mxu0 %v2273
  %3065 = vmatprep.subr.mxu0 0.0
  %3066 = vmatpush1.msra.mxu0 %v2280
  %3067 = vmatprep.subr.mxu0 0.0
  %3068 = vmatpush1.msra.mxu0 %v2287
  %3069 = vmatprep.subr.mxu0 0.0
  %3070 = vmatpush1.msra.mxu0 %v2294
  %3071 = vmatprep.subr.mxu0 0.0
  %3072 = vmatpush1.msra.mxu0 %v2301
  %3073 = vmatprep.subr.mxu0 0.0
  %3074 = vmatpush1.msra.mxu0 %v2308
  %3075 = vmatprep.subr.mxu0 0.0
  %3076 = vmatpush1.msra.mxu0 %v2315
  %3077 = vmatprep.subr.mxu0 0.0
  %3078 = vmatpush1.msra.mxu0 %v2322
  %3079 = vmatprep.subr.mxu0 0.0
  %3080 = vmatpush1.msra.mxu0 %v2329
  %3081 = vmatprep.subr.mxu0 0.0
  %3082 = vmatpush1.msra.mxu0 %v2336
  %3083 = vmatprep.subr.mxu0 0.0
  %3084 = vmatpush1.msra.mxu0 %v2343
  %3085 = vmatprep.subr.mxu0 0.0
  %3086 = vmatpush1.msra.mxu0 %v2350
  %3087 = vmatprep.subr.mxu0 0.0
  %3088 = vmatpush1.msra.mxu0 %v2357
  %3089 = vmatprep.subr.mxu0 0.0
  %3090 = vmatpush1.msra.mxu0 %v2364
  %3091 = vmatprep.subr.mxu0 0.0
  %3092 = vmatpush1.msra.mxu0 %v2371
  %3093 = vmatprep.subr.mxu0 0.0
  %3094 = vmatpush1.msra.mxu0 %v2378
  %3095 = vmatprep.subr.mxu0 0.0
  %3096 = vmatpush1.msra.mxu0 %v2385
  %3097 = vmatprep.subr.mxu0 0.0
  %3098 = vmatpush1.msra.mxu0 %v2392
  %3099 = vmatprep.subr.mxu0 0.0
  %3100 = vmatpush1.msra.mxu0 %v2399
  %3101 = vmatprep.subr.mxu0 0.0
  %3102 = vmatpush1.msra.mxu0 %v2406
  %3103 = vmatprep.subr.mxu0 0.0
  %3104 = vmatpush1.msra.mxu0 %v2413
  %3105 = vmatprep.subr.mxu0 0.0
  %3106 = vmatpush1.msra.mxu0 %v2420
  %3107 = vmatprep.subr.mxu0 0.0
  %3108 = vmatpush1.msra.mxu0 %v2427
  %3109 = vmatprep.subr.mxu0 0.0
  %3110 = vmatpush1.msra.mxu0 %v2434
  %3111 = vmatprep.subr.mxu0 0.0
  %3112 = vmatpush1.msra.mxu0 %v2441
  %3113 = vmatprep.subr.mxu0 0.0
  %3114 = vmatpush1.msra.mxu0 %v2448
  %3115 = vmatprep.subr.mxu0 0.0
  %3116 = vmatpush1.msra.mxu0 %v2455
  %3117 = vmatprep.subr.mxu0 0.0
  %3118 = vmatpush1.msra.mxu0 %v2462
  %3119 = vmatprep.mubr.f32.mxu0 %v2236
  %3120 = vmatmul.mubr.f32.gmra.mrb[0].mxu0 %v2235
  %v3121 = vpop.f32.mrb[0].mxu0
  %v3122 = vadd.f32 %v2618, %v3121
  %v3123 = vpop.f32.mrb[0].mxu0
  %3124 = vdwg.mxu0
  %3125 = vmatprep.subr.mxu0 0.0
  %3126 = vmatpush1.msra.mxu0 %v2469
  %3127 = vmatprep.subr.mxu0 0.0
  %3128 = vmatpush1.msra.mxu0 %v2476
  %3129 = vmatprep.subr.mxu0 0.0
  %3130 = vmatpush1.msra.mxu0 %v2483
  %3131 = vmatprep.subr.mxu0 0.0
  %3132 = vmatpush1.msra.mxu0 %v2490
  %3133 = vmatprep.subr.mxu0 0.0
  %3134 = vmatpush1.msra.mxu0 %v2497
  %3135 = vmatprep.subr.mxu0 0.0
  %3136 = vmatpush1.msra.mxu0 %v2504
  %3137 = vmatprep.subr.mxu0 0.0
  %3138 = vmatpush1.msra.mxu0 %v2511
  %3139 = vmatprep.subr.mxu0 0.0
  %3140 = vmatpush1.msra.mxu0 %v2518
  %3141 = vmatprep.subr.mxu0 0.0
  %3142 = vmatpush1.msra.mxu0 %v2525
  %3143 = vmatprep.subr.mxu0 0.0
  %3144 = vmatpush1.msra.mxu0 %v2532
  %3145 = vmatprep.subr.mxu0 0.0
  %3146 = vmatpush1.msra.mxu0 %v2539
  %3147 = vmatprep.subr.mxu0 0.0
  %3148 = vmatpush1.msra.mxu0 %v2546
  %3149 = vmatprep.subr.mxu0 0.0
  %3150 = vmatpush1.msra.mxu0 %v2553
  %3151 = vmatprep.subr.mxu0 0.0
  %3152 = vmatpush1.msra.mxu0 %v2560
  %3153 = vmatprep.subr.mxu0 0.0
  %3154 = vmatpush1.msra.mxu0 %v2567
  %3155 = vmatprep.subr.mxu0 0.0
  %3156 = vmatpush1.msra.mxu0 %v2574
  %3157 = vmatprep.subr.mxu0 0.0
  %3158 = vmatpush1.msra.mxu0 %v2581
  %3159 = vmatprep.subr.mxu0 0.0
  %3160 = vmatpush1.msra.mxu0 %v2588
  %3161 = vmatprep.subr.mxu0 0.0
  %3162 = vmatpush1.msra.mxu0 0.0
  %3163 = vmatprep.subr.mxu0 0.0
  %3164 = vmatpush1.msra.mxu0 0.0
  %3165 = vmatprep.subr.mxu0 0.0
  %3166 = vmatpush1.msra.mxu0 0.0
  %3167 = vmatprep.subr.mxu0 0.0
  %3168 = vmatpush1.msra.mxu0 0.0
  %3169 = vmatprep.subr.mxu0 0.0
  %3170 = vmatpush1.msra.mxu0 0.0
  %3171 = vmatprep.subr.mxu0 0.0
  %3172 = vmatpush1.msra.mxu0 0.0
  %3173 = vmatprep.subr.mxu0 0.0
  %3174 = vmatpush1.msra.mxu0 0.0
  %3175 = vmatprep.subr.mxu0 0.0
  %3176 = vmatpush1.msra.mxu0 0.0
  %3177 = vmatprep.subr.mxu0 0.0
  %3178 = vmatpush1.msra.mxu0 0.0
  %3179 = vmatprep.subr.mxu0 0.0
  %3180 = vmatpush1.msra.mxu0 0.0
  %3181 = vmatprep.subr.mxu0 0.0
  %3182 = vmatpush1.msra.mxu0 0.0
  %3183 = vmatprep.subr.mxu0 0.0
  %3184 = vmatpush1.msra.mxu0 0.0
  %3185 = vmatprep.subr.mxu0 0.0
  %3186 = vmatpush1.msra.mxu0 0.0
  %3187 = vmatprep.subr.mxu0 0.0
  %3188 = vmatpush1.msra.mxu0 0.0
  %3189 = vmatprep.mubr.f32.mxu0 %v2627
  %3190 = vmatmul.mubr.f32.gmra.mrb[0].mxu0 %v2237
  %v3191 = vpop.f32.mrb[0].mxu0
  %v3192 = vadd.f32 %v3122, %v3191
  %v3193 = vpop.f32.mrb[0].mxu0
  %3194 = vdwg.mxu0
  %v3195 = vmul.f32 %v2767, 0.5
  %v3196 = vmul.f32 %v2769, 0.5
  %v3197 = vmul.f32 %v2909, 0.5
  %v3198 = vmul.f32 %v2911, 0.5
  %v3199 = vmul.f32 %v3051, 0.5
  %v3200 = vmul.f32 %v3053, 0.5
  %v3201 = vmul.f32 %v3192, 0.5
  %v3202 = vtanh.pop %v3195
  %v3203 = vtanh.pop %v3196
  %v3204 = vtanh.pop %v3197
  %v3205 = vtanh.pop %v3198
  %v3206 = vtanh.pop %v3199
  %v3207 = vtanh.pop %v3200
  %v3208 = vtanh.pop %v3201
  %v3209 = vadd.f32 %v3202, 1.0
  %v3210 = vadd.f32 %v3203, 1.0
  %v3211 = vadd.f32 %v3204, 1.0
  %v3212 = vadd.f32 %v3205, 1.0
  %v3213 = vadd.f32 %v3206, 1.0
  %v3214 = vadd.f32 %v3207, 1.0
  %v3215 = vadd.f32 %v3208, 1.0
  %v3216 = vmul.f32 %v3209, 0.5
  %v3217 = vmul.f32 %v3210, 0.5
  %v3218 = vmul.f32 %v3211, 0.5
  %v3219 = vmul.f32 %v3212, 0.5
  %v3220 = vmul.f32 %v3213, 0.5
  %v3221 = vmul.f32 %v3214, 0.5
  %v3222 = vmul.f32 %v3215, 0.5
  %3223 = vst [vmem:[%s11] sm:$0xff] %v3216
  %3224 = vst [vmem:[%s11 + $0x8] sm:$0xff] %v3217
  %3225 = vst [vmem:[%s11 + $0x10] sm:$0xff] %v3218
  %3226 = vst [vmem:[%s11 + $0x18] sm:$0xff] %v3219
  %3227 = vst [vmem:[%s11 + $0x20] sm:$0xff] %v3220
  %3228 = vst [vmem:[%s11 + $0x28] sm:$0xff] %v3221
  %3229 = vst [vmem:[%s11 + $0x30] sm:$0xff] %v3222
  %3231 = vrot.lane.b32.xlu0 %v1470, 24
  %v3232 = vpop.permute.xlu0 %3231
  %3235 = vrot.lane.b32.xlu0 %v2058, 27
  %v3236 = vpop.permute.xlu0 %3235
  %3239 = vrot.lane.b32.xlu0 %v2063, 27
  %v3240 = vpop.permute.xlu0 %3239
  %v3242 = vsel %vm1265, %v1234, %v1241
  %vm3243 = vcmask 195584
  %v3244 = vsel %vm3243, %v3242, %v3232
  %vm3245 = vcmask 220160
  %v3246 = vsel %vm3245, %v3244, %v3236
  %vm3247 = vcmask 416768
  %v3248 = vsel %vm3247, %v3246, %v3240
  %vm3249 = vcmask 613376
  %v3250 = vsel %vm3249, %v3248, 0.0
  %3251 = vst [vmem:[%s12] sm:$0xff] %v3250
  // Predicated region
  $region46: #{gmvae_forward.1} parent=0 // pred_check
    _
  $region47: #{gmvae_forward.1} parent=0 // pred_check_branch
    %3253 = sbr.rel (0) target = $region49
  $region48: #{gmvae_forward.1} parent=0 // pred_region
    _
  $region49: #{gmvae_forward.1} parent=0 // pred_fallthru
    _
  // Predicated region
  $region50: #{gmvae_forward.1} parent=0 // pred_check
    _
  $region51: #{gmvae_forward.1} parent=0 // pred_check_branch
    %3255 = sbr.rel (0) target = $region53
  $region52: #{gmvae_forward.1} parent=0 // pred_region
    _
  $region53: #{gmvae_forward.1} parent=0 // pred_fallthru
    _
  // Predicated region
  $region54: #{gmvae_forward.1} parent=0 // pred_check
    _
  $region55: #{gmvae_forward.1} parent=0 // pred_check_branch
    %3257 = sbr.rel (0) target = $region57
  $region56: #{gmvae_forward.1} parent=0 // pred_region
    _
  $region57: #{gmvae_forward.1} parent=0 // pred_fallthru
    _
  // Predicated region
  $region58: #{gmvae_forward.1} parent=0 // pred_check
    _
  $region59: #{gmvae_forward.1} parent=0 // pred_check_branch
    %3259 = sbr.rel (0) target = $region61
  $region60: #{gmvae_forward.1} parent=0 // pred_region
    _
  $region61: #{gmvae_forward.1} parent=0 // pred_fallthru
    _

</llo_original>
